<compile_context>
chip_gen: v6e
topology: v6e:2x2x1
jax: 0.10.0
libtpu: 0.0.40
codegen_flags: <defaults>
</compile_context>

<pallas_src>
import functools
import math

import jax
import jax.numpy as jnp
from jax.experimental import pallas as pl
from jax.experimental.pallas import tpu as pltpu

INPUT_DIM = 6
INPUT_DIM_PAD = 8            # zero-padded input features (aligned rows)
D_MODEL = 32
NHEAD = 2
D_HID = 128
NLAYERS = 2
HEAD_DIM = D_MODEL // NHEAD
LN_EPS = 1e-5


def _layernorm(x, w, b):
    # Single pass: var = E[x^2] - E[x]^2 -> one cross-lane reduction instead of two.
    mu = jnp.mean(x, axis=-1, keepdims=True)
    ms = jnp.mean(x * x, axis=-1, keepdims=True)
    var = ms - mu * mu
    return (x - mu) * jax.lax.rsqrt(var + LN_EPS) * w + b


def _mm(a, w_bf16):
    # MXU matmul: bf16 operands, f32 accumulation. LayerNorm/softmax stay f32.
    return jnp.dot(a.astype(jnp.bfloat16), w_bf16, preferred_element_type=jnp.float32)


def residual_model_kernel(
    x_ref,
    proj_w_ref, proj_b_ref,
    qkv_w_ref, qkv_b_ref, ao_w_ref, ao_b_ref,
    l1_w_ref, l1_b_ref, l2_w_ref, l2_b_ref,
    ln1_w_ref, ln1_b_ref, ln2_w_ref, ln2_b_ref,
    outp_w_ref, outp_b_ref, fn_w_ref, fn_b_ref,
    reg_w_ref, reg_b_ref,
    out_ref,
):
    x = x_ref[...]                                   # (TB, S, 8) f32 batch tile
    tb, s_len, _ = x.shape
    n = tb * s_len
    bf16 = jnp.bfloat16

    # Input projection: flatten (TB, S) into the matmul M dimension.
    h = _mm(x.reshape(n, INPUT_DIM_PAD), proj_w_ref[...]) + proj_b_ref[...]   # (N, D) f32

    scale = 1.0 / math.sqrt(HEAD_DIM)
    for l in range(NLAYERS):
        # ---- Multi-head self-attention (dropout = identity in eval) ----
        qkv = _mm(h, qkv_w_ref[l]) + qkv_b_ref[l]                         # (N, 3D)
        q = qkv[:, 0 * D_MODEL:1 * D_MODEL].reshape(tb, s_len, D_MODEL)
        k = qkv[:, 1 * D_MODEL:2 * D_MODEL].reshape(tb, s_len, D_MODEL)
        v = qkv[:, 2 * D_MODEL:3 * D_MODEL].reshape(tb, s_len, D_MODEL)
        ao_w = ao_w_ref[l]                                                # (D, D) bf16
        head_outs = []
        for hh in range(NHEAD):
            sl = slice(hh * HEAD_DIM, (hh + 1) * HEAD_DIM)
            # bf16 operands, f32 accumulation (same policy as _mm).
            qh = q[:, :, sl].astype(bf16)
            kh = k[:, :, sl].astype(bf16)
            vh = v[:, :, sl].astype(bf16)
            sc = jnp.einsum('bqd,bkd->bqk', qh, kh,
                            preferred_element_type=jnp.float32) * scale
            sc = sc - jnp.max(sc, axis=-1, keepdims=True)
            p = jnp.exp(sc)
            p = p * pl.reciprocal(jnp.sum(p, axis=-1, keepdims=True), approx=True)
            oh = jnp.einsum('bqk,bkd->bqd', p.astype(bf16), vh,
                            preferred_element_type=jnp.float32)           # (TB, S, Dh)
            # Fold the output projection per head -> no lane-dim concat.
            head_outs.append(_mm(oh.reshape(n, HEAD_DIM), ao_w[sl, :]))
        attn = sum(head_outs) + ao_b_ref[l]
        h = _layernorm(h + attn, ln1_w_ref[l], ln1_b_ref[l])              # post-LN

        # ---- Feed-forward (ReLU) ----
        ff = _mm(h, l1_w_ref[l]) + l1_b_ref[l]
        ff = jnp.maximum(ff, 0.0)
        ff = _mm(ff, l2_w_ref[l]) + l2_b_ref[l]
        h = _layernorm(h + ff, ln2_w_ref[l], ln2_b_ref[l])

    # Mean-pool over sequence, output head, final LayerNorm.
    z = jnp.mean(h.reshape(tb, s_len, D_MODEL), axis=1)                   # (TB, D)
    z = _mm(z, outp_w_ref[...]) + outp_b_ref[...]
    z = _layernorm(z, fn_w_ref[...], fn_b_ref[...])

    # Regressor (y_std / y_mean already folded into reg_w / reg_b) as a lane
    # reduction; the output block is lane-dense (1, TB).
    pred = jnp.sum(z * reg_w_ref[...], axis=-1)[None, :] + reg_b_ref[...]  # (1, TB)
    out_ref[...] = pred


PARAM_ORDER = (
    'proj_w', 'proj_b',
    'qkv_w', 'qkv_b', 'ao_w', 'ao_b',
    'l1_w', 'l1_b', 'l2_w', 'l2_b',
    'ln1_w', 'ln1_b', 'ln2_w', 'ln2_b',
    'outp_w', 'outp_b', 'fn_w', 'fn_b',
    'reg_w', 'reg_b',
)


def _prepare(params, y_stats):
    """Pre-transpose matmul weights to (in, out), cast to bf16, pad the input
    projection to 8 input features, and fold y_mean / y_std into the regressor.
    Runs under jit (y_stats stays a traced array -> no recompile per value)."""
    bf16 = jnp.bfloat16
    p = dict(params)
    proj_w = params['proj_w'].T                                           # (6, D)
    proj_w = jnp.pad(proj_w, ((0, INPUT_DIM_PAD - INPUT_DIM), (0, 0)))    # (8, D)
    p['proj_w'] = proj_w.astype(bf16)
    p['qkv_w'] = jnp.transpose(params['qkv_w'], (0, 2, 1)).astype(bf16)   # (L, D, 3D)
    p['ao_w'] = jnp.transpose(params['ao_w'], (0, 2, 1)).astype(bf16)     # (L, D, D)
    p['l1_w'] = jnp.transpose(params['l1_w'], (0, 2, 1)).astype(bf16)     # (L, D, H)
    p['l2_w'] = jnp.transpose(params['l2_w'], (0, 2, 1)).astype(bf16)     # (L, H, D)
    p['outp_w'] = params['outp_w'].T.astype(bf16)                         # (D, D)
    # Fold de-normalization (pred * y_std + y_mean) into the regressor (f32).
    y_mean = y_stats[0, 0]
    y_std = y_stats[0, 1]
    p['reg_w'] = params['reg_w'] * y_std                                  # (1, D)
    p['reg_b'] = params['reg_b'] * y_std + y_mean                         # (1, 1)
    # biases / LayerNorm params / reg_w stay f32 (reg_w is a lane reduction).
    return p


def _round_up(a, m):
    return (a + m - 1) // m * m


@functools.partial(jax.jit, static_argnames=('tb',))
def residual_model_linear(x, params, y_stats, tb=512):
    """x: (B, S, 6) f32, y_stats: (1, 2) f32 = [[y_mean, y_std]]. Returns (B, 1) f32."""
    B, S, F = x.shape
    assert F == INPUT_DIM
    p = _prepare(params, y_stats)

    # Batch-tile selection:
    #   * big tiles amortize per-grid-step overhead (per-tile FLOPs are tiny),
    #   * for large B keep >=2 grid steps so both v7x TensorCores are used,
    #   * multi-tile runs need TB to be a multiple of 128 (lane-dense (1, TB) output).
    if B <= 256:
        TB = B                                               # single grid step
    else:
        TB = max(128, min(_round_up(tb, 128), _round_up(pl.cdiv(B, 2), 128)))
    Bp = _round_up(B, TB)

    # Pad batch (zero rows are sliced off at the end) and features 6 -> 8.
    x = jnp.pad(x, ((0, Bp - B), (0, 0), (0, INPUT_DIM_PAD - F)))

    weights = tuple(p[name] for name in PARAM_ORDER)
    in_specs = (
        [pl.BlockSpec((TB, S, INPUT_DIM_PAD), lambda i: (i, 0, 0))]       # batch-tiled x
        + [pl.BlockSpec(w.shape, lambda i, _n=w.ndim: (0,) * _n)          # resident weights
           for w in weights]
    )
    out = pl.pallas_call(
        residual_model_kernel,
        grid=(Bp // TB,),
        in_specs=in_specs,
        out_specs=pl.BlockSpec((1, TB), lambda i: (0, i)),                # lane-dense output
        out_shape=jax.ShapeDtypeStruct((1, Bp), jnp.float32),
        compiler_params=pltpu.CompilerParams(
            dimension_semantics=("parallel",),      # shard batch tiles across TCs (v7x)
            vmem_limit_bytes=48 * 1024 * 1024,      # not binding (~10-15 MiB used at TB=512)
        ),
    )(x, *weights)
    return out[0, :B].reshape(B, 1)


def init_params(key):
    ks = jax.random.split(key, 12)

    def rn(k, shape, fan_in):
        bound = 1.0 / math.sqrt(fan_in)
        return jax.random.uniform(k, shape, jnp.float32, -bound, bound)

    # Torch Linear convention: weight is (out_features, in_features).
    return dict(
        proj_w=rn(ks[0], (D_MODEL, INPUT_DIM), INPUT_DIM),
        proj_b=rn(ks[1], (1, D_MODEL), INPUT_DIM),
        qkv_w=rn(ks[2], (NLAYERS, 3 * D_MODEL, D_MODEL), D_MODEL),
        qkv_b=jnp.zeros((NLAYERS, 1, 3 * D_MODEL), jnp.float32),
        ao_w=rn(ks[3], (NLAYERS, D_MODEL, D_MODEL), D_MODEL),
        ao_b=jnp.zeros((NLAYERS, 1, D_MODEL), jnp.float32),
        l1_w=rn(ks[4], (NLAYERS, D_HID, D_MODEL), D_MODEL),
        l1_b=rn(ks[5], (NLAYERS, 1, D_HID), D_MODEL),
        l2_w=rn(ks[6], (NLAYERS, D_MODEL, D_HID), D_HID),
        l2_b=rn(ks[7], (NLAYERS, 1, D_MODEL), D_HID),
        ln1_w=jnp.ones((NLAYERS, 1, D_MODEL), jnp.float32),
        ln1_b=jnp.zeros((NLAYERS, 1, D_MODEL), jnp.float32),
        ln2_w=jnp.ones((NLAYERS, 1, D_MODEL), jnp.float32),
        ln2_b=jnp.zeros((NLAYERS, 1, D_MODEL), jnp.float32),
        outp_w=rn(ks[8], (D_MODEL, D_MODEL), D_MODEL),
        outp_b=rn(ks[9], (1, D_MODEL), D_MODEL),
        fn_w=jnp.ones((1, D_MODEL), jnp.float32),
        fn_b=jnp.zeros((1, D_MODEL), jnp.float32),
        reg_w=rn(ks[10], (1, D_MODEL), D_MODEL),
        reg_b=rn(ks[11], (1, 1), D_MODEL),
    )


def _reference_forward(x, params, y_stats):
    """Pure-JAX f32 reference mirroring the PyTorch forward (eval mode)."""
    def ln(t, w, b):
        mu = t.mean(-1, keepdims=True)
        var = ((t - mu) ** 2).mean(-1, keepdims=True)
        return (t - mu) / jnp.sqrt(var + LN_EPS) * w + b

    h = x @ params['proj_w'].T + params['proj_b']                         # (B, S, D)
    for l in range(NLAYERS):
        qkv = h @ params['qkv_w'][l].T + params['qkv_b'][l]
        q, k, v = jnp.split(qkv, 3, axis=-1)
        outs = []
        for hh in range(NHEAD):
            sl = slice(hh * HEAD_DIM, (hh + 1) * HEAD_DIM)
            sc = jnp.einsum('bqd,bkd->bqk', q[..., sl], k[..., sl]) / math.sqrt(HEAD_DIM)
            pr = jax.nn.softmax(sc, axis=-1)
            outs.append(jnp.einsum('bqk,bkd->bqd', pr, v[..., sl]))
        attn = jnp.concatenate(outs, axis=-1) @ params['ao_w'][l].T + params['ao_b'][l]
        h = ln(h + attn, params['ln1_w'][l], params['ln1_b'][l])
        ff = jnp.maximum(h @ params['l1_w'][l].T + params['l1_b'][l], 0.0)
        ff = ff @ params['l2_w'][l].T + params['l2_b'][l]
        h = ln(h + ff, params['ln2_w'][l], params['ln2_b'][l])
    z = h.mean(axis=1)
    z = z @ params['outp_w'].T + params['outp_b']
    z = ln(z, params['fn_w'], params['fn_b'])
    pred = z @ params['reg_w'].T + params['reg_b']
    return pred * y_stats[0, 1] + y_stats[0, 0]


if __name__ == "__main__":
    key = jax.random.PRNGKey(0)
    kx, kp = jax.random.split(key)
    B, S = 4, 8
    x = jax.random.normal(kx, (B, S, INPUT_DIM), dtype=jnp.float32)
    params = init_params(kp)
    y_stats = jnp.array([[2.5, 1.3]], dtype=jnp.float32)   # [[y_mean, y_std]]

    out = residual_model_linear(x, params, y_stats)
    jax.block_until_ready(out)
    assert out.shape == (B, 1) and out.dtype == jnp.float32

    # Loose-tolerance check vs an f32 reference (bf16 matmuls + approx softmax
    # reciprocal cause small, expected deviations).
    ref = _reference_forward(x, params, y_stats)
    assert jnp.allclose(out, ref, rtol=1e-1, atol=1e-1)
    print("KERNEL_OK")
</pallas_src>

<mosaic_0001>
module attributes {stable_mosaic.version = 11 : i64} {
  func.func @residual_model_kernel(%arg0: i32, %arg1: memref<4x8x8xf32, #tpu.memory_space<vmem>>, %arg2: memref<8x32xbf16, #tpu.memory_space<vmem>>, %arg3: memref<1x32xf32, #tpu.memory_space<vmem>>, %arg4: memref<2x32x96xbf16, #tpu.memory_space<vmem>>, %arg5: memref<2x1x96xf32, #tpu.memory_space<vmem>>, %arg6: memref<2x32x32xbf16, #tpu.memory_space<vmem>>, %arg7: memref<2x1x32xf32, #tpu.memory_space<vmem>>, %arg8: memref<2x32x128xbf16, #tpu.memory_space<vmem>>, %arg9: memref<2x1x128xf32, #tpu.memory_space<vmem>>, %arg10: memref<2x128x32xbf16, #tpu.memory_space<vmem>>, %arg11: memref<2x1x32xf32, #tpu.memory_space<vmem>>, %arg12: memref<2x1x32xf32, #tpu.memory_space<vmem>>, %arg13: memref<2x1x32xf32, #tpu.memory_space<vmem>>, %arg14: memref<2x1x32xf32, #tpu.memory_space<vmem>>, %arg15: memref<2x1x32xf32, #tpu.memory_space<vmem>>, %arg16: memref<32x32xbf16, #tpu.memory_space<vmem>>, %arg17: memref<1x32xf32, #tpu.memory_space<vmem>>, %arg18: memref<1x32xf32, #tpu.memory_space<vmem>>, %arg19: memref<1x32xf32, #tpu.memory_space<vmem>>, %arg20: memref<1x32xf32, #tpu.memory_space<vmem>>, %arg21: memref<1x1xf32, #tpu.memory_space<vmem>>, %arg22: memref<1x4xf32, #tpu.memory_space<vmem>>) attributes {dimension_semantics = [#tpu.dimension_semantics<parallel>], iteration_bounds = array<i64: 1>, scalar_prefetch = 0 : i64, scratch_operands = 0 : i64, tpu.core_type = #tpu.core_type<tc>, window_params = [{transform_indices = @transform_0, window_bounds = array<i64: 4, 8, 8>}, {pipeline_mode = #tpu.pipeline_mode<synchronous>, transform_indices = @transform_1, window_bounds = array<i64: 8, 32>}, {pipeline_mode = #tpu.pipeline_mode<synchronous>, transform_indices = @transform_2, window_bounds = array<i64: 1, 32>}, {pipeline_mode = #tpu.pipeline_mode<synchronous>, transform_indices = @transform_3, window_bounds = array<i64: 2, 32, 96>}, {pipeline_mode = #tpu.pipeline_mode<synchronous>, transform_indices = @transform_4, window_bounds = array<i64: 2, 1, 96>}, {pipeline_mode = #tpu.pipeline_mode<synchronous>, transform_indices = @transform_5, window_bounds = array<i64: 2, 32, 32>}, {pipeline_mode = #tpu.pipeline_mode<synchronous>, transform_indices = @transform_6, window_bounds = array<i64: 2, 1, 32>}, {pipeline_mode = #tpu.pipeline_mode<synchronous>, transform_indices = @transform_7, window_bounds = array<i64: 2, 32, 128>}, {pipeline_mode = #tpu.pipeline_mode<synchronous>, transform_indices = @transform_8, window_bounds = array<i64: 2, 1, 128>}, {pipeline_mode = #tpu.pipeline_mode<synchronous>, transform_indices = @transform_9, window_bounds = array<i64: 2, 128, 32>}, {pipeline_mode = #tpu.pipeline_mode<synchronous>, transform_indices = @transform_10, window_bounds = array<i64: 2, 1, 32>}, {pipeline_mode = #tpu.pipeline_mode<synchronous>, transform_indices = @transform_11, window_bounds = array<i64: 2, 1, 32>}, {pipeline_mode = #tpu.pipeline_mode<synchronous>, transform_indices = @transform_12, window_bounds = array<i64: 2, 1, 32>}, {pipeline_mode = #tpu.pipeline_mode<synchronous>, transform_indices = @transform_13, window_bounds = array<i64: 2, 1, 32>}, {pipeline_mode = #tpu.pipeline_mode<synchronous>, transform_indices = @transform_14, window_bounds = array<i64: 2, 1, 32>}, {pipeline_mode = #tpu.pipeline_mode<synchronous>, transform_indices = @transform_15, window_bounds = array<i64: 32, 32>}, {pipeline_mode = #tpu.pipeline_mode<synchronous>, transform_indices = @transform_16, window_bounds = array<i64: 1, 32>}, {pipeline_mode = #tpu.pipeline_mode<synchronous>, transform_indices = @transform_17, window_bounds = array<i64: 1, 32>}, {pipeline_mode = #tpu.pipeline_mode<synchronous>, transform_indices = @transform_18, window_bounds = array<i64: 1, 32>}, {pipeline_mode = #tpu.pipeline_mode<synchronous>, transform_indices = @transform_19, window_bounds = array<i64: 1, 32>}, {pipeline_mode = #tpu.pipeline_mode<synchronous>, transform_indices = @transform_20, window_bounds = array<i64: 1, 1>}, {transform_indices = @transform_21, window_bounds = array<i64: 1, 4>}]} {
    %c0 = arith.constant 0 : index
    %c0_0 = arith.constant 0 : index
    %c0_1 = arith.constant 0 : index
    %0 = vector.load %arg1[%c0, %c0_0, %c0_1] : memref<4x8x8xf32, #tpu.memory_space<vmem>>, vector<4x8x8xf32>
    %1 = vector.shape_cast %0 : vector<4x8x8xf32> to vector<32x8xf32>
    %c0_2 = arith.constant 0 : index
    %c0_3 = arith.constant 0 : index
    %2 = vector.load %arg2[%c0_2, %c0_3] : memref<8x32xbf16, #tpu.memory_space<vmem>>, vector<8x32xbf16>
    %3 = arith.truncf %1 : vector<32x8xf32> to vector<32x8xbf16>
    %cst = arith.constant dense<0.000000e+00> : vector<32x32xf32>
    %4 = tpu.matmul %3, %2, %cst {dimension_numbers = #tpu.dot_dimension_numbers<[1], [0], [0], [1], [0, 0, 1, 1], [], []>} : vector<32x8xbf16>, vector<8x32xbf16>, vector<32x32xf32> -> vector<32x32xf32>
    %c0_4 = arith.constant 0 : index
    %c0_5 = arith.constant 0 : index
    %5 = vector.load %arg3[%c0_4, %c0_5] : memref<1x32xf32, #tpu.memory_space<vmem>>, vector<1x32xf32>
    %6 = vector.broadcast %5 : vector<1x32xf32> to vector<32x32xf32>
    %7 = arith.addf %4, %6 : vector<32x32xf32>
    %c0_6 = arith.constant 0 : index
    %c0_7 = arith.constant 0 : index
    %c0_8 = arith.constant 0 : index
    %8 = vector.load %arg4[%c0_6, %c0_7, %c0_8] : memref<2x32x96xbf16, #tpu.memory_space<vmem>>, vector<1x32x96xbf16>
    %9 = vector.shape_cast %8 : vector<1x32x96xbf16> to vector<32x96xbf16>
    %10 = arith.truncf %7 : vector<32x32xf32> to vector<32x32xbf16>
    %cst_9 = arith.constant dense<0.000000e+00> : vector<32x96xf32>
    %11 = tpu.matmul %10, %9, %cst_9 {dimension_numbers = #tpu.dot_dimension_numbers<[1], [0], [0], [1], [0, 0, 1, 1], [], []>} : vector<32x32xbf16>, vector<32x96xbf16>, vector<32x96xf32> -> vector<32x96xf32>
    %c0_10 = arith.constant 0 : index
    %c0_11 = arith.constant 0 : index
    %c0_12 = arith.constant 0 : index
    %12 = vector.load %arg5[%c0_10, %c0_11, %c0_12] : memref<2x1x96xf32, #tpu.memory_space<vmem>>, vector<1x1x96xf32>
    %13 = vector.shape_cast %12 : vector<1x1x96xf32> to vector<1x96xf32>
    %14 = vector.broadcast %13 : vector<1x96xf32> to vector<32x96xf32>
    %15 = arith.addf %11, %14 : vector<32x96xf32>
    %16 = vector.extract_strided_slice %15 {offsets = [0, 0], sizes = [32, 32], strides = [1, 1]} : vector<32x96xf32> to vector<32x32xf32>
    %17 = vector.shape_cast %16 : vector<32x32xf32> to vector<4x8x32xf32>
    %18 = vector.extract_strided_slice %15 {offsets = [0, 32], sizes = [32, 32], strides = [1, 1]} : vector<32x96xf32> to vector<32x32xf32>
    %19 = vector.shape_cast %18 : vector<32x32xf32> to vector<4x8x32xf32>
    %20 = vector.extract_strided_slice %15 {offsets = [0, 64], sizes = [32, 32], strides = [1, 1]} : vector<32x96xf32> to vector<32x32xf32>
    %21 = vector.shape_cast %20 : vector<32x32xf32> to vector<4x8x32xf32>
    %c0_13 = arith.constant 0 : index
    %c0_14 = arith.constant 0 : index
    %c0_15 = arith.constant 0 : index
    %22 = vector.load %arg6[%c0_13, %c0_14, %c0_15] : memref<2x32x32xbf16, #tpu.memory_space<vmem>>, vector<1x32x32xbf16>
    %23 = vector.shape_cast %22 : vector<1x32x32xbf16> to vector<32x32xbf16>
    %24 = vector.extract_strided_slice %17 {offsets = [0, 0, 0], sizes = [4, 8, 16], strides = [1, 1, 1]} : vector<4x8x32xf32> to vector<4x8x16xf32>
    %25 = arith.truncf %24 : vector<4x8x16xf32> to vector<4x8x16xbf16>
    %26 = vector.extract_strided_slice %19 {offsets = [0, 0, 0], sizes = [4, 8, 16], strides = [1, 1, 1]} : vector<4x8x32xf32> to vector<4x8x16xf32>
    %27 = arith.truncf %26 : vector<4x8x16xf32> to vector<4x8x16xbf16>
    %28 = vector.extract_strided_slice %21 {offsets = [0, 0, 0], sizes = [4, 8, 16], strides = [1, 1, 1]} : vector<4x8x32xf32> to vector<4x8x16xf32>
    %29 = arith.truncf %28 : vector<4x8x16xf32> to vector<4x8x16xbf16>
    "tpu.trace_start"() <{level = 10 : i32, message = "bqd,bkd->bqk"}> : () -> ()
    %cst_16 = arith.constant dense<0.000000e+00> : vector<4x8x8xf32>
    %30 = tpu.matmul %25, %27, %cst_16 {dimension_numbers = #tpu.dot_dimension_numbers<[2], [2], [1], [1], [0, 0, 0, 1, 1, 1], [0], [0]>} : vector<4x8x16xbf16>, vector<4x8x16xbf16>, vector<4x8x8xf32> -> vector<4x8x8xf32>
    "tpu.trace_stop"() : () -> ()
    %cst_17 = arith.constant 2.500000e-01 : f32
    %31 = vector.broadcast %cst_17 : f32 to vector<4x8x8xf32>
    %32 = arith.mulf %30, %31 : vector<4x8x8xf32>
    %cst_18 = arith.constant dense<0xFF800000> : vector<4x8xf32>
    %33 = vector.multi_reduction <maximumf>, %32, %cst_18 [2] : vector<4x8x8xf32> to vector<4x8xf32>
    %34 = vector.shape_cast %33 : vector<4x8xf32> to vector<4x8x1xf32>
    %35 = vector.broadcast %34 : vector<4x8x1xf32> to vector<4x8x8xf32>
    %36 = arith.subf %32, %35 : vector<4x8x8xf32>
    %37 = math.exp %36 : vector<4x8x8xf32>
    %cst_19 = arith.constant dense<0.000000e+00> : vector<4x8xf32>
    %38 = vector.multi_reduction <add>, %37, %cst_19 [2] : vector<4x8x8xf32> to vector<4x8xf32>
    %39 = vector.shape_cast %38 : vector<4x8xf32> to vector<4x8x1xf32>
    %40 = tpu.reciprocal %39 {approx = true} : vector<4x8x1xf32> -> vector<4x8x1xf32>
    %41 = vector.broadcast %40 : vector<4x8x1xf32> to vector<4x8x8xf32>
    %42 = arith.mulf %37, %41 : vector<4x8x8xf32>
    %43 = arith.truncf %42 : vector<4x8x8xf32> to vector<4x8x8xbf16>
    "tpu.trace_start"() <{level = 10 : i32, message = "bqk,bkd->bqd"}> : () -> ()
    %cst_20 = arith.constant dense<0.000000e+00> : vector<4x8x16xf32>
    %44 = tpu.matmul %43, %29, %cst_20 {dimension_numbers = #tpu.dot_dimension_numbers<[2], [1], [1], [2], [0, 0, 0, 1, 1, 2], [0], [0]>} : vector<4x8x8xbf16>, vector<4x8x16xbf16>, vector<4x8x16xf32> -> vector<4x8x16xf32>
    "tpu.trace_stop"() : () -> ()
    %45 = vector.shape_cast %44 : vector<4x8x16xf32> to vector<32x16xf32>
    %46 = vector.extract_strided_slice %23 {offsets = [0, 0], sizes = [16, 32], strides = [1, 1]} : vector<32x32xbf16> to vector<16x32xbf16>
    %47 = arith.truncf %45 : vector<32x16xf32> to vector<32x16xbf16>
    %cst_21 = arith.constant dense<0.000000e+00> : vector<32x32xf32>
    %48 = tpu.matmul %47, %46, %cst_21 {dimension_numbers = #tpu.dot_dimension_numbers<[1], [0], [0], [1], [0, 0, 1, 1], [], []>} : vector<32x16xbf16>, vector<16x32xbf16>, vector<32x32xf32> -> vector<32x32xf32>
    %49 = vector.extract_strided_slice %17 {offsets = [0, 0, 16], sizes = [4, 8, 16], strides = [1, 1, 1]} : vector<4x8x32xf32> to vector<4x8x16xf32>
    %50 = arith.truncf %49 : vector<4x8x16xf32> to vector<4x8x16xbf16>
    %51 = vector.extract_strided_slice %19 {offsets = [0, 0, 16], sizes = [4, 8, 16], strides = [1, 1, 1]} : vector<4x8x32xf32> to vector<4x8x16xf32>
    %52 = arith.truncf %51 : vector<4x8x16xf32> to vector<4x8x16xbf16>
    %53 = vector.extract_strided_slice %21 {offsets = [0, 0, 16], sizes = [4, 8, 16], strides = [1, 1, 1]} : vector<4x8x32xf32> to vector<4x8x16xf32>
    %54 = arith.truncf %53 : vector<4x8x16xf32> to vector<4x8x16xbf16>
    "tpu.trace_start"() <{level = 10 : i32, message = "bqd,bkd->bqk"}> : () -> ()
    %cst_22 = arith.constant dense<0.000000e+00> : vector<4x8x8xf32>
    %55 = tpu.matmul %50, %52, %cst_22 {dimension_numbers = #tpu.dot_dimension_numbers<[2], [2], [1], [1], [0, 0, 0, 1, 1, 1], [0], [0]>} : vector<4x8x16xbf16>, vector<4x8x16xbf16>, vector<4x8x8xf32> -> vector<4x8x8xf32>
    "tpu.trace_stop"() : () -> ()
    %cst_23 = arith.constant 2.500000e-01 : f32
    %56 = vector.broadcast %cst_23 : f32 to vector<4x8x8xf32>
    %57 = arith.mulf %55, %56 : vector<4x8x8xf32>
    %cst_24 = arith.constant dense<0xFF800000> : vector<4x8xf32>
    %58 = vector.multi_reduction <maximumf>, %57, %cst_24 [2] : vector<4x8x8xf32> to vector<4x8xf32>
    %59 = vector.shape_cast %58 : vector<4x8xf32> to vector<4x8x1xf32>
    %60 = vector.broadcast %59 : vector<4x8x1xf32> to vector<4x8x8xf32>
    %61 = arith.subf %57, %60 : vector<4x8x8xf32>
    %62 = math.exp %61 : vector<4x8x8xf32>
    %cst_25 = arith.constant dense<0.000000e+00> : vector<4x8xf32>
    %63 = vector.multi_reduction <add>, %62, %cst_25 [2] : vector<4x8x8xf32> to vector<4x8xf32>
    %64 = vector.shape_cast %63 : vector<4x8xf32> to vector<4x8x1xf32>
    %65 = tpu.reciprocal %64 {approx = true} : vector<4x8x1xf32> -> vector<4x8x1xf32>
    %66 = vector.broadcast %65 : vector<4x8x1xf32> to vector<4x8x8xf32>
    %67 = arith.mulf %62, %66 : vector<4x8x8xf32>
    %68 = arith.truncf %67 : vector<4x8x8xf32> to vector<4x8x8xbf16>
    "tpu.trace_start"() <{level = 10 : i32, message = "bqk,bkd->bqd"}> : () -> ()
    %cst_26 = arith.constant dense<0.000000e+00> : vector<4x8x16xf32>
    %69 = tpu.matmul %68, %54, %cst_26 {dimension_numbers = #tpu.dot_dimension_numbers<[2], [1], [1], [2], [0, 0, 0, 1, 1, 2], [0], [0]>} : vector<4x8x8xbf16>, vector<4x8x16xbf16>, vector<4x8x16xf32> -> vector<4x8x16xf32>
    "tpu.trace_stop"() : () -> ()
    %70 = vector.shape_cast %69 : vector<4x8x16xf32> to vector<32x16xf32>
    %71 = vector.extract_strided_slice %23 {offsets = [16, 0], sizes = [16, 32], strides = [1, 1]} : vector<32x32xbf16> to vector<16x32xbf16>
    %72 = arith.truncf %70 : vector<32x16xf32> to vector<32x16xbf16>
    %cst_27 = arith.constant dense<0.000000e+00> : vector<32x32xf32>
    %73 = tpu.matmul %72, %71, %cst_27 {dimension_numbers = #tpu.dot_dimension_numbers<[1], [0], [0], [1], [0, 0, 1, 1], [], []>} : vector<32x16xbf16>, vector<16x32xbf16>, vector<32x32xf32> -> vector<32x32xf32>
    %cst_28 = arith.constant 0.000000e+00 : f32
    %74 = vector.broadcast %cst_28 : f32 to vector<32x32xf32>
    %75 = arith.addf %74, %48 : vector<32x32xf32>
    %76 = arith.addf %75, %73 : vector<32x32xf32>
    %c0_29 = arith.constant 0 : index
    %c0_30 = arith.constant 0 : index
    %c0_31 = arith.constant 0 : index
    %77 = vector.load %arg7[%c0_29, %c0_30, %c0_31] : memref<2x1x32xf32, #tpu.memory_space<vmem>>, vector<1x1x32xf32>
    %78 = vector.shape_cast %77 : vector<1x1x32xf32> to vector<1x32xf32>
    %79 = vector.broadcast %78 : vector<1x32xf32> to vector<32x32xf32>
    %80 = arith.addf %76, %79 : vector<32x32xf32>
    %81 = arith.addf %7, %80 : vector<32x32xf32>
    %c0_32 = arith.constant 0 : index
    %c0_33 = arith.constant 0 : index
    %c0_34 = arith.constant 0 : index
    %82 = vector.load %arg12[%c0_32, %c0_33, %c0_34] : memref<2x1x32xf32, #tpu.memory_space<vmem>>, vector<1x1x32xf32>
    %83 = vector.shape_cast %82 : vector<1x1x32xf32> to vector<1x32xf32>
    %c0_35 = arith.constant 0 : index
    %c0_36 = arith.constant 0 : index
    %c0_37 = arith.constant 0 : index
    %84 = vector.load %arg13[%c0_35, %c0_36, %c0_37] : memref<2x1x32xf32, #tpu.memory_space<vmem>>, vector<1x1x32xf32>
    %85 = vector.shape_cast %84 : vector<1x1x32xf32> to vector<1x32xf32>
    %cst_38 = arith.constant dense<0.000000e+00> : vector<32xf32>
    %86 = vector.multi_reduction <add>, %81, %cst_38 [1] : vector<32x32xf32> to vector<32xf32>
    %87 = vector.shape_cast %86 : vector<32xf32> to vector<32x1xf32>
    %cst_39 = arith.constant 3.200000e+01 : f32
    %88 = vector.broadcast %cst_39 : f32 to vector<32x1xf32>
    %89 = arith.divf %87, %88 : vector<32x1xf32>
    %90 = arith.mulf %81, %81 : vector<32x32xf32>
    %cst_40 = arith.constant dense<0.000000e+00> : vector<32xf32>
    %91 = vector.multi_reduction <add>, %90, %cst_40 [1] : vector<32x32xf32> to vector<32xf32>
    %92 = vector.shape_cast %91 : vector<32xf32> to vector<32x1xf32>
    %cst_41 = arith.constant 3.200000e+01 : f32
    %93 = vector.broadcast %cst_41 : f32 to vector<32x1xf32>
    %94 = arith.divf %92, %93 : vector<32x1xf32>
    %95 = arith.mulf %89, %89 : vector<32x1xf32>
    %96 = arith.subf %94, %95 : vector<32x1xf32>
    %97 = vector.broadcast %89 : vector<32x1xf32> to vector<32x32xf32>
    %98 = arith.subf %81, %97 : vector<32x32xf32>
    %cst_42 = arith.constant 9.99999974E-6 : f32
    %99 = vector.broadcast %cst_42 : f32 to vector<32x1xf32>
    %100 = arith.addf %96, %99 : vector<32x1xf32>
    %101 = math.rsqrt %100 : vector<32x1xf32>
    %102 = vector.broadcast %101 : vector<32x1xf32> to vector<32x32xf32>
    %103 = arith.mulf %98, %102 : vector<32x32xf32>
    %104 = vector.broadcast %83 : vector<1x32xf32> to vector<32x32xf32>
    %105 = arith.mulf %103, %104 : vector<32x32xf32>
    %106 = vector.broadcast %85 : vector<1x32xf32> to vector<32x32xf32>
    %107 = arith.addf %105, %106 : vector<32x32xf32>
    %c0_43 = arith.constant 0 : index
    %c0_44 = arith.constant 0 : index
    %c0_45 = arith.constant 0 : index
    %108 = vector.load %arg8[%c0_43, %c0_44, %c0_45] : memref<2x32x128xbf16, #tpu.memory_space<vmem>>, vector<1x32x128xbf16>
    %109 = vector.shape_cast %108 : vector<1x32x128xbf16> to vector<32x128xbf16>
    %110 = arith.truncf %107 : vector<32x32xf32> to vector<32x32xbf16>
    %cst_46 = arith.constant dense<0.000000e+00> : vector<32x128xf32>
    %111 = tpu.matmul %110, %109, %cst_46 {dimension_numbers = #tpu.dot_dimension_numbers<[1], [0], [0], [1], [0, 0, 1, 1], [], []>} : vector<32x32xbf16>, vector<32x128xbf16>, vector<32x128xf32> -> vector<32x128xf32>
    %c0_47 = arith.constant 0 : index
    %c0_48 = arith.constant 0 : index
    %c0_49 = arith.constant 0 : index
    %112 = vector.load %arg9[%c0_47, %c0_48, %c0_49] : memref<2x1x128xf32, #tpu.memory_space<vmem>>, vector<1x1x128xf32>
    %113 = vector.shape_cast %112 : vector<1x1x128xf32> to vector<1x128xf32>
    %114 = vector.broadcast %113 : vector<1x128xf32> to vector<32x128xf32>
    %115 = arith.addf %111, %114 : vector<32x128xf32>
    %cst_50 = arith.constant 0.000000e+00 : f32
    %116 = vector.broadcast %cst_50 : f32 to vector<32x128xf32>
    %117 = arith.maximumf %115, %116 : vector<32x128xf32>
    %c0_51 = arith.constant 0 : index
    %c0_52 = arith.constant 0 : index
    %c0_53 = arith.constant 0 : index
    %118 = vector.load %arg10[%c0_51, %c0_52, %c0_53] : memref<2x128x32xbf16, #tpu.memory_space<vmem>>, vector<1x128x32xbf16>
    %119 = vector.shape_cast %118 : vector<1x128x32xbf16> to vector<128x32xbf16>
    %120 = arith.truncf %117 : vector<32x128xf32> to vector<32x128xbf16>
    %cst_54 = arith.constant dense<0.000000e+00> : vector<32x32xf32>
    %121 = tpu.matmul %120, %119, %cst_54 {dimension_numbers = #tpu.dot_dimension_numbers<[1], [0], [0], [1], [0, 0, 1, 1], [], []>} : vector<32x128xbf16>, vector<128x32xbf16>, vector<32x32xf32> -> vector<32x32xf32>
    %c0_55 = arith.constant 0 : index
    %c0_56 = arith.constant 0 : index
    %c0_57 = arith.constant 0 : index
    %122 = vector.load %arg11[%c0_55, %c0_56, %c0_57] : memref<2x1x32xf32, #tpu.memory_space<vmem>>, vector<1x1x32xf32>
    %123 = vector.shape_cast %122 : vector<1x1x32xf32> to vector<1x32xf32>
    %124 = vector.broadcast %123 : vector<1x32xf32> to vector<32x32xf32>
    %125 = arith.addf %121, %124 : vector<32x32xf32>
    %126 = arith.addf %107, %125 : vector<32x32xf32>
    %c0_58 = arith.constant 0 : index
    %c0_59 = arith.constant 0 : index
    %c0_60 = arith.constant 0 : index
    %127 = vector.load %arg14[%c0_58, %c0_59, %c0_60] : memref<2x1x32xf32, #tpu.memory_space<vmem>>, vector<1x1x32xf32>
    %128 = vector.shape_cast %127 : vector<1x1x32xf32> to vector<1x32xf32>
    %c0_61 = arith.constant 0 : index
    %c0_62 = arith.constant 0 : index
    %c0_63 = arith.constant 0 : index
    %129 = vector.load %arg15[%c0_61, %c0_62, %c0_63] : memref<2x1x32xf32, #tpu.memory_space<vmem>>, vector<1x1x32xf32>
    %130 = vector.shape_cast %129 : vector<1x1x32xf32> to vector<1x32xf32>
    %cst_64 = arith.constant dense<0.000000e+00> : vector<32xf32>
    %131 = vector.multi_reduction <add>, %126, %cst_64 [1] : vector<32x32xf32> to vector<32xf32>
    %132 = vector.shape_cast %131 : vector<32xf32> to vector<32x1xf32>
    %cst_65 = arith.constant 3.200000e+01 : f32
    %133 = vector.broadcast %cst_65 : f32 to vector<32x1xf32>
    %134 = arith.divf %132, %133 : vector<32x1xf32>
    %135 = arith.mulf %126, %126 : vector<32x32xf32>
    %cst_66 = arith.constant dense<0.000000e+00> : vector<32xf32>
    %136 = vector.multi_reduction <add>, %135, %cst_66 [1] : vector<32x32xf32> to vector<32xf32>
    %137 = vector.shape_cast %136 : vector<32xf32> to vector<32x1xf32>
    %cst_67 = arith.constant 3.200000e+01 : f32
    %138 = vector.broadcast %cst_67 : f32 to vector<32x1xf32>
    %139 = arith.divf %137, %138 : vector<32x1xf32>
    %140 = arith.mulf %134, %134 : vector<32x1xf32>
    %141 = arith.subf %139, %140 : vector<32x1xf32>
    %142 = vector.broadcast %134 : vector<32x1xf32> to vector<32x32xf32>
    %143 = arith.subf %126, %142 : vector<32x32xf32>
    %cst_68 = arith.constant 9.99999974E-6 : f32
    %144 = vector.broadcast %cst_68 : f32 to vector<32x1xf32>
    %145 = arith.addf %141, %144 : vector<32x1xf32>
    %146 = math.rsqrt %145 : vector<32x1xf32>
    %147 = vector.broadcast %146 : vector<32x1xf32> to vector<32x32xf32>
    %148 = arith.mulf %143, %147 : vector<32x32xf32>
    %149 = vector.broadcast %128 : vector<1x32xf32> to vector<32x32xf32>
    %150 = arith.mulf %148, %149 : vector<32x32xf32>
    %151 = vector.broadcast %130 : vector<1x32xf32> to vector<32x32xf32>
    %152 = arith.addf %150, %151 : vector<32x32xf32>
    %c1 = arith.constant 1 : index
    %c0_69 = arith.constant 0 : index
    %c0_70 = arith.constant 0 : index
    %153 = vector.load %arg4[%c1, %c0_69, %c0_70] : memref<2x32x96xbf16, #tpu.memory_space<vmem>>, vector<1x32x96xbf16>
    %154 = vector.shape_cast %153 : vector<1x32x96xbf16> to vector<32x96xbf16>
    %155 = arith.truncf %152 : vector<32x32xf32> to vector<32x32xbf16>
    %cst_71 = arith.constant dense<0.000000e+00> : vector<32x96xf32>
    %156 = tpu.matmul %155, %154, %cst_71 {dimension_numbers = #tpu.dot_dimension_numbers<[1], [0], [0], [1], [0, 0, 1, 1], [], []>} : vector<32x32xbf16>, vector<32x96xbf16>, vector<32x96xf32> -> vector<32x96xf32>
    %c1_72 = arith.constant 1 : index
    %c0_73 = arith.constant 0 : index
    %c0_74 = arith.constant 0 : index
    %157 = vector.load %arg5[%c1_72, %c0_73, %c0_74] : memref<2x1x96xf32, #tpu.memory_space<vmem>>, vector<1x1x96xf32>
    %158 = vector.shape_cast %157 : vector<1x1x96xf32> to vector<1x96xf32>
    %159 = vector.broadcast %158 : vector<1x96xf32> to vector<32x96xf32>
    %160 = arith.addf %156, %159 : vector<32x96xf32>
    %161 = vector.extract_strided_slice %160 {offsets = [0, 0], sizes = [32, 32], strides = [1, 1]} : vector<32x96xf32> to vector<32x32xf32>
    %162 = vector.shape_cast %161 : vector<32x32xf32> to vector<4x8x32xf32>
    %163 = vector.extract_strided_slice %160 {offsets = [0, 32], sizes = [32, 32], strides = [1, 1]} : vector<32x96xf32> to vector<32x32xf32>
    %164 = vector.shape_cast %163 : vector<32x32xf32> to vector<4x8x32xf32>
    %165 = vector.extract_strided_slice %160 {offsets = [0, 64], sizes = [32, 32], strides = [1, 1]} : vector<32x96xf32> to vector<32x32xf32>
    %166 = vector.shape_cast %165 : vector<32x32xf32> to vector<4x8x32xf32>
    %c1_75 = arith.constant 1 : index
    %c0_76 = arith.constant 0 : index
    %c0_77 = arith.constant 0 : index
    %167 = vector.load %arg6[%c1_75, %c0_76, %c0_77] : memref<2x32x32xbf16, #tpu.memory_space<vmem>>, vector<1x32x32xbf16>
    %168 = vector.shape_cast %167 : vector<1x32x32xbf16> to vector<32x32xbf16>
    %169 = vector.extract_strided_slice %162 {offsets = [0, 0, 0], sizes = [4, 8, 16], strides = [1, 1, 1]} : vector<4x8x32xf32> to vector<4x8x16xf32>
    %170 = arith.truncf %169 : vector<4x8x16xf32> to vector<4x8x16xbf16>
    %171 = vector.extract_strided_slice %164 {offsets = [0, 0, 0], sizes = [4, 8, 16], strides = [1, 1, 1]} : vector<4x8x32xf32> to vector<4x8x16xf32>
    %172 = arith.truncf %171 : vector<4x8x16xf32> to vector<4x8x16xbf16>
    %173 = vector.extract_strided_slice %166 {offsets = [0, 0, 0], sizes = [4, 8, 16], strides = [1, 1, 1]} : vector<4x8x32xf32> to vector<4x8x16xf32>
    %174 = arith.truncf %173 : vector<4x8x16xf32> to vector<4x8x16xbf16>
    "tpu.trace_start"() <{level = 10 : i32, message = "bqd,bkd->bqk"}> : () -> ()
    %cst_78 = arith.constant dense<0.000000e+00> : vector<4x8x8xf32>
    %175 = tpu.matmul %170, %172, %cst_78 {dimension_numbers = #tpu.dot_dimension_numbers<[2], [2], [1], [1], [0, 0, 0, 1, 1, 1], [0], [0]>} : vector<4x8x16xbf16>, vector<4x8x16xbf16>, vector<4x8x8xf32> -> vector<4x8x8xf32>
    "tpu.trace_stop"() : () -> ()
    %cst_79 = arith.constant 2.500000e-01 : f32
    %176 = vector.broadcast %cst_79 : f32 to vector<4x8x8xf32>
    %177 = arith.mulf %175, %176 : vector<4x8x8xf32>
    %cst_80 = arith.constant dense<0xFF800000> : vector<4x8xf32>
    %178 = vector.multi_reduction <maximumf>, %177, %cst_80 [2] : vector<4x8x8xf32> to vector<4x8xf32>
    %179 = vector.shape_cast %178 : vector<4x8xf32> to vector<4x8x1xf32>
    %180 = vector.broadcast %179 : vector<4x8x1xf32> to vector<4x8x8xf32>
    %181 = arith.subf %177, %180 : vector<4x8x8xf32>
    %182 = math.exp %181 : vector<4x8x8xf32>
    %cst_81 = arith.constant dense<0.000000e+00> : vector<4x8xf32>
    %183 = vector.multi_reduction <add>, %182, %cst_81 [2] : vector<4x8x8xf32> to vector<4x8xf32>
    %184 = vector.shape_cast %183 : vector<4x8xf32> to vector<4x8x1xf32>
    %185 = tpu.reciprocal %184 {approx = true} : vector<4x8x1xf32> -> vector<4x8x1xf32>
    %186 = vector.broadcast %185 : vector<4x8x1xf32> to vector<4x8x8xf32>
    %187 = arith.mulf %182, %186 : vector<4x8x8xf32>
    %188 = arith.truncf %187 : vector<4x8x8xf32> to vector<4x8x8xbf16>
    "tpu.trace_start"() <{level = 10 : i32, message = "bqk,bkd->bqd"}> : () -> ()
    %cst_82 = arith.constant dense<0.000000e+00> : vector<4x8x16xf32>
    %189 = tpu.matmul %188, %174, %cst_82 {dimension_numbers = #tpu.dot_dimension_numbers<[2], [1], [1], [2], [0, 0, 0, 1, 1, 2], [0], [0]>} : vector<4x8x8xbf16>, vector<4x8x16xbf16>, vector<4x8x16xf32> -> vector<4x8x16xf32>
    "tpu.trace_stop"() : () -> ()
    %190 = vector.shape_cast %189 : vector<4x8x16xf32> to vector<32x16xf32>
    %191 = vector.extract_strided_slice %168 {offsets = [0, 0], sizes = [16, 32], strides = [1, 1]} : vector<32x32xbf16> to vector<16x32xbf16>
    %192 = arith.truncf %190 : vector<32x16xf32> to vector<32x16xbf16>
    %cst_83 = arith.constant dense<0.000000e+00> : vector<32x32xf32>
    %193 = tpu.matmul %192, %191, %cst_83 {dimension_numbers = #tpu.dot_dimension_numbers<[1], [0], [0], [1], [0, 0, 1, 1], [], []>} : vector<32x16xbf16>, vector<16x32xbf16>, vector<32x32xf32> -> vector<32x32xf32>
    %194 = vector.extract_strided_slice %162 {offsets = [0, 0, 16], sizes = [4, 8, 16], strides = [1, 1, 1]} : vector<4x8x32xf32> to vector<4x8x16xf32>
    %195 = arith.truncf %194 : vector<4x8x16xf32> to vector<4x8x16xbf16>
    %196 = vector.extract_strided_slice %164 {offsets = [0, 0, 16], sizes = [4, 8, 16], strides = [1, 1, 1]} : vector<4x8x32xf32> to vector<4x8x16xf32>
    %197 = arith.truncf %196 : vector<4x8x16xf32> to vector<4x8x16xbf16>
    %198 = vector.extract_strided_slice %166 {offsets = [0, 0, 16], sizes = [4, 8, 16], strides = [1, 1, 1]} : vector<4x8x32xf32> to vector<4x8x16xf32>
    %199 = arith.truncf %198 : vector<4x8x16xf32> to vector<4x8x16xbf16>
    "tpu.trace_start"() <{level = 10 : i32, message = "bqd,bkd->bqk"}> : () -> ()
    %cst_84 = arith.constant dense<0.000000e+00> : vector<4x8x8xf32>
    %200 = tpu.matmul %195, %197, %cst_84 {dimension_numbers = #tpu.dot_dimension_numbers<[2], [2], [1], [1], [0, 0, 0, 1, 1, 1], [0], [0]>} : vector<4x8x16xbf16>, vector<4x8x16xbf16>, vector<4x8x8xf32> -> vector<4x8x8xf32>
    "tpu.trace_stop"() : () -> ()
    %cst_85 = arith.constant 2.500000e-01 : f32
    %201 = vector.broadcast %cst_85 : f32 to vector<4x8x8xf32>
    %202 = arith.mulf %200, %201 : vector<4x8x8xf32>
    %cst_86 = arith.constant dense<0xFF800000> : vector<4x8xf32>
    %203 = vector.multi_reduction <maximumf>, %202, %cst_86 [2] : vector<4x8x8xf32> to vector<4x8xf32>
    %204 = vector.shape_cast %203 : vector<4x8xf32> to vector<4x8x1xf32>
    %205 = vector.broadcast %204 : vector<4x8x1xf32> to vector<4x8x8xf32>
    %206 = arith.subf %202, %205 : vector<4x8x8xf32>
    %207 = math.exp %206 : vector<4x8x8xf32>
    %cst_87 = arith.constant dense<0.000000e+00> : vector<4x8xf32>
    %208 = vector.multi_reduction <add>, %207, %cst_87 [2] : vector<4x8x8xf32> to vector<4x8xf32>
    %209 = vector.shape_cast %208 : vector<4x8xf32> to vector<4x8x1xf32>
    %210 = tpu.reciprocal %209 {approx = true} : vector<4x8x1xf32> -> vector<4x8x1xf32>
    %211 = vector.broadcast %210 : vector<4x8x1xf32> to vector<4x8x8xf32>
    %212 = arith.mulf %207, %211 : vector<4x8x8xf32>
    %213 = arith.truncf %212 : vector<4x8x8xf32> to vector<4x8x8xbf16>
    "tpu.trace_start"() <{level = 10 : i32, message = "bqk,bkd->bqd"}> : () -> ()
    %cst_88 = arith.constant dense<0.000000e+00> : vector<4x8x16xf32>
    %214 = tpu.matmul %213, %199, %cst_88 {dimension_numbers = #tpu.dot_dimension_numbers<[2], [1], [1], [2], [0, 0, 0, 1, 1, 2], [0], [0]>} : vector<4x8x8xbf16>, vector<4x8x16xbf16>, vector<4x8x16xf32> -> vector<4x8x16xf32>
    "tpu.trace_stop"() : () -> ()
    %215 = vector.shape_cast %214 : vector<4x8x16xf32> to vector<32x16xf32>
    %216 = vector.extract_strided_slice %168 {offsets = [16, 0], sizes = [16, 32], strides = [1, 1]} : vector<32x32xbf16> to vector<16x32xbf16>
    %217 = arith.truncf %215 : vector<32x16xf32> to vector<32x16xbf16>
    %cst_89 = arith.constant dense<0.000000e+00> : vector<32x32xf32>
    %218 = tpu.matmul %217, %216, %cst_89 {dimension_numbers = #tpu.dot_dimension_numbers<[1], [0], [0], [1], [0, 0, 1, 1], [], []>} : vector<32x16xbf16>, vector<16x32xbf16>, vector<32x32xf32> -> vector<32x32xf32>
    %cst_90 = arith.constant 0.000000e+00 : f32
    %219 = vector.broadcast %cst_90 : f32 to vector<32x32xf32>
    %220 = arith.addf %219, %193 : vector<32x32xf32>
    %221 = arith.addf %220, %218 : vector<32x32xf32>
    %c1_91 = arith.constant 1 : index
    %c0_92 = arith.constant 0 : index
    %c0_93 = arith.constant 0 : index
    %222 = vector.load %arg7[%c1_91, %c0_92, %c0_93] : memref<2x1x32xf32, #tpu.memory_space<vmem>>, vector<1x1x32xf32>
    %223 = vector.shape_cast %222 : vector<1x1x32xf32> to vector<1x32xf32>
    %224 = vector.broadcast %223 : vector<1x32xf32> to vector<32x32xf32>
    %225 = arith.addf %221, %224 : vector<32x32xf32>
    %226 = arith.addf %152, %225 : vector<32x32xf32>
    %c1_94 = arith.constant 1 : index
    %c0_95 = arith.constant 0 : index
    %c0_96 = arith.constant 0 : index
    %227 = vector.load %arg12[%c1_94, %c0_95, %c0_96] : memref<2x1x32xf32, #tpu.memory_space<vmem>>, vector<1x1x32xf32>
    %228 = vector.shape_cast %227 : vector<1x1x32xf32> to vector<1x32xf32>
    %c1_97 = arith.constant 1 : index
    %c0_98 = arith.constant 0 : index
    %c0_99 = arith.constant 0 : index
    %229 = vector.load %arg13[%c1_97, %c0_98, %c0_99] : memref<2x1x32xf32, #tpu.memory_space<vmem>>, vector<1x1x32xf32>
    %230 = vector.shape_cast %229 : vector<1x1x32xf32> to vector<1x32xf32>
    %cst_100 = arith.constant dense<0.000000e+00> : vector<32xf32>
    %231 = vector.multi_reduction <add>, %226, %cst_100 [1] : vector<32x32xf32> to vector<32xf32>
    %232 = vector.shape_cast %231 : vector<32xf32> to vector<32x1xf32>
    %cst_101 = arith.constant 3.200000e+01 : f32
    %233 = vector.broadcast %cst_101 : f32 to vector<32x1xf32>
    %234 = arith.divf %232, %233 : vector<32x1xf32>
    %235 = arith.mulf %226, %226 : vector<32x32xf32>
    %cst_102 = arith.constant dense<0.000000e+00> : vector<32xf32>
    %236 = vector.multi_reduction <add>, %235, %cst_102 [1] : vector<32x32xf32> to vector<32xf32>
    %237 = vector.shape_cast %236 : vector<32xf32> to vector<32x1xf32>
    %cst_103 = arith.constant 3.200000e+01 : f32
    %238 = vector.broadcast %cst_103 : f32 to vector<32x1xf32>
    %239 = arith.divf %237, %238 : vector<32x1xf32>
    %240 = arith.mulf %234, %234 : vector<32x1xf32>
    %241 = arith.subf %239, %240 : vector<32x1xf32>
    %242 = vector.broadcast %234 : vector<32x1xf32> to vector<32x32xf32>
    %243 = arith.subf %226, %242 : vector<32x32xf32>
    %cst_104 = arith.constant 9.99999974E-6 : f32
    %244 = vector.broadcast %cst_104 : f32 to vector<32x1xf32>
    %245 = arith.addf %241, %244 : vector<32x1xf32>
    %246 = math.rsqrt %245 : vector<32x1xf32>
    %247 = vector.broadcast %246 : vector<32x1xf32> to vector<32x32xf32>
    %248 = arith.mulf %243, %247 : vector<32x32xf32>
    %249 = vector.broadcast %228 : vector<1x32xf32> to vector<32x32xf32>
    %250 = arith.mulf %248, %249 : vector<32x32xf32>
    %251 = vector.broadcast %230 : vector<1x32xf32> to vector<32x32xf32>
    %252 = arith.addf %250, %251 : vector<32x32xf32>
    %c1_105 = arith.constant 1 : index
    %c0_106 = arith.constant 0 : index
    %c0_107 = arith.constant 0 : index
    %253 = vector.load %arg8[%c1_105, %c0_106, %c0_107] : memref<2x32x128xbf16, #tpu.memory_space<vmem>>, vector<1x32x128xbf16>
    %254 = vector.shape_cast %253 : vector<1x32x128xbf16> to vector<32x128xbf16>
    %255 = arith.truncf %252 : vector<32x32xf32> to vector<32x32xbf16>
    %cst_108 = arith.constant dense<0.000000e+00> : vector<32x128xf32>
    %256 = tpu.matmul %255, %254, %cst_108 {dimension_numbers = #tpu.dot_dimension_numbers<[1], [0], [0], [1], [0, 0, 1, 1], [], []>} : vector<32x32xbf16>, vector<32x128xbf16>, vector<32x128xf32> -> vector<32x128xf32>
    %c1_109 = arith.constant 1 : index
    %c0_110 = arith.constant 0 : index
    %c0_111 = arith.constant 0 : index
    %257 = vector.load %arg9[%c1_109, %c0_110, %c0_111] : memref<2x1x128xf32, #tpu.memory_space<vmem>>, vector<1x1x128xf32>
    %258 = vector.shape_cast %257 : vector<1x1x128xf32> to vector<1x128xf32>
    %259 = vector.broadcast %258 : vector<1x128xf32> to vector<32x128xf32>
    %260 = arith.addf %256, %259 : vector<32x128xf32>
    %cst_112 = arith.constant 0.000000e+00 : f32
    %261 = vector.broadcast %cst_112 : f32 to vector<32x128xf32>
    %262 = arith.maximumf %260, %261 : vector<32x128xf32>
    %c1_113 = arith.constant 1 : index
    %c0_114 = arith.constant 0 : index
    %c0_115 = arith.constant 0 : index
    %263 = vector.load %arg10[%c1_113, %c0_114, %c0_115] : memref<2x128x32xbf16, #tpu.memory_space<vmem>>, vector<1x128x32xbf16>
    %264 = vector.shape_cast %263 : vector<1x128x32xbf16> to vector<128x32xbf16>
    %265 = arith.truncf %262 : vector<32x128xf32> to vector<32x128xbf16>
    %cst_116 = arith.constant dense<0.000000e+00> : vector<32x32xf32>
    %266 = tpu.matmul %265, %264, %cst_116 {dimension_numbers = #tpu.dot_dimension_numbers<[1], [0], [0], [1], [0, 0, 1, 1], [], []>} : vector<32x128xbf16>, vector<128x32xbf16>, vector<32x32xf32> -> vector<32x32xf32>
    %c1_117 = arith.constant 1 : index
    %c0_118 = arith.constant 0 : index
    %c0_119 = arith.constant 0 : index
    %267 = vector.load %arg11[%c1_117, %c0_118, %c0_119] : memref<2x1x32xf32, #tpu.memory_space<vmem>>, vector<1x1x32xf32>
    %268 = vector.shape_cast %267 : vector<1x1x32xf32> to vector<1x32xf32>
    %269 = vector.broadcast %268 : vector<1x32xf32> to vector<32x32xf32>
    %270 = arith.addf %266, %269 : vector<32x32xf32>
    %271 = arith.addf %252, %270 : vector<32x32xf32>
    %c1_120 = arith.constant 1 : index
    %c0_121 = arith.constant 0 : index
    %c0_122 = arith.constant 0 : index
    %272 = vector.load %arg14[%c1_120, %c0_121, %c0_122] : memref<2x1x32xf32, #tpu.memory_space<vmem>>, vector<1x1x32xf32>
    %273 = vector.shape_cast %272 : vector<1x1x32xf32> to vector<1x32xf32>
    %c1_123 = arith.constant 1 : index
    %c0_124 = arith.constant 0 : index
    %c0_125 = arith.constant 0 : index
    %274 = vector.load %arg15[%c1_123, %c0_124, %c0_125] : memref<2x1x32xf32, #tpu.memory_space<vmem>>, vector<1x1x32xf32>
    %275 = vector.shape_cast %274 : vector<1x1x32xf32> to vector<1x32xf32>
    %cst_126 = arith.constant dense<0.000000e+00> : vector<32xf32>
    %276 = vector.multi_reduction <add>, %271, %cst_126 [1] : vector<32x32xf32> to vector<32xf32>
    %277 = vector.shape_cast %276 : vector<32xf32> to vector<32x1xf32>
    %cst_127 = arith.constant 3.200000e+01 : f32
    %278 = vector.broadcast %cst_127 : f32 to vector<32x1xf32>
    %279 = arith.divf %277, %278 : vector<32x1xf32>
    %280 = arith.mulf %271, %271 : vector<32x32xf32>
    %cst_128 = arith.constant dense<0.000000e+00> : vector<32xf32>
    %281 = vector.multi_reduction <add>, %280, %cst_128 [1] : vector<32x32xf32> to vector<32xf32>
    %282 = vector.shape_cast %281 : vector<32xf32> to vector<32x1xf32>
    %cst_129 = arith.constant 3.200000e+01 : f32
    %283 = vector.broadcast %cst_129 : f32 to vector<32x1xf32>
    %284 = arith.divf %282, %283 : vector<32x1xf32>
    %285 = arith.mulf %279, %279 : vector<32x1xf32>
    %286 = arith.subf %284, %285 : vector<32x1xf32>
    %287 = vector.broadcast %279 : vector<32x1xf32> to vector<32x32xf32>
    %288 = arith.subf %271, %287 : vector<32x32xf32>
    %cst_130 = arith.constant 9.99999974E-6 : f32
    %289 = vector.broadcast %cst_130 : f32 to vector<32x1xf32>
    %290 = arith.addf %286, %289 : vector<32x1xf32>
    %291 = math.rsqrt %290 : vector<32x1xf32>
    %292 = vector.broadcast %291 : vector<32x1xf32> to vector<32x32xf32>
    %293 = arith.mulf %288, %292 : vector<32x32xf32>
    %294 = vector.broadcast %273 : vector<1x32xf32> to vector<32x32xf32>
    %295 = arith.mulf %293, %294 : vector<32x32xf32>
    %296 = vector.broadcast %275 : vector<1x32xf32> to vector<32x32xf32>
    %297 = arith.addf %295, %296 : vector<32x32xf32>
    %298 = vector.shape_cast %297 : vector<32x32xf32> to vector<4x8x32xf32>
    %cst_131 = arith.constant dense<0.000000e+00> : vector<4x32xf32>
    %299 = vector.multi_reduction <add>, %298, %cst_131 [1] : vector<4x8x32xf32> to vector<4x32xf32>
    %cst_132 = arith.constant 8.000000e+00 : f32
    %300 = vector.broadcast %cst_132 : f32 to vector<4x32xf32>
    %301 = arith.divf %299, %300 : vector<4x32xf32>
    %c0_133 = arith.constant 0 : index
    %c0_134 = arith.constant 0 : index
    %302 = vector.load %arg16[%c0_133, %c0_134] : memref<32x32xbf16, #tpu.memory_space<vmem>>, vector<32x32xbf16>
    %303 = arith.truncf %301 : vector<4x32xf32> to vector<4x32xbf16>
    %cst_135 = arith.constant dense<0.000000e+00> : vector<4x32xf32>
    %304 = tpu.matmul %303, %302, %cst_135 {dimension_numbers = #tpu.dot_dimension_numbers<[1], [0], [0], [1], [0, 0, 1, 1], [], []>} : vector<4x32xbf16>, vector<32x32xbf16>, vector<4x32xf32> -> vector<4x32xf32>
    %c0_136 = arith.constant 0 : index
    %c0_137 = arith.constant 0 : index
    %305 = vector.load %arg17[%c0_136, %c0_137] : memref<1x32xf32, #tpu.memory_space<vmem>>, vector<1x32xf32>
    %306 = vector.broadcast %305 : vector<1x32xf32> to vector<4x32xf32>
    %307 = arith.addf %304, %306 : vector<4x32xf32>
    %c0_138 = arith.constant 0 : index
    %c0_139 = arith.constant 0 : index
    %308 = vector.load %arg18[%c0_138, %c0_139] : memref<1x32xf32, #tpu.memory_space<vmem>>, vector<1x32xf32>
    %c0_140 = arith.constant 0 : index
    %c0_141 = arith.constant 0 : index
    %309 = vector.load %arg19[%c0_140, %c0_141] : memref<1x32xf32, #tpu.memory_space<vmem>>, vector<1x32xf32>
    %cst_142 = arith.constant dense<0.000000e+00> : vector<4xf32>
    %310 = vector.multi_reduction <add>, %307, %cst_142 [1] : vector<4x32xf32> to vector<4xf32>
    %311 = vector.shape_cast %310 : vector<4xf32> to vector<4x1xf32>
    %cst_143 = arith.constant 3.200000e+01 : f32
    %312 = vector.broadcast %cst_143 : f32 to vector<4x1xf32>
    %313 = arith.divf %311, %312 : vector<4x1xf32>
    %314 = arith.mulf %307, %307 : vector<4x32xf32>
    %cst_144 = arith.constant dense<0.000000e+00> : vector<4xf32>
    %315 = vector.multi_reduction <add>, %314, %cst_144 [1] : vector<4x32xf32> to vector<4xf32>
    %316 = vector.shape_cast %315 : vector<4xf32> to vector<4x1xf32>
    %cst_145 = arith.constant 3.200000e+01 : f32
    %317 = vector.broadcast %cst_145 : f32 to vector<4x1xf32>
    %318 = arith.divf %316, %317 : vector<4x1xf32>
    %319 = arith.mulf %313, %313 : vector<4x1xf32>
    %320 = arith.subf %318, %319 : vector<4x1xf32>
    %321 = vector.broadcast %313 : vector<4x1xf32> to vector<4x32xf32>
    %322 = arith.subf %307, %321 : vector<4x32xf32>
    %cst_146 = arith.constant 9.99999974E-6 : f32
    %323 = vector.broadcast %cst_146 : f32 to vector<4x1xf32>
    %324 = arith.addf %320, %323 : vector<4x1xf32>
    %325 = math.rsqrt %324 : vector<4x1xf32>
    %326 = vector.broadcast %325 : vector<4x1xf32> to vector<4x32xf32>
    %327 = arith.mulf %322, %326 : vector<4x32xf32>
    %328 = vector.broadcast %308 : vector<1x32xf32> to vector<4x32xf32>
    %329 = arith.mulf %327, %328 : vector<4x32xf32>
    %330 = vector.broadcast %309 : vector<1x32xf32> to vector<4x32xf32>
    %331 = arith.addf %329, %330 : vector<4x32xf32>
    %c0_147 = arith.constant 0 : index
    %c0_148 = arith.constant 0 : index
    %332 = vector.load %arg20[%c0_147, %c0_148] : memref<1x32xf32, #tpu.memory_space<vmem>>, vector<1x32xf32>
    %333 = vector.broadcast %332 : vector<1x32xf32> to vector<4x32xf32>
    %334 = arith.mulf %331, %333 : vector<4x32xf32>
    %cst_149 = arith.constant dense<0.000000e+00> : vector<4xf32>
    %335 = vector.multi_reduction <add>, %334, %cst_149 [1] : vector<4x32xf32> to vector<4xf32>
    %336 = vector.shape_cast %335 : vector<4xf32> to vector<1x4xf32>
    %c0_150 = arith.constant 0 : index
    %c0_151 = arith.constant 0 : index
    %337 = vector.load %arg21[%c0_150, %c0_151] : memref<1x1xf32, #tpu.memory_space<vmem>>, vector<1x1xf32>
    %338 = vector.broadcast %337 : vector<1x1xf32> to vector<1x4xf32>
    %339 = arith.addf %336, %338 : vector<1x4xf32>
    %c0_152 = arith.constant 0 : index
    %c0_153 = arith.constant 0 : index
    %340 = vector.load %arg22[%c0_152, %c0_153] : memref<1x4xf32, #tpu.memory_space<vmem>>, vector<1x4xf32>
    tpu.vector_store %arg22[%c0_152, %c0_153], %339 {strides = array<i32>} : memref<1x4xf32, #tpu.memory_space<vmem>>, vector<1x4xf32>,
    return
  }
  func.func @transform_0(%arg0: i32) -> (i32, i32, i32) {
    %c0_i32 = arith.constant 0 : i32
    %c0_i32_0 = arith.constant 0 : i32
    %c0_i32_1 = arith.constant 0 : i32
    return %arg0, %c0_i32, %c0_i32_0 : i32, i32, i32
  }
  func.func @transform_1(%arg0: i32) -> (i32, i32) {
    %c0_i32 = arith.constant 0 : i32
    %c0_i32_0 = arith.constant 0 : i32
    %c0_i32_1 = arith.constant 0 : i32
    return %c0_i32, %c0_i32_0 : i32, i32
  }
  func.func @transform_2(%arg0: i32) -> (i32, i32) {
    %c0_i32 = arith.constant 0 : i32
    %c0_i32_0 = arith.constant 0 : i32
    %c0_i32_1 = arith.constant 0 : i32
    return %c0_i32, %c0_i32_0 : i32, i32
  }
  func.func @transform_3(%arg0: i32) -> (i32, i32, i32) {
    %c0_i32 = arith.constant 0 : i32
    %c0_i32_0 = arith.constant 0 : i32
    %c0_i32_1 = arith.constant 0 : i32
    %c0_i32_2 = arith.constant 0 : i32
    return %c0_i32, %c0_i32_0, %c0_i32_1 : i32, i32, i32
  }
  func.func @transform_4(%arg0: i32) -> (i32, i32, i32) {
    %c0_i32 = arith.constant 0 : i32
    %c0_i32_0 = arith.constant 0 : i32
    %c0_i32_1 = arith.constant 0 : i32
    %c0_i32_2 = arith.constant 0 : i32
    return %c0_i32, %c0_i32_0, %c0_i32_1 : i32, i32, i32
  }
  func.func @transform_5(%arg0: i32) -> (i32, i32, i32) {
    %c0_i32 = arith.constant 0 : i32
    %c0_i32_0 = arith.constant 0 : i32
    %c0_i32_1 = arith.constant 0 : i32
    %c0_i32_2 = arith.constant 0 : i32
    return %c0_i32, %c0_i32_0, %c0_i32_1 : i32, i32, i32
  }
  func.func @transform_6(%arg0: i32) -> (i32, i32, i32) {
    %c0_i32 = arith.constant 0 : i32
    %c0_i32_0 = arith.constant 0 : i32
    %c0_i32_1 = arith.constant 0 : i32
    %c0_i32_2 = arith.constant 0 : i32
    return %c0_i32, %c0_i32_0, %c0_i32_1 : i32, i32, i32
  }
  func.func @transform_7(%arg0: i32) -> (i32, i32, i32) {
    %c0_i32 = arith.constant 0 : i32
    %c0_i32_0 = arith.constant 0 : i32
    %c0_i32_1 = arith.constant 0 : i32
    %c0_i32_2 = arith.constant 0 : i32
    return %c0_i32, %c0_i32_0, %c0_i32_1 : i32, i32, i32
  }
  func.func @transform_8(%arg0: i32) -> (i32, i32, i32) {
    %c0_i32 = arith.constant 0 : i32
    %c0_i32_0 = arith.constant 0 : i32
    %c0_i32_1 = arith.constant 0 : i32
    %c0_i32_2 = arith.constant 0 : i32
    return %c0_i32, %c0_i32_0, %c0_i32_1 : i32, i32, i32
  }
  func.func @transform_9(%arg0: i32) -> (i32, i32, i32) {
    %c0_i32 = arith.constant 0 : i32
    %c0_i32_0 = arith.constant 0 : i32
    %c0_i32_1 = arith.constant 0 : i32
    %c0_i32_2 = arith.constant 0 : i32
    return %c0_i32, %c0_i32_0, %c0_i32_1 : i32, i32, i32
  }
  func.func @transform_10(%arg0: i32) -> (i32, i32, i32) {
    %c0_i32 = arith.constant 0 : i32
    %c0_i32_0 = arith.constant 0 : i32
    %c0_i32_1 = arith.constant 0 : i32
    %c0_i32_2 = arith.constant 0 : i32
    return %c0_i32, %c0_i32_0, %c0_i32_1 : i32, i32, i32
  }
  func.func @transform_11(%arg0: i32) -> (i32, i32, i32) {
    %c0_i32 = arith.constant 0 : i32
    %c0_i32_0 = arith.constant 0 : i32
    %c0_i32_1 = arith.constant 0 : i32
    %c0_i32_2 = arith.constant 0 : i32
    return %c0_i32, %c0_i32_0, %c0_i32_1 : i32, i32, i32
  }
  func.func @transform_12(%arg0: i32) -> (i32, i32, i32) {
    %c0_i32 = arith.constant 0 : i32
    %c0_i32_0 = arith.constant 0 : i32
    %c0_i32_1 = arith.constant 0 : i32
    %c0_i32_2 = arith.constant 0 : i32
    return %c0_i32, %c0_i32_0, %c0_i32_1 : i32, i32, i32
  }
  func.func @transform_13(%arg0: i32) -> (i32, i32, i32) {
    %c0_i32 = arith.constant 0 : i32
    %c0_i32_0 = arith.constant 0 : i32
    %c0_i32_1 = arith.constant 0 : i32
    %c0_i32_2 = arith.constant 0 : i32
    return %c0_i32, %c0_i32_0, %c0_i32_1 : i32, i32, i32
  }
  func.func @transform_14(%arg0: i32) -> (i32, i32, i32) {
    %c0_i32 = arith.constant 0 : i32
    %c0_i32_0 = arith.constant 0 : i32
    %c0_i32_1 = arith.constant 0 : i32
    %c0_i32_2 = arith.constant 0 : i32
    return %c0_i32, %c0_i32_0, %c0_i32_1 : i32, i32, i32
  }
  func.func @transform_15(%arg0: i32) -> (i32, i32) {
    %c0_i32 = arith.constant 0 : i32
    %c0_i32_0 = arith.constant 0 : i32
    %c0_i32_1 = arith.constant 0 : i32
    return %c0_i32, %c0_i32_0 : i32, i32
  }
  func.func @transform_16(%arg0: i32) -> (i32, i32) {
    %c0_i32 = arith.constant 0 : i32
    %c0_i32_0 = arith.constant 0 : i32
    %c0_i32_1 = arith.constant 0 : i32
    return %c0_i32, %c0_i32_0 : i32, i32
  }
  func.func @transform_17(%arg0: i32) -> (i32, i32) {
    %c0_i32 = arith.constant 0 : i32
    %c0_i32_0 = arith.constant 0 : i32
    %c0_i32_1 = arith.constant 0 : i32
    return %c0_i32, %c0_i32_0 : i32, i32
  }
  func.func @transform_18(%arg0: i32) -> (i32, i32) {
    %c0_i32 = arith.constant 0 : i32
    %c0_i32_0 = arith.constant 0 : i32
    %c0_i32_1 = arith.constant 0 : i32
    return %c0_i32, %c0_i32_0 : i32, i32
  }
  func.func @transform_19(%arg0: i32) -> (i32, i32) {
    %c0_i32 = arith.constant 0 : i32
    %c0_i32_0 = arith.constant 0 : i32
    %c0_i32_1 = arith.constant 0 : i32
    return %c0_i32, %c0_i32_0 : i32, i32
  }
  func.func @transform_20(%arg0: i32) -> (i32, i32) {
    %c0_i32 = arith.constant 0 : i32
    %c0_i32_0 = arith.constant 0 : i32
    %c0_i32_1 = arith.constant 0 : i32
    return %c0_i32, %c0_i32_0 : i32, i32
  }
  func.func @transform_21(%arg0: i32) -> (i32, i32) {
    %c0_i32 = arith.constant 0 : i32
    %c0_i32_0 = arith.constant 0 : i32
    return %c0_i32, %arg0 : i32, i32
  }
}

</mosaic_0001>

<llo_original>
// kernel: residual_model_linear.1
$region0: #{residual_model_linear.1}
  #allocation0 [shape = 'u32[]', space=smem, size = 0x4, offset = 0x4, fixed_abs, tag = 'smem constant byte address 0x4 - core index']
  #allocation1 [shape = 'u32[144,128]{1,0:T(1,128)}', space=vmem, size = 0x12000, scoped, tag = 'internal scratch']
  #allocation2 [shape = 'f32[1,1]{1,0:T(1,128)S(1)}', space=vmem, size = 0x200, scoped, tag = 'scoped memory for residual_model_linear.1']
  %s0 = inlined_call_operand.vmem [shape: f32[4,8,8], index: 0, kind: input, shape index: {}]
  %s1 = inlined_call_operand.vmem [shape: bf16[8,32], index: 1, kind: input, shape index: {}]
  %s2 = inlined_call_operand.vmem [shape: f32[1,32], index: 2, kind: input, shape index: {}]
  %s3 = inlined_call_operand.vmem [shape: bf16[2,32,96], index: 3, kind: input, shape index: {}]
  %s4 = inlined_call_operand.vmem [shape: f32[2,1,96], index: 4, kind: input, shape index: {}]
  %s5 = inlined_call_operand.vmem [shape: bf16[2,32,32], index: 5, kind: input, shape index: {}]
  %s6 = inlined_call_operand.vmem [shape: f32[2,1,32], index: 6, kind: input, shape index: {}]
  %s7 = inlined_call_operand.vmem [shape: bf16[2,32,128], index: 7, kind: input, shape index: {}]
  %s8 = inlined_call_operand.vmem [shape: f32[2,1,128], index: 8, kind: input, shape index: {}]
  %s9 = inlined_call_operand.vmem [shape: bf16[2,128,32], index: 9, kind: input, shape index: {}]
  %s10 = inlined_call_operand.vmem [shape: f32[2,1,32], index: 10, kind: input, shape index: {}]
  %s11 = inlined_call_operand.vmem [shape: f32[2,1,32], index: 11, kind: input, shape index: {}]
  %s12 = inlined_call_operand.vmem [shape: f32[2,1,32], index: 12, kind: input, shape index: {}]
  %s13 = inlined_call_operand.vmem [shape: f32[2,1,32], index: 13, kind: input, shape index: {}]
  %s14 = inlined_call_operand.vmem [shape: f32[2,1,32], index: 14, kind: input, shape index: {}]
  %s15 = inlined_call_operand.vmem [shape: bf16[32,32], index: 15, kind: input, shape index: {}]
  %s16 = inlined_call_operand.vmem [shape: f32[1,32], index: 16, kind: input, shape index: {}]
  %s17 = inlined_call_operand.vmem [shape: f32[1,32], index: 17, kind: input, shape index: {}]
  %s18 = inlined_call_operand.vmem [shape: f32[1,32], index: 18, kind: input, shape index: {}]
  %s19 = inlined_call_operand.vmem [shape: f32[1,32], index: 19, kind: input, shape index: {}]
  %s20 = inlined_call_operand.<no memory space> [shape: f32[1,1], index: 20, kind: input, shape index: {}]
  %s21 = inlined_call_operand.hbm [shape: f32[1,4], index: 21, kind: output, shape index: {}]
  %s22 = sld [smem:[#allocation0]]
  $region94: #{residual_model_linear.1} parent=0
    _
  %s24 = ssub.s32 1, %s22
  %s25 = scalar_select 0, %s24, %s22
  %v26 = vstv %s20
  %27 = vst [vmem:[#allocation2] sm:$0x1] %v26
  $region1: #{residual_model_linear.1} parent=0
    #allocation3 [shape = 'u8[512]{0}', space=vmem, size = 0x400, scoped, tag = 'output window, operand 0, single buffered']
    #allocation4 [shape = 's32[1]{0}', space=sflag, size = 0x4, scoped, tag = 'scoped memory for residual_model_linear.1']
    %28 = vsyncpa [#allocation4], 0
    // Predicated region
    $region2: #{residual_model_linear.1} parent=1 // pred_check
      _
    $region3: #{residual_model_linear.1} parent=1 // pred_check_branch
      %30 = sbr.rel (0) target = $region5
    $region4: #{residual_model_linear.1} parent=1 // pred_region
      _
    $region5: #{residual_model_linear.1} parent=1 // pred_fallthru
      _
    // Predicated region
    $region6: #{residual_model_linear.1} parent=1 // pred_check
      _
    $region7: #{residual_model_linear.1} parent=1 // pred_check_branch
      %32 = sbr.rel (0) target = $region9
    $region8: #{residual_model_linear.1} parent=1 // pred_region
      _
    $region9: #{residual_model_linear.1} parent=1 // pred_fallthru
      _
    // Predicated region
    $region10: #{residual_model_linear.1} parent=1 // pred_check
      _
    $region11: #{residual_model_linear.1} parent=1 // pred_check_branch
      %34 = sbr.rel (0) target = $region13
    $region12: #{residual_model_linear.1} parent=1 // pred_region
      _
    $region13: #{residual_model_linear.1} parent=1 // pred_fallthru
      _
    // Predicated region
    $region14: #{residual_model_linear.1} parent=1 // pred_check
      _
    $region15: #{residual_model_linear.1} parent=1 // pred_check_branch
      %36 = sbr.rel (0) target = $region17
    $region16: #{residual_model_linear.1} parent=1 // pred_region
      _
    $region17: #{residual_model_linear.1} parent=1 // pred_fallthru
      _
    // Predicated region
    $region18: #{residual_model_linear.1} parent=1 // pred_check
      _
    $region19: #{residual_model_linear.1} parent=1 // pred_check_branch
      %38 = sbr.rel (0) target = $region21
    $region20: #{residual_model_linear.1} parent=1 // pred_region
      _
    $region21: #{residual_model_linear.1} parent=1 // pred_fallthru
      _
    // Predicated region
    $region22: #{residual_model_linear.1} parent=1 // pred_check
      _
    $region23: #{residual_model_linear.1} parent=1 // pred_check_branch
      %40 = sbr.rel (0) target = $region25
    $region24: #{residual_model_linear.1} parent=1 // pred_region
      _
    $region25: #{residual_model_linear.1} parent=1 // pred_fallthru
      _
    // Predicated region
    $region26: #{residual_model_linear.1} parent=1 // pred_check
      _
    $region27: #{residual_model_linear.1} parent=1 // pred_check_branch
      %42 = sbr.rel (0) target = $region29
    $region28: #{residual_model_linear.1} parent=1 // pred_region
      _
    $region29: #{residual_model_linear.1} parent=1 // pred_fallthru
      _
    // Predicated region
    $region30: #{residual_model_linear.1} parent=1 // pred_check
      _
    $region31: #{residual_model_linear.1} parent=1 // pred_check_branch
      %44 = sbr.rel (0) target = $region33
    $region32: #{residual_model_linear.1} parent=1 // pred_region
      _
    $region33: #{residual_model_linear.1} parent=1 // pred_fallthru
      _
    // Predicated region
    $region34: #{residual_model_linear.1} parent=1 // pred_check
      _
    $region35: #{residual_model_linear.1} parent=1 // pred_check_branch
      %46 = sbr.rel (0) target = $region37
    $region36: #{residual_model_linear.1} parent=1 // pred_region
      _
    $region37: #{residual_model_linear.1} parent=1 // pred_fallthru
      _
    // Predicated region
    $region38: #{residual_model_linear.1} parent=1 // pred_check
      _
    $region39: #{residual_model_linear.1} parent=1 // pred_check_branch
      %48 = sbr.rel (0) target = $region41
    $region40: #{residual_model_linear.1} parent=1 // pred_region
      _
    $region41: #{residual_model_linear.1} parent=1 // pred_fallthru
      _
    // Predicated region
    $region42: #{residual_model_linear.1} parent=1 // pred_check
      _
    $region43: #{residual_model_linear.1} parent=1 // pred_check_branch
      %50 = sbr.rel (0) target = $region45
    $region44: #{residual_model_linear.1} parent=1 // pred_region
      _
    $region45: #{residual_model_linear.1} parent=1 // pred_fallthru
      _
    // Predicated region
    $region46: #{residual_model_linear.1} parent=1 // pred_check
      _
    $region47: #{residual_model_linear.1} parent=1 // pred_check_branch
      %52 = sbr.rel (0) target = $region49
    $region48: #{residual_model_linear.1} parent=1 // pred_region
      _
    $region49: #{residual_model_linear.1} parent=1 // pred_fallthru
      _
    // Predicated region
    $region50: #{residual_model_linear.1} parent=1 // pred_check
      _
    $region51: #{residual_model_linear.1} parent=1 // pred_check_branch
      %54 = sbr.rel (0) target = $region53
    $region52: #{residual_model_linear.1} parent=1 // pred_region
      _
    $region53: #{residual_model_linear.1} parent=1 // pred_fallthru
      _
    // Predicated region
    $region54: #{residual_model_linear.1} parent=1 // pred_check
      _
    $region55: #{residual_model_linear.1} parent=1 // pred_check_branch
      %56 = sbr.rel (0) target = $region57
    $region56: #{residual_model_linear.1} parent=1 // pred_region
      _
    $region57: #{residual_model_linear.1} parent=1 // pred_fallthru
      _
    // Predicated region
    $region58: #{residual_model_linear.1} parent=1 // pred_check
      _
    $region59: #{residual_model_linear.1} parent=1 // pred_check_branch
      %58 = sbr.rel (0) target = $region61
    $region60: #{residual_model_linear.1} parent=1 // pred_region
      _
    $region61: #{residual_model_linear.1} parent=1 // pred_fallthru
      _
    // Predicated region
    $region62: #{residual_model_linear.1} parent=1 // pred_check
      _
    $region63: #{residual_model_linear.1} parent=1 // pred_check_branch
      %60 = sbr.rel (0) target = $region65
    $region64: #{residual_model_linear.1} parent=1 // pred_region
      _
    $region65: #{residual_model_linear.1} parent=1 // pred_fallthru
      _
    // Predicated region
    $region66: #{residual_model_linear.1} parent=1 // pred_check
      _
    $region67: #{residual_model_linear.1} parent=1 // pred_check_branch
      %62 = sbr.rel (0) target = $region69
    $region68: #{residual_model_linear.1} parent=1 // pred_region
      _
    $region69: #{residual_model_linear.1} parent=1 // pred_fallthru
      _
    // Predicated region
    $region70: #{residual_model_linear.1} parent=1 // pred_check
      _
    $region71: #{residual_model_linear.1} parent=1 // pred_check_branch
      %64 = sbr.rel (0) target = $region73
    $region72: #{residual_model_linear.1} parent=1 // pred_region
      _
    $region73: #{residual_model_linear.1} parent=1 // pred_fallthru
      _
    // Predicated region
    $region74: #{residual_model_linear.1} parent=1 // pred_check
      _
    $region75: #{residual_model_linear.1} parent=1 // pred_check_branch
      %66 = sbr.rel (0) target = $region77
    $region76: #{residual_model_linear.1} parent=1 // pred_region
      _
    $region77: #{residual_model_linear.1} parent=1 // pred_fallthru
      _
    // Predicated region
    $region78: #{residual_model_linear.1} parent=1 // pred_check
      _
    $region79: #{residual_model_linear.1} parent=1 // pred_check_branch
      %68 = sbr.rel (0) target = $region81
    $region80: #{residual_model_linear.1} parent=1 // pred_region
      _
    $region81: #{residual_model_linear.1} parent=1 // pred_fallthru
      _
    // Predicated region
    $region82: #{residual_model_linear.1} parent=1 // pred_check
      _
    $region83: #{residual_model_linear.1} parent=1 // pred_check_branch
      %70 = sbr.rel (0) target = $region85
    $region84: #{residual_model_linear.1} parent=1 // pred_region
      _
    $region85: #{residual_model_linear.1} parent=1 // pred_fallthru
      _
    %v72 = vld [vmem:[%s0] sm:$0xff]
    %v73 = vld [vmem:[%s0 + $0x8] sm:$0xff]
    %v74 = vld [vmem:[%s0 + $0x10] sm:$0xff]
    %v75 = vld [vmem:[%s0 + $0x18] sm:$0xff]
    %v76 = vld [vmem:[%s1] sm:$0xf]
    %v77 = vpack.c.bf16 %v73, %v72
    %v78 = vpack.c.bf16 %v75, %v74
    %v79 = vld [vmem:[%s2] sm:$0x1]
    %v81 = vlaneseq
    %v82 = vshrl.u32 %v81, 7
    %v83 = vsub.s32 0, %v82
    %v84 = vrot.slane %v79, %v83
    %vm86 = vcmask 64512
    %v88 = vsel %vm86, %v77, 0
    %v91 = vsel %vm86, %v78, 0
    %vm93 = vcmask 1043456
    %v95 = vsel %vm93, %v76, 0
    %97 = vmatprep.subr.bf16.mxu0 0
    %98 = vmatpush1.bf16.msra.mxu0 0
    %99 = vmatprep.subr.bf16.mxu0 0
    %100 = vmatpush1.bf16.msra.mxu0 0
    %101 = vmatprep.subr.bf16.mxu0 0
    %102 = vmatpush1.bf16.msra.mxu0 0
    %103 = vmatprep.subr.bf16.mxu0 0
    %104 = vmatpush1.bf16.msra.mxu0 0
    %105 = vmatprep.subr.bf16.mxu0 0
    %106 = vmatpush1.bf16.msra.mxu0 0
    %107 = vmatprep.subr.bf16.mxu0 0
    %108 = vmatpush1.bf16.msra.mxu0 0
    %109 = vmatprep.subr.bf16.mxu0 0
    %110 = vmatpush1.bf16.msra.mxu0 0
    %111 = vmatprep.subr.bf16.mxu0 0
    %112 = vmatpush1.bf16.msra.mxu0 %v95
    %113 = vmatprep.subr.bf16.mxu0 0
    %114 = vmatpush2.bf16.msra.mxu0 0
    %115 = vmatprep.subr.bf16.mxu0 0
    %116 = vmatpush2.bf16.msra.mxu0 0
    %117 = vmatprep.subr.bf16.mxu0 0
    %118 = vmatpush2.bf16.msra.mxu0 0
    %119 = vmatprep.subr.bf16.mxu0 0
    %120 = vmatpush2.bf16.msra.mxu0 0
    %121 = vmatprep.subr.bf16.mxu0 0
    %122 = vmatpush2.bf16.msra.mxu0 0
    %123 = vmatprep.subr.bf16.mxu0 0
    %124 = vmatpush2.bf16.msra.mxu0 0
    %125 = vmatprep.subr.bf16.mxu0 0
    %126 = vmatpush2.bf16.msra.mxu0 0
    %127 = vmatprep.subr.bf16.mxu0 0
    %128 = vmatpush2.bf16.msra.mxu0 0
    %129 = vmatprep.mubr.bf16.mxu0 0
    %130 = vmatmul.mubr.bf16.gmra.mxu0 %v88
    %v131 = vpop.f32.mrf.mxu0
    %v132 = vadd.f32 %v84, %v131
    %v133 = vpop.f32.mrf.mxu0
    %v134 = vpop.f32.mrf.mxu0
    %v135 = vadd.f32 %v84, %v134
    %v136 = vpop.f32.mrf.mxu0
    %137 = vmatprep.mubr.bf16.mxu0 0
    %138 = vmatmul.mubr.bf16.gmra.mxu0 %v91
    %v139 = vpop.f32.mrf.mxu0
    %v140 = vadd.f32 %v84, %v139
    %v141 = vpop.f32.mrf.mxu0
    %v142 = vpop.f32.mrf.mxu0
    %v143 = vadd.f32 %v84, %v142
    %v144 = vpop.f32.mrf.mxu0
    %145 = vdwg.mxu0
    %v146 = vld [vmem:[%s3] sm:$0xf]
    %v147 = vld [vmem:[%s3 + $0x4] sm:$0xf]
    %v148 = vld [vmem:[%s3 + $0x8] sm:$0xf]
    %v149 = vld [vmem:[%s3 + $0xc] sm:$0xf]
    %v150 = vpack.c.bf16 %v135, %v132
    %v151 = vpack.c.bf16 %v143, %v140
    %v152 = vld [vmem:[%s4] sm:$0x1]
    %v154 = vlaneseq
    %v155 = vshrl.u32 %v154, 7
    %v156 = vsub.s32 0, %v155
    %v157 = vrot.slane %v152, %v156
    %v163 = vunpack.c.l.b16 %v146
    %v164 = vunpack.c.l.b16 %v147
    %v165 = vunpack.c.l.b16 %v148
    %v166 = vunpack.c.l.b16 %v149
    %v167 = vpack.c.b16 %v164, %v163
    %v168 = vpack.c.b16 %v166, %v165
    %vm171 = vcmask 261120
    %v173 = vsel %vm171, %v150, 0
    %v176 = vsel %vm171, %v151, 0
    %178 = vmatprep.subr.bf16.mxu0 0
    %179 = vmatpush1.bf16.msra.mxu0 0
    %180 = vmatprep.subr.bf16.mxu0 0
    %181 = vmatpush1.bf16.msra.mxu0 0
    %182 = vmatprep.subr.bf16.mxu0 0
    %183 = vmatpush1.bf16.msra.mxu0 0
    %184 = vmatprep.subr.bf16.mxu0 0
    %185 = vmatpush1.bf16.msra.mxu0 0
    %186 = vmatprep.subr.bf16.mxu0 0
    %187 = vmatpush1.bf16.msra.mxu0 0
    %188 = vmatprep.subr.bf16.mxu0 0
    %189 = vmatpush1.bf16.msra.mxu0 0
    %190 = vmatprep.subr.bf16.mxu0 0
    %191 = vmatpush1.bf16.msra.mxu0 %v168
    %192 = vmatprep.subr.bf16.mxu0 0
    %193 = vmatpush1.bf16.msra.mxu0 %v167
    %194 = vmatprep.subr.bf16.mxu0 0
    %195 = vmatpush2.bf16.msra.mxu0 0
    %196 = vmatprep.subr.bf16.mxu0 0
    %197 = vmatpush2.bf16.msra.mxu0 0
    %198 = vmatprep.subr.bf16.mxu0 0
    %199 = vmatpush2.bf16.msra.mxu0 0
    %200 = vmatprep.subr.bf16.mxu0 0
    %201 = vmatpush2.bf16.msra.mxu0 0
    %202 = vmatprep.subr.bf16.mxu0 0
    %203 = vmatpush2.bf16.msra.mxu0 0
    %204 = vmatprep.subr.bf16.mxu0 0
    %205 = vmatpush2.bf16.msra.mxu0 0
    %206 = vmatprep.subr.bf16.mxu0 0
    %207 = vmatpush2.bf16.msra.mxu0 0
    %208 = vmatprep.subr.bf16.mxu0 0
    %209 = vmatpush2.bf16.msra.mxu0 0
    %210 = vmatprep.mubr.bf16.mxu0 0
    %211 = vmatmul.mubr.bf16.gmra.mxu0 %v173
    %v212 = vpop.f32.mrf.mxu0
    %v213 = vadd.f32 %v157, %v212
    %v214 = vpop.f32.mrf.mxu0
    %v215 = vpop.f32.mrf.mxu0
    %v216 = vadd.f32 %v157, %v215
    %v217 = vpop.f32.mrf.mxu0
    %218 = vmatprep.mubr.bf16.mxu0 0
    %219 = vmatmul.mubr.bf16.gmra.mxu0 %v176
    %v220 = vpop.f32.mrf.mxu0
    %v221 = vadd.f32 %v157, %v220
    %v222 = vpop.f32.mrf.mxu0
    %v223 = vpop.f32.mrf.mxu0
    %v224 = vadd.f32 %v157, %v223
    %v225 = vpop.f32.mrf.mxu0
    %226 = vdwg.mxu0
    %v227 = vld [vmem:[%s5] sm:$0xf]
    %v228 = vld [vmem:[%s5 + $0x4] sm:$0xf]
    %v229 = vld [vmem:[%s5 + $0x8] sm:$0xf]
    %v230 = vld [vmem:[%s5 + $0xc] sm:$0xf]
    %v231 = vpack.c.bf16 %v213, %v213
    %v232 = vpack.c.bf16 %v216, %v216
    %v233 = vpack.c.bf16 %v221, %v221
    %v234 = vpack.c.bf16 %v224, %v224
    %236 = vrot.lane.b32.xlu0 %v231, 96
    %v237 = vpop.permute.xlu0 %236
    %vm238 = vcmask 130048
    %v240 = vsel %vm238, %v231, 0
    %v243 = vsel %vm238, %v237, 0
    %245 = vmatprep.subr.bf16.mxu0 0
    %246 = vmatpush1.bf16.xpose.msra.mxu0 0
    %247 = vmatprep.subr.bf16.mxu0 0
    %248 = vmatpush1.bf16.xpose.msra.mxu0 0
    %249 = vmatprep.subr.bf16.mxu0 0
    %250 = vmatpush1.bf16.xpose.msra.mxu0 0
    %251 = vmatprep.subr.bf16.mxu0 0
    %252 = vmatpush1.bf16.xpose.msra.mxu0 0
    %253 = vmatprep.subr.bf16.mxu0 0
    %254 = vmatpush1.bf16.xpose.msra.mxu0 0
    %255 = vmatprep.subr.bf16.mxu0 0
    %256 = vmatpush1.bf16.xpose.msra.mxu0 0
    %257 = vmatprep.subr.bf16.mxu0 0
    %258 = vmatpush1.bf16.xpose.msra.mxu0 0
    %259 = vmatprep.subr.bf16.mxu0 0
    %260 = vmatpush1.bf16.xpose.msra.mxu0 %v243
    %261 = vmatprep.subr.bf16.mxu0 0
    %262 = vmatpush2.bf16.xpose.msra.mxu0 0
    %263 = vmatprep.subr.bf16.mxu0 0
    %264 = vmatpush2.bf16.xpose.msra.mxu0 0
    %265 = vmatprep.subr.bf16.mxu0 0
    %266 = vmatpush2.bf16.xpose.msra.mxu0 0
    %267 = vmatprep.subr.bf16.mxu0 0
    %268 = vmatpush2.bf16.xpose.msra.mxu0 0
    %269 = vmatprep.subr.bf16.mxu0 0
    %270 = vmatpush2.bf16.xpose.msra.mxu0 0
    %271 = vmatprep.subr.bf16.mxu0 0
    %272 = vmatpush2.bf16.xpose.msra.mxu0 0
    %273 = vmatprep.subr.bf16.mxu0 0
    %274 = vmatpush2.bf16.xpose.msra.mxu0 0
    %275 = vmatprep.subr.bf16.mxu0 0
    %276 = vmatpush2.bf16.xpose.msra.mxu0 0
    %277 = vmatprep.mubr.bf16.mxu0 0
    %278 = vmatmul.mubr.bf16.gmra.mxu0 %v240
    %v279 = vpop.f32.mrf.mxu0
    %v280 = vadd.f32 0.0, %v279
    %v281 = vpop.f32.mrf.mxu0
    %v282 = vpop.f32.mrf.mxu0
    %v283 = vpop.f32.mrf.mxu0
    %284 = vdwg.mxu0
    %286 = vrot.lane.b32.xlu0 %v232, 96
    %v287 = vpop.permute.xlu0 %286
    %v289 = vsel %vm238, %v232, 0
    %v292 = vsel %vm238, %v287, 0
    %294 = vmatprep.subr.bf16.mxu0 0
    %295 = vmatpush1.bf16.xpose.msra.mxu0 0
    %296 = vmatprep.subr.bf16.mxu0 0
    %297 = vmatpush1.bf16.xpose.msra.mxu0 0
    %298 = vmatprep.subr.bf16.mxu0 0
    %299 = vmatpush1.bf16.xpose.msra.mxu0 0
    %300 = vmatprep.subr.bf16.mxu0 0
    %301 = vmatpush1.bf16.xpose.msra.mxu0 0
    %302 = vmatprep.subr.bf16.mxu0 0
    %303 = vmatpush1.bf16.xpose.msra.mxu0 0
    %304 = vmatprep.subr.bf16.mxu0 0
    %305 = vmatpush1.bf16.xpose.msra.mxu0 0
    %306 = vmatprep.subr.bf16.mxu0 0
    %307 = vmatpush1.bf16.xpose.msra.mxu0 0
    %308 = vmatprep.subr.bf16.mxu0 0
    %309 = vmatpush1.bf16.xpose.msra.mxu0 %v292
    %310 = vmatprep.subr.bf16.mxu0 0
    %311 = vmatpush2.bf16.xpose.msra.mxu0 0
    %312 = vmatprep.subr.bf16.mxu0 0
    %313 = vmatpush2.bf16.xpose.msra.mxu0 0
    %314 = vmatprep.subr.bf16.mxu0 0
    %315 = vmatpush2.bf16.xpose.msra.mxu0 0
    %316 = vmatprep.subr.bf16.mxu0 0
    %317 = vmatpush2.bf16.xpose.msra.mxu0 0
    %318 = vmatprep.subr.bf16.mxu0 0
    %319 = vmatpush2.bf16.xpose.msra.mxu0 0
    %320 = vmatprep.subr.bf16.mxu0 0
    %321 = vmatpush2.bf16.xpose.msra.mxu0 0
    %322 = vmatprep.subr.bf16.mxu0 0
    %323 = vmatpush2.bf16.xpose.msra.mxu0 0
    %324 = vmatprep.subr.bf16.mxu0 0
    %325 = vmatpush2.bf16.xpose.msra.mxu0 0
    %326 = vmatprep.mubr.bf16.mxu0 0
    %327 = vmatmul.mubr.bf16.gmra.mxu0 %v289
    %v328 = vpop.f32.mrf.mxu0
    %v329 = vadd.f32 0.0, %v328
    %v330 = vpop.f32.mrf.mxu0
    %v331 = vpop.f32.mrf.mxu0
    %v332 = vpop.f32.mrf.mxu0
    %333 = vdwg.mxu0
    %335 = vrot.lane.b32.xlu0 %v233, 96
    %v336 = vpop.permute.xlu0 %335
    %v338 = vsel %vm238, %v233, 0
    %v341 = vsel %vm238, %v336, 0
    %343 = vmatprep.subr.bf16.mxu0 0
    %344 = vmatpush1.bf16.xpose.msra.mxu0 0
    %345 = vmatprep.subr.bf16.mxu0 0
    %346 = vmatpush1.bf16.xpose.msra.mxu0 0
    %347 = vmatprep.subr.bf16.mxu0 0
    %348 = vmatpush1.bf16.xpose.msra.mxu0 0
    %349 = vmatprep.subr.bf16.mxu0 0
    %350 = vmatpush1.bf16.xpose.msra.mxu0 0
    %351 = vmatprep.subr.bf16.mxu0 0
    %352 = vmatpush1.bf16.xpose.msra.mxu0 0
    %353 = vmatprep.subr.bf16.mxu0 0
    %354 = vmatpush1.bf16.xpose.msra.mxu0 0
    %355 = vmatprep.subr.bf16.mxu0 0
    %356 = vmatpush1.bf16.xpose.msra.mxu0 0
    %357 = vmatprep.subr.bf16.mxu0 0
    %358 = vmatpush1.bf16.xpose.msra.mxu0 %v341
    %359 = vmatprep.subr.bf16.mxu0 0
    %360 = vmatpush2.bf16.xpose.msra.mxu0 0
    %361 = vmatprep.subr.bf16.mxu0 0
    %362 = vmatpush2.bf16.xpose.msra.mxu0 0
    %363 = vmatprep.subr.bf16.mxu0 0
    %364 = vmatpush2.bf16.xpose.msra.mxu0 0
    %365 = vmatprep.subr.bf16.mxu0 0
    %366 = vmatpush2.bf16.xpose.msra.mxu0 0
    %367 = vmatprep.subr.bf16.mxu0 0
    %368 = vmatpush2.bf16.xpose.msra.mxu0 0
    %369 = vmatprep.subr.bf16.mxu0 0
    %370 = vmatpush2.bf16.xpose.msra.mxu0 0
    %371 = vmatprep.subr.bf16.mxu0 0
    %372 = vmatpush2.bf16.xpose.msra.mxu0 0
    %373 = vmatprep.subr.bf16.mxu0 0
    %374 = vmatpush2.bf16.xpose.msra.mxu0 0
    %375 = vmatprep.mubr.bf16.mxu0 0
    %376 = vmatmul.mubr.bf16.gmra.mxu0 %v338
    %v377 = vpop.f32.mrf.mxu0
    %v378 = vadd.f32 0.0, %v377
    %v379 = vpop.f32.mrf.mxu0
    %v380 = vpop.f32.mrf.mxu0
    %v381 = vpop.f32.mrf.mxu0
    %382 = vdwg.mxu0
    %384 = vrot.lane.b32.xlu0 %v234, 96
    %v385 = vpop.permute.xlu0 %384
    %v387 = vsel %vm238, %v234, 0
    %v390 = vsel %vm238, %v385, 0
    %392 = vmatprep.subr.bf16.mxu0 0
    %393 = vmatpush1.bf16.xpose.msra.mxu0 0
    %394 = vmatprep.subr.bf16.mxu0 0
    %395 = vmatpush1.bf16.xpose.msra.mxu0 0
    %396 = vmatprep.subr.bf16.mxu0 0
    %397 = vmatpush1.bf16.xpose.msra.mxu0 0
    %398 = vmatprep.subr.bf16.mxu0 0
    %399 = vmatpush1.bf16.xpose.msra.mxu0 0
    %400 = vmatprep.subr.bf16.mxu0 0
    %401 = vmatpush1.bf16.xpose.msra.mxu0 0
    %402 = vmatprep.subr.bf16.mxu0 0
    %403 = vmatpush1.bf16.xpose.msra.mxu0 0
    %404 = vmatprep.subr.bf16.mxu0 0
    %405 = vmatpush1.bf16.xpose.msra.mxu0 0
    %406 = vmatprep.subr.bf16.mxu0 0
    %407 = vmatpush1.bf16.xpose.msra.mxu0 %v390
    %408 = vmatprep.subr.bf16.mxu0 0
    %409 = vmatpush2.bf16.xpose.msra.mxu0 0
    %410 = vmatprep.subr.bf16.mxu0 0
    %411 = vmatpush2.bf16.xpose.msra.mxu0 0
    %412 = vmatprep.subr.bf16.mxu0 0
    %413 = vmatpush2.bf16.xpose.msra.mxu0 0
    %414 = vmatprep.subr.bf16.mxu0 0
    %415 = vmatpush2.bf16.xpose.msra.mxu0 0
    %416 = vmatprep.subr.bf16.mxu0 0
    %417 = vmatpush2.bf16.xpose.msra.mxu0 0
    %418 = vmatprep.subr.bf16.mxu0 0
    %419 = vmatpush2.bf16.xpose.msra.mxu0 0
    %420 = vmatprep.subr.bf16.mxu0 0
    %421 = vmatpush2.bf16.xpose.msra.mxu0 0
    %422 = vmatprep.subr.bf16.mxu0 0
    %423 = vmatpush2.bf16.xpose.msra.mxu0 0
    %424 = vmatprep.mubr.bf16.mxu0 0
    %425 = vmatmul.mubr.bf16.gmra.mxu0 %v387
    %v426 = vpop.f32.mrf.mxu0
    %v427 = vadd.f32 0.0, %v426
    %v428 = vpop.f32.mrf.mxu0
    %v429 = vpop.f32.mrf.mxu0
    %v430 = vpop.f32.mrf.mxu0
    %431 = vdwg.mxu0
    %v432 = vmul.f32 %v280, 0.25
    %v433 = vmul.f32 %v329, 0.25
    %v434 = vmul.f32 %v378, 0.25
    %v435 = vmul.f32 %v427, 0.25
    %v436 = vsel %vm86, %v432, -inf
    %437 = vmax.xlane.f32.xlu0 %v436
    %v438 = vpop.xlane.xlu0 %437
    %v439 = vsel %vm86, %v433, -inf
    %440 = vmax.xlane.f32.xlu0 %v439
    %v441 = vpop.xlane.xlu0 %440
    %v442 = vsel %vm86, %v434, -inf
    %443 = vmax.xlane.f32.xlu0 %v442
    %v444 = vpop.xlane.xlu0 %443
    %v445 = vsel %vm86, %v435, -inf
    %446 = vmax.xlane.f32.xlu0 %v445
    %v447 = vpop.xlane.xlu0 %446
    %v448 = vsub.f32 %v432, %v438
    %v449 = vsub.f32 %v433, %v441
    %v450 = vsub.f32 %v434, %v444
    %v451 = vsub.f32 %v435, %v447
    %v452 = vmul.f32 %v448, 1.442695
    %v453 = vpow.pop %v452
    %v454 = vmul.f32 %v449, 1.442695
    %v455 = vpow.pop %v454
    %v456 = vmul.f32 %v450, 1.442695
    %v457 = vpow.pop %v456
    %v458 = vmul.f32 %v451, 1.442695
    %v459 = vpow.pop %v458
    %v460 = vsel %vm86, %v453, 0.0
    %461 = vadd.xlane.f32.xlu0 %v460
    %v462 = vpop.xlane.xlu0 %461
    %v463 = vsel %vm86, %v455, 0.0
    %464 = vadd.xlane.f32.xlu0 %v463
    %v465 = vpop.xlane.xlu0 %464
    %v466 = vsel %vm86, %v457, 0.0
    %467 = vadd.xlane.f32.xlu0 %v466
    %v468 = vpop.xlane.xlu0 %467
    %v469 = vsel %vm86, %v459, 0.0
    %470 = vadd.xlane.f32.xlu0 %v469
    %v471 = vpop.xlane.xlu0 %470
    %v472 = vrcp.pop %v462
    %v473 = vrcp.pop %v465
    %v474 = vrcp.pop %v468
    %v475 = vrcp.pop %v471
    %v476 = vmul.f32 %v453, %v472
    %v477 = vmul.f32 %v455, %v473
    %v478 = vmul.f32 %v457, %v474
    %v479 = vmul.f32 %v459, %v475
    %v480 = vpack.c.bf16 %v476, %v476
    %v481 = vpack.c.bf16 %v477, %v477
    %v482 = vpack.c.bf16 %v478, %v478
    %v483 = vpack.c.bf16 %v479, %v479
    %484 = vrot.lane.b32.xlu0 %v231, 64
    %v485 = vpop.permute.xlu0 %484
    %v487 = vsel %vm86, %v480, 0
    %v490 = vsel %vm93, %v485, 0
    %492 = vmatprep.subr.bf16.mxu0 0
    %493 = vmatpush1.bf16.msra.mxu0 0
    %494 = vmatprep.subr.bf16.mxu0 0
    %495 = vmatpush1.bf16.msra.mxu0 0
    %496 = vmatprep.subr.bf16.mxu0 0
    %497 = vmatpush1.bf16.msra.mxu0 0
    %498 = vmatprep.subr.bf16.mxu0 0
    %499 = vmatpush1.bf16.msra.mxu0 0
    %500 = vmatprep.subr.bf16.mxu0 0
    %501 = vmatpush1.bf16.msra.mxu0 0
    %502 = vmatprep.subr.bf16.mxu0 0
    %503 = vmatpush1.bf16.msra.mxu0 0
    %504 = vmatprep.subr.bf16.mxu0 0
    %505 = vmatpush1.bf16.msra.mxu0 0
    %506 = vmatprep.subr.bf16.mxu0 0
    %507 = vmatpush1.bf16.msra.mxu0 %v490
    %508 = vmatprep.subr.bf16.mxu0 0
    %509 = vmatpush2.bf16.msra.mxu0 0
    %510 = vmatprep.subr.bf16.mxu0 0
    %511 = vmatpush2.bf16.msra.mxu0 0
    %512 = vmatprep.subr.bf16.mxu0 0
    %513 = vmatpush2.bf16.msra.mxu0 0
    %514 = vmatprep.subr.bf16.mxu0 0
    %515 = vmatpush2.bf16.msra.mxu0 0
    %516 = vmatprep.subr.bf16.mxu0 0
    %517 = vmatpush2.bf16.msra.mxu0 0
    %518 = vmatprep.subr.bf16.mxu0 0
    %519 = vmatpush2.bf16.msra.mxu0 0
    %520 = vmatprep.subr.bf16.mxu0 0
    %521 = vmatpush2.bf16.msra.mxu0 0
    %522 = vmatprep.subr.bf16.mxu0 0
    %523 = vmatpush2.bf16.msra.mxu0 0
    %524 = vmatprep.mubr.bf16.mxu0 0
    %525 = vmatmul.mubr.bf16.gmra.mxu0 %v487
    %v526 = vpop.f32.mrf.mxu0
    %v527 = vadd.f32 0.0, %v526
    %v528 = vpop.f32.mrf.mxu0
    %v529 = vpop.f32.mrf.mxu0
    %v530 = vpop.f32.mrf.mxu0
    %531 = vdwg.mxu0
    %532 = vrot.lane.b32.xlu0 %v232, 64
    %v533 = vpop.permute.xlu0 %532
    %v535 = vsel %vm86, %v481, 0
    %v538 = vsel %vm93, %v533, 0
    %540 = vmatprep.subr.bf16.mxu0 0
    %541 = vmatpush1.bf16.msra.mxu0 0
    %542 = vmatprep.subr.bf16.mxu0 0
    %543 = vmatpush1.bf16.msra.mxu0 0
    %544 = vmatprep.subr.bf16.mxu0 0
    %545 = vmatpush1.bf16.msra.mxu0 0
    %546 = vmatprep.subr.bf16.mxu0 0
    %547 = vmatpush1.bf16.msra.mxu0 0
    %548 = vmatprep.subr.bf16.mxu0 0
    %549 = vmatpush1.bf16.msra.mxu0 0
    %550 = vmatprep.subr.bf16.mxu0 0
    %551 = vmatpush1.bf16.msra.mxu0 0
    %552 = vmatprep.subr.bf16.mxu0 0
    %553 = vmatpush1.bf16.msra.mxu0 0
    %554 = vmatprep.subr.bf16.mxu0 0
    %555 = vmatpush1.bf16.msra.mxu0 %v538
    %556 = vmatprep.subr.bf16.mxu0 0
    %557 = vmatpush2.bf16.msra.mxu0 0
    %558 = vmatprep.subr.bf16.mxu0 0
    %559 = vmatpush2.bf16.msra.mxu0 0
    %560 = vmatprep.subr.bf16.mxu0 0
    %561 = vmatpush2.bf16.msra.mxu0 0
    %562 = vmatprep.subr.bf16.mxu0 0
    %563 = vmatpush2.bf16.msra.mxu0 0
    %564 = vmatprep.subr.bf16.mxu0 0
    %565 = vmatpush2.bf16.msra.mxu0 0
    %566 = vmatprep.subr.bf16.mxu0 0
    %567 = vmatpush2.bf16.msra.mxu0 0
    %568 = vmatprep.subr.bf16.mxu0 0
    %569 = vmatpush2.bf16.msra.mxu0 0
    %570 = vmatprep.subr.bf16.mxu0 0
    %571 = vmatpush2.bf16.msra.mxu0 0
    %572 = vmatprep.mubr.bf16.mxu0 0
    %573 = vmatmul.mubr.bf16.gmra.mxu0 %v535
    %v574 = vpop.f32.mrf.mxu0
    %v575 = vadd.f32 0.0, %v574
    %v576 = vpop.f32.mrf.mxu0
    %v577 = vpop.f32.mrf.mxu0
    %v578 = vpop.f32.mrf.mxu0
    %579 = vdwg.mxu0
    %580 = vrot.lane.b32.xlu0 %v233, 64
    %v581 = vpop.permute.xlu0 %580
    %v583 = vsel %vm86, %v482, 0
    %v586 = vsel %vm93, %v581, 0
    %588 = vmatprep.subr.bf16.mxu0 0
    %589 = vmatpush1.bf16.msra.mxu0 0
    %590 = vmatprep.subr.bf16.mxu0 0
    %591 = vmatpush1.bf16.msra.mxu0 0
    %592 = vmatprep.subr.bf16.mxu0 0
    %593 = vmatpush1.bf16.msra.mxu0 0
    %594 = vmatprep.subr.bf16.mxu0 0
    %595 = vmatpush1.bf16.msra.mxu0 0
    %596 = vmatprep.subr.bf16.mxu0 0
    %597 = vmatpush1.bf16.msra.mxu0 0
    %598 = vmatprep.subr.bf16.mxu0 0
    %599 = vmatpush1.bf16.msra.mxu0 0
    %600 = vmatprep.subr.bf16.mxu0 0
    %601 = vmatpush1.bf16.msra.mxu0 0
    %602 = vmatprep.subr.bf16.mxu0 0
    %603 = vmatpush1.bf16.msra.mxu0 %v586
    %604 = vmatprep.subr.bf16.mxu0 0
    %605 = vmatpush2.bf16.msra.mxu0 0
    %606 = vmatprep.subr.bf16.mxu0 0
    %607 = vmatpush2.bf16.msra.mxu0 0
    %608 = vmatprep.subr.bf16.mxu0 0
    %609 = vmatpush2.bf16.msra.mxu0 0
    %610 = vmatprep.subr.bf16.mxu0 0
    %611 = vmatpush2.bf16.msra.mxu0 0
    %612 = vmatprep.subr.bf16.mxu0 0
    %613 = vmatpush2.bf16.msra.mxu0 0
    %614 = vmatprep.subr.bf16.mxu0 0
    %615 = vmatpush2.bf16.msra.mxu0 0
    %616 = vmatprep.subr.bf16.mxu0 0
    %617 = vmatpush2.bf16.msra.mxu0 0
    %618 = vmatprep.subr.bf16.mxu0 0
    %619 = vmatpush2.bf16.msra.mxu0 0
    %620 = vmatprep.mubr.bf16.mxu0 0
    %621 = vmatmul.mubr.bf16.gmra.mxu0 %v583
    %v622 = vpop.f32.mrf.mxu0
    %v623 = vadd.f32 0.0, %v622
    %v624 = vpop.f32.mrf.mxu0
    %v625 = vpop.f32.mrf.mxu0
    %v626 = vpop.f32.mrf.mxu0
    %627 = vdwg.mxu0
    %628 = vrot.lane.b32.xlu0 %v234, 64
    %v629 = vpop.permute.xlu0 %628
    %v631 = vsel %vm86, %v483, 0
    %v634 = vsel %vm93, %v629, 0
    %636 = vmatprep.subr.bf16.mxu0 0
    %637 = vmatpush1.bf16.msra.mxu0 0
    %638 = vmatprep.subr.bf16.mxu0 0
    %639 = vmatpush1.bf16.msra.mxu0 0
    %640 = vmatprep.subr.bf16.mxu0 0
    %641 = vmatpush1.bf16.msra.mxu0 0
    %642 = vmatprep.subr.bf16.mxu0 0
    %643 = vmatpush1.bf16.msra.mxu0 0
    %644 = vmatprep.subr.bf16.mxu0 0
    %645 = vmatpush1.bf16.msra.mxu0 0
    %646 = vmatprep.subr.bf16.mxu0 0
    %647 = vmatpush1.bf16.msra.mxu0 0
    %648 = vmatprep.subr.bf16.mxu0 0
    %649 = vmatpush1.bf16.msra.mxu0 0
    %650 = vmatprep.subr.bf16.mxu0 0
    %651 = vmatpush1.bf16.msra.mxu0 %v634
    %652 = vmatprep.subr.bf16.mxu0 0
    %653 = vmatpush2.bf16.msra.mxu0 0
    %654 = vmatprep.subr.bf16.mxu0 0
    %655 = vmatpush2.bf16.msra.mxu0 0
    %656 = vmatprep.subr.bf16.mxu0 0
    %657 = vmatpush2.bf16.msra.mxu0 0
    %658 = vmatprep.subr.bf16.mxu0 0
    %659 = vmatpush2.bf16.msra.mxu0 0
    %660 = vmatprep.subr.bf16.mxu0 0
    %661 = vmatpush2.bf16.msra.mxu0 0
    %662 = vmatprep.subr.bf16.mxu0 0
    %663 = vmatpush2.bf16.msra.mxu0 0
    %664 = vmatprep.subr.bf16.mxu0 0
    %665 = vmatpush2.bf16.msra.mxu0 0
    %666 = vmatprep.subr.bf16.mxu0 0
    %667 = vmatpush2.bf16.msra.mxu0 0
    %668 = vmatprep.mubr.bf16.mxu0 0
    %669 = vmatmul.mubr.bf16.gmra.mxu0 %v631
    %v670 = vpop.f32.mrf.mxu0
    %v671 = vadd.f32 0.0, %v670
    %v672 = vpop.f32.mrf.mxu0
    %v673 = vpop.f32.mrf.mxu0
    %v674 = vpop.f32.mrf.mxu0
    %675 = vdwg.mxu0
    %v676 = vpack.c.bf16 %v575, %v527
    %v677 = vpack.c.bf16 %v671, %v623
    %678 = vrot.lane.b32.xlu0 %v231, 112
    %v679 = vpop.permute.xlu0 %678
    %680 = vrot.lane.b32.xlu0 %v231, 80
    %v681 = vpop.permute.xlu0 %680
    %v683 = vsel %vm238, %v679, 0
    %v686 = vsel %vm238, %v681, 0
    %688 = vmatprep.subr.bf16.mxu0 0
    %689 = vmatpush1.bf16.xpose.msra.mxu0 0
    %690 = vmatprep.subr.bf16.mxu0 0
    %691 = vmatpush1.bf16.xpose.msra.mxu0 0
    %692 = vmatprep.subr.bf16.mxu0 0
    %693 = vmatpush1.bf16.xpose.msra.mxu0 0
    %694 = vmatprep.subr.bf16.mxu0 0
    %695 = vmatpush1.bf16.xpose.msra.mxu0 0
    %696 = vmatprep.subr.bf16.mxu0 0
    %697 = vmatpush1.bf16.xpose.msra.mxu0 0
    %698 = vmatprep.subr.bf16.mxu0 0
    %699 = vmatpush1.bf16.xpose.msra.mxu0 0
    %700 = vmatprep.subr.bf16.mxu0 0
    %701 = vmatpush1.bf16.xpose.msra.mxu0 0
    %702 = vmatprep.subr.bf16.mxu0 0
    %703 = vmatpush1.bf16.xpose.msra.mxu0 %v686
    %704 = vmatprep.subr.bf16.mxu0 0
    %705 = vmatpush2.bf16.xpose.msra.mxu0 0
    %706 = vmatprep.subr.bf16.mxu0 0
    %707 = vmatpush2.bf16.xpose.msra.mxu0 0
    %708 = vmatprep.subr.bf16.mxu0 0
    %709 = vmatpush2.bf16.xpose.msra.mxu0 0
    %710 = vmatprep.subr.bf16.mxu0 0
    %711 = vmatpush2.bf16.xpose.msra.mxu0 0
    %712 = vmatprep.subr.bf16.mxu0 0
    %713 = vmatpush2.bf16.xpose.msra.mxu0 0
    %714 = vmatprep.subr.bf16.mxu0 0
    %715 = vmatpush2.bf16.xpose.msra.mxu0 0
    %716 = vmatprep.subr.bf16.mxu0 0
    %717 = vmatpush2.bf16.xpose.msra.mxu0 0
    %718 = vmatprep.subr.bf16.mxu0 0
    %719 = vmatpush2.bf16.xpose.msra.mxu0 0
    %720 = vmatprep.mubr.bf16.mxu0 0
    %721 = vmatmul.mubr.bf16.gmra.mxu0 %v683
    %v722 = vpop.f32.mrf.mxu0
    %v723 = vadd.f32 0.0, %v722
    %v724 = vpop.f32.mrf.mxu0
    %v725 = vpop.f32.mrf.mxu0
    %v726 = vpop.f32.mrf.mxu0
    %727 = vdwg.mxu0
    %728 = vrot.lane.b32.xlu0 %v232, 112
    %v729 = vpop.permute.xlu0 %728
    %730 = vrot.lane.b32.xlu0 %v232, 80
    %v731 = vpop.permute.xlu0 %730
    %v733 = vsel %vm238, %v729, 0
    %v736 = vsel %vm238, %v731, 0
    %738 = vmatprep.subr.bf16.mxu0 0
    %739 = vmatpush1.bf16.xpose.msra.mxu0 0
    %740 = vmatprep.subr.bf16.mxu0 0
    %741 = vmatpush1.bf16.xpose.msra.mxu0 0
    %742 = vmatprep.subr.bf16.mxu0 0
    %743 = vmatpush1.bf16.xpose.msra.mxu0 0
    %744 = vmatprep.subr.bf16.mxu0 0
    %745 = vmatpush1.bf16.xpose.msra.mxu0 0
    %746 = vmatprep.subr.bf16.mxu0 0
    %747 = vmatpush1.bf16.xpose.msra.mxu0 0
    %748 = vmatprep.subr.bf16.mxu0 0
    %749 = vmatpush1.bf16.xpose.msra.mxu0 0
    %750 = vmatprep.subr.bf16.mxu0 0
    %751 = vmatpush1.bf16.xpose.msra.mxu0 0
    %752 = vmatprep.subr.bf16.mxu0 0
    %753 = vmatpush1.bf16.xpose.msra.mxu0 %v736
    %754 = vmatprep.subr.bf16.mxu0 0
    %755 = vmatpush2.bf16.xpose.msra.mxu0 0
    %756 = vmatprep.subr.bf16.mxu0 0
    %757 = vmatpush2.bf16.xpose.msra.mxu0 0
    %758 = vmatprep.subr.bf16.mxu0 0
    %759 = vmatpush2.bf16.xpose.msra.mxu0 0
    %760 = vmatprep.subr.bf16.mxu0 0
    %761 = vmatpush2.bf16.xpose.msra.mxu0 0
    %762 = vmatprep.subr.bf16.mxu0 0
    %763 = vmatpush2.bf16.xpose.msra.mxu0 0
    %764 = vmatprep.subr.bf16.mxu0 0
    %765 = vmatpush2.bf16.xpose.msra.mxu0 0
    %766 = vmatprep.subr.bf16.mxu0 0
    %767 = vmatpush2.bf16.xpose.msra.mxu0 0
    %768 = vmatprep.subr.bf16.mxu0 0
    %769 = vmatpush2.bf16.xpose.msra.mxu0 0
    %770 = vmatprep.mubr.bf16.mxu0 0
    %771 = vmatmul.mubr.bf16.gmra.mxu0 %v733
    %v772 = vpop.f32.mrf.mxu0
    %v773 = vadd.f32 0.0, %v772
    %v774 = vpop.f32.mrf.mxu0
    %v775 = vpop.f32.mrf.mxu0
    %v776 = vpop.f32.mrf.mxu0
    %777 = vdwg.mxu0
    %778 = vrot.lane.b32.xlu0 %v233, 112
    %v779 = vpop.permute.xlu0 %778
    %780 = vrot.lane.b32.xlu0 %v233, 80
    %v781 = vpop.permute.xlu0 %780
    %v783 = vsel %vm238, %v779, 0
    %v786 = vsel %vm238, %v781, 0
    %788 = vmatprep.subr.bf16.mxu0 0
    %789 = vmatpush1.bf16.xpose.msra.mxu0 0
    %790 = vmatprep.subr.bf16.mxu0 0
    %791 = vmatpush1.bf16.xpose.msra.mxu0 0
    %792 = vmatprep.subr.bf16.mxu0 0
    %793 = vmatpush1.bf16.xpose.msra.mxu0 0
    %794 = vmatprep.subr.bf16.mxu0 0
    %795 = vmatpush1.bf16.xpose.msra.mxu0 0
    %796 = vmatprep.subr.bf16.mxu0 0
    %797 = vmatpush1.bf16.xpose.msra.mxu0 0
    %798 = vmatprep.subr.bf16.mxu0 0
    %799 = vmatpush1.bf16.xpose.msra.mxu0 0
    %800 = vmatprep.subr.bf16.mxu0 0
    %801 = vmatpush1.bf16.xpose.msra.mxu0 0
    %802 = vmatprep.subr.bf16.mxu0 0
    %803 = vmatpush1.bf16.xpose.msra.mxu0 %v786
    %804 = vmatprep.subr.bf16.mxu0 0
    %805 = vmatpush2.bf16.xpose.msra.mxu0 0
    %806 = vmatprep.subr.bf16.mxu0 0
    %807 = vmatpush2.bf16.xpose.msra.mxu0 0
    %808 = vmatprep.subr.bf16.mxu0 0
    %809 = vmatpush2.bf16.xpose.msra.mxu0 0
    %810 = vmatprep.subr.bf16.mxu0 0
    %811 = vmatpush2.bf16.xpose.msra.mxu0 0
    %812 = vmatprep.subr.bf16.mxu0 0
    %813 = vmatpush2.bf16.xpose.msra.mxu0 0
    %814 = vmatprep.subr.bf16.mxu0 0
    %815 = vmatpush2.bf16.xpose.msra.mxu0 0
    %816 = vmatprep.subr.bf16.mxu0 0
    %817 = vmatpush2.bf16.xpose.msra.mxu0 0
    %818 = vmatprep.subr.bf16.mxu0 0
    %819 = vmatpush2.bf16.xpose.msra.mxu0 0
    %820 = vmatprep.mubr.bf16.mxu0 0
    %821 = vmatmul.mubr.bf16.gmra.mxu0 %v783
    %v822 = vpop.f32.mrf.mxu0
    %v823 = vadd.f32 0.0, %v822
    %v824 = vpop.f32.mrf.mxu0
    %v825 = vpop.f32.mrf.mxu0
    %v826 = vpop.f32.mrf.mxu0
    %827 = vdwg.mxu0
    %828 = vrot.lane.b32.xlu0 %v234, 112
    %v829 = vpop.permute.xlu0 %828
    %830 = vrot.lane.b32.xlu0 %v234, 80
    %v831 = vpop.permute.xlu0 %830
    %v833 = vsel %vm238, %v829, 0
    %v836 = vsel %vm238, %v831, 0
    %838 = vmatprep.subr.bf16.mxu0 0
    %839 = vmatpush1.bf16.xpose.msra.mxu0 0
    %840 = vmatprep.subr.bf16.mxu0 0
    %841 = vmatpush1.bf16.xpose.msra.mxu0 0
    %842 = vmatprep.subr.bf16.mxu0 0
    %843 = vmatpush1.bf16.xpose.msra.mxu0 0
    %844 = vmatprep.subr.bf16.mxu0 0
    %845 = vmatpush1.bf16.xpose.msra.mxu0 0
    %846 = vmatprep.subr.bf16.mxu0 0
    %847 = vmatpush1.bf16.xpose.msra.mxu0 0
    %848 = vmatprep.subr.bf16.mxu0 0
    %849 = vmatpush1.bf16.xpose.msra.mxu0 0
    %850 = vmatprep.subr.bf16.mxu0 0
    %851 = vmatpush1.bf16.xpose.msra.mxu0 0
    %852 = vmatprep.subr.bf16.mxu0 0
    %853 = vmatpush1.bf16.xpose.msra.mxu0 %v836
    %854 = vmatprep.subr.bf16.mxu0 0
    %855 = vmatpush2.bf16.xpose.msra.mxu0 0
    %856 = vmatprep.subr.bf16.mxu0 0
    %857 = vmatpush2.bf16.xpose.msra.mxu0 0
    %858 = vmatprep.subr.bf16.mxu0 0
    %859 = vmatpush2.bf16.xpose.msra.mxu0 0
    %860 = vmatprep.subr.bf16.mxu0 0
    %861 = vmatpush2.bf16.xpose.msra.mxu0 0
    %862 = vmatprep.subr.bf16.mxu0 0
    %863 = vmatpush2.bf16.xpose.msra.mxu0 0
    %864 = vmatprep.subr.bf16.mxu0 0
    %865 = vmatpush2.bf16.xpose.msra.mxu0 0
    %866 = vmatprep.subr.bf16.mxu0 0
    %867 = vmatpush2.bf16.xpose.msra.mxu0 0
    %868 = vmatprep.subr.bf16.mxu0 0
    %869 = vmatpush2.bf16.xpose.msra.mxu0 0
    %870 = vmatprep.mubr.bf16.mxu0 0
    %871 = vmatmul.mubr.bf16.gmra.mxu0 %v833
    %v872 = vpop.f32.mrf.mxu0
    %v873 = vadd.f32 0.0, %v872
    %v874 = vpop.f32.mrf.mxu0
    %v875 = vpop.f32.mrf.mxu0
    %v876 = vpop.f32.mrf.mxu0
    %877 = vdwg.mxu0
    %v878 = vmul.f32 %v723, 0.25
    %v879 = vmul.f32 %v773, 0.25
    %v880 = vmul.f32 %v823, 0.25
    %v881 = vmul.f32 %v873, 0.25
    %v882 = vsel %vm86, %v878, -inf
    %883 = vmax.xlane.f32.xlu0 %v882
    %v884 = vpop.xlane.xlu0 %883
    %v885 = vsel %vm86, %v879, -inf
    %886 = vmax.xlane.f32.xlu0 %v885
    %v887 = vpop.xlane.xlu0 %886
    %v888 = vsel %vm86, %v880, -inf
    %889 = vmax.xlane.f32.xlu0 %v888
    %v890 = vpop.xlane.xlu0 %889
    %v891 = vsel %vm86, %v881, -inf
    %892 = vmax.xlane.f32.xlu0 %v891
    %v893 = vpop.xlane.xlu0 %892
    %v894 = vsub.f32 %v878, %v884
    %v895 = vsub.f32 %v879, %v887
    %v896 = vsub.f32 %v880, %v890
    %v897 = vsub.f32 %v881, %v893
    %v898 = vmul.f32 %v894, 1.442695
    %v899 = vpow.pop %v898
    %v900 = vmul.f32 %v895, 1.442695
    %v901 = vpow.pop %v900
    %v902 = vmul.f32 %v896, 1.442695
    %v903 = vpow.pop %v902
    %v904 = vmul.f32 %v897, 1.442695
    %v905 = vpow.pop %v904
    %v906 = vsel %vm86, %v899, 0.0
    %907 = vadd.xlane.f32.xlu0 %v906
    %v908 = vpop.xlane.xlu0 %907
    %v909 = vsel %vm86, %v901, 0.0
    %910 = vadd.xlane.f32.xlu0 %v909
    %v911 = vpop.xlane.xlu0 %910
    %v912 = vsel %vm86, %v903, 0.0
    %913 = vadd.xlane.f32.xlu0 %v912
    %v914 = vpop.xlane.xlu0 %913
    %v915 = vsel %vm86, %v905, 0.0
    %916 = vadd.xlane.f32.xlu0 %v915
    %v917 = vpop.xlane.xlu0 %916
    %v918 = vrcp.pop %v908
    %v919 = vrcp.pop %v911
    %v920 = vrcp.pop %v914
    %v921 = vrcp.pop %v917
    %v922 = vmul.f32 %v899, %v918
    %v923 = vmul.f32 %v901, %v919
    %v924 = vmul.f32 %v903, %v920
    %v925 = vmul.f32 %v905, %v921
    %v926 = vpack.c.bf16 %v922, %v922
    %v927 = vpack.c.bf16 %v923, %v923
    %v928 = vpack.c.bf16 %v924, %v924
    %v929 = vpack.c.bf16 %v925, %v925
    %930 = vrot.lane.b32.xlu0 %v231, 48
    %v931 = vpop.permute.xlu0 %930
    %v933 = vsel %vm86, %v926, 0
    %v936 = vsel %vm93, %v931, 0
    %938 = vmatprep.subr.bf16.mxu0 0
    %939 = vmatpush1.bf16.msra.mxu0 0
    %940 = vmatprep.subr.bf16.mxu0 0
    %941 = vmatpush1.bf16.msra.mxu0 0
    %942 = vmatprep.subr.bf16.mxu0 0
    %943 = vmatpush1.bf16.msra.mxu0 0
    %944 = vmatprep.subr.bf16.mxu0 0
    %945 = vmatpush1.bf16.msra.mxu0 0
    %946 = vmatprep.subr.bf16.mxu0 0
    %947 = vmatpush1.bf16.msra.mxu0 0
    %948 = vmatprep.subr.bf16.mxu0 0
    %949 = vmatpush1.bf16.msra.mxu0 0
    %950 = vmatprep.subr.bf16.mxu0 0
    %951 = vmatpush1.bf16.msra.mxu0 0
    %952 = vmatprep.subr.bf16.mxu0 0
    %953 = vmatpush1.bf16.msra.mxu0 %v936
    %954 = vmatprep.subr.bf16.mxu0 0
    %955 = vmatpush2.bf16.msra.mxu0 0
    %956 = vmatprep.subr.bf16.mxu0 0
    %957 = vmatpush2.bf16.msra.mxu0 0
    %958 = vmatprep.subr.bf16.mxu0 0
    %959 = vmatpush2.bf16.msra.mxu0 0
    %960 = vmatprep.subr.bf16.mxu0 0
    %961 = vmatpush2.bf16.msra.mxu0 0
    %962 = vmatprep.subr.bf16.mxu0 0
    %963 = vmatpush2.bf16.msra.mxu0 0
    %964 = vmatprep.subr.bf16.mxu0 0
    %965 = vmatpush2.bf16.msra.mxu0 0
    %966 = vmatprep.subr.bf16.mxu0 0
    %967 = vmatpush2.bf16.msra.mxu0 0
    %968 = vmatprep.subr.bf16.mxu0 0
    %969 = vmatpush2.bf16.msra.mxu0 0
    %970 = vmatprep.mubr.bf16.mxu0 0
    %971 = vmatmul.mubr.bf16.gmra.mxu0 %v933
    %v972 = vpop.f32.mrf.mxu0
    %v973 = vadd.f32 0.0, %v972
    %v974 = vpop.f32.mrf.mxu0
    %v975 = vpop.f32.mrf.mxu0
    %v976 = vpop.f32.mrf.mxu0
    %977 = vdwg.mxu0
    %978 = vrot.lane.b32.xlu0 %v232, 48
    %v979 = vpop.permute.xlu0 %978
    %v981 = vsel %vm86, %v927, 0
    %v984 = vsel %vm93, %v979, 0
    %986 = vmatprep.subr.bf16.mxu0 0
    %987 = vmatpush1.bf16.msra.mxu0 0
    %988 = vmatprep.subr.bf16.mxu0 0
    %989 = vmatpush1.bf16.msra.mxu0 0
    %990 = vmatprep.subr.bf16.mxu0 0
    %991 = vmatpush1.bf16.msra.mxu0 0
    %992 = vmatprep.subr.bf16.mxu0 0
    %993 = vmatpush1.bf16.msra.mxu0 0
    %994 = vmatprep.subr.bf16.mxu0 0
    %995 = vmatpush1.bf16.msra.mxu0 0
    %996 = vmatprep.subr.bf16.mxu0 0
    %997 = vmatpush1.bf16.msra.mxu0 0
    %998 = vmatprep.subr.bf16.mxu0 0
    %999 = vmatpush1.bf16.msra.mxu0 0
    %1000 = vmatprep.subr.bf16.mxu0 0
    %1001 = vmatpush1.bf16.msra.mxu0 %v984
    %1002 = vmatprep.subr.bf16.mxu0 0
    %1003 = vmatpush2.bf16.msra.mxu0 0
    %1004 = vmatprep.subr.bf16.mxu0 0
    %1005 = vmatpush2.bf16.msra.mxu0 0
    %1006 = vmatprep.subr.bf16.mxu0 0
    %1007 = vmatpush2.bf16.msra.mxu0 0
    %1008 = vmatprep.subr.bf16.mxu0 0
    %1009 = vmatpush2.bf16.msra.mxu0 0
    %1010 = vmatprep.subr.bf16.mxu0 0
    %1011 = vmatpush2.bf16.msra.mxu0 0
    %1012 = vmatprep.subr.bf16.mxu0 0
    %1013 = vmatpush2.bf16.msra.mxu0 0
    %1014 = vmatprep.subr.bf16.mxu0 0
    %1015 = vmatpush2.bf16.msra.mxu0 0
    %1016 = vmatprep.subr.bf16.mxu0 0
    %1017 = vmatpush2.bf16.msra.mxu0 0
    %1018 = vmatprep.mubr.bf16.mxu0 0
    %1019 = vmatmul.mubr.bf16.gmra.mxu0 %v981
    %v1020 = vpop.f32.mrf.mxu0
    %v1021 = vadd.f32 0.0, %v1020
    %v1022 = vpop.f32.mrf.mxu0
    %v1023 = vpop.f32.mrf.mxu0
    %v1024 = vpop.f32.mrf.mxu0
    %1025 = vdwg.mxu0
    %1026 = vrot.lane.b32.xlu0 %v233, 48
    %v1027 = vpop.permute.xlu0 %1026
    %v1029 = vsel %vm86, %v928, 0
    %v1032 = vsel %vm93, %v1027, 0
    %1034 = vmatprep.subr.bf16.mxu0 0
    %1035 = vmatpush1.bf16.msra.mxu0 0
    %1036 = vmatprep.subr.bf16.mxu0 0
    %1037 = vmatpush1.bf16.msra.mxu0 0
    %1038 = vmatprep.subr.bf16.mxu0 0
    %1039 = vmatpush1.bf16.msra.mxu0 0
    %1040 = vmatprep.subr.bf16.mxu0 0
    %1041 = vmatpush1.bf16.msra.mxu0 0
    %1042 = vmatprep.subr.bf16.mxu0 0
    %1043 = vmatpush1.bf16.msra.mxu0 0
    %1044 = vmatprep.subr.bf16.mxu0 0
    %1045 = vmatpush1.bf16.msra.mxu0 0
    %1046 = vmatprep.subr.bf16.mxu0 0
    %1047 = vmatpush1.bf16.msra.mxu0 0
    %1048 = vmatprep.subr.bf16.mxu0 0
    %1049 = vmatpush1.bf16.msra.mxu0 %v1032
    %1050 = vmatprep.subr.bf16.mxu0 0
    %1051 = vmatpush2.bf16.msra.mxu0 0
    %1052 = vmatprep.subr.bf16.mxu0 0
    %1053 = vmatpush2.bf16.msra.mxu0 0
    %1054 = vmatprep.subr.bf16.mxu0 0
    %1055 = vmatpush2.bf16.msra.mxu0 0
    %1056 = vmatprep.subr.bf16.mxu0 0
    %1057 = vmatpush2.bf16.msra.mxu0 0
    %1058 = vmatprep.subr.bf16.mxu0 0
    %1059 = vmatpush2.bf16.msra.mxu0 0
    %1060 = vmatprep.subr.bf16.mxu0 0
    %1061 = vmatpush2.bf16.msra.mxu0 0
    %1062 = vmatprep.subr.bf16.mxu0 0
    %1063 = vmatpush2.bf16.msra.mxu0 0
    %1064 = vmatprep.subr.bf16.mxu0 0
    %1065 = vmatpush2.bf16.msra.mxu0 0
    %1066 = vmatprep.mubr.bf16.mxu0 0
    %1067 = vmatmul.mubr.bf16.gmra.mxu0 %v1029
    %v1068 = vpop.f32.mrf.mxu0
    %v1069 = vadd.f32 0.0, %v1068
    %v1070 = vpop.f32.mrf.mxu0
    %v1071 = vpop.f32.mrf.mxu0
    %v1072 = vpop.f32.mrf.mxu0
    %1073 = vdwg.mxu0
    %1074 = vrot.lane.b32.xlu0 %v234, 48
    %v1075 = vpop.permute.xlu0 %1074
    %v1077 = vsel %vm86, %v929, 0
    %v1080 = vsel %vm93, %v1075, 0
    %1082 = vmatprep.subr.bf16.mxu0 0
    %1083 = vmatpush1.bf16.msra.mxu0 0
    %1084 = vmatprep.subr.bf16.mxu0 0
    %1085 = vmatpush1.bf16.msra.mxu0 0
    %1086 = vmatprep.subr.bf16.mxu0 0
    %1087 = vmatpush1.bf16.msra.mxu0 0
    %1088 = vmatprep.subr.bf16.mxu0 0
    %1089 = vmatpush1.bf16.msra.mxu0 0
    %1090 = vmatprep.subr.bf16.mxu0 0
    %1091 = vmatpush1.bf16.msra.mxu0 0
    %1092 = vmatprep.subr.bf16.mxu0 0
    %1093 = vmatpush1.bf16.msra.mxu0 0
    %1094 = vmatprep.subr.bf16.mxu0 0
    %1095 = vmatpush1.bf16.msra.mxu0 0
    %1096 = vmatprep.subr.bf16.mxu0 0
    %1097 = vmatpush1.bf16.msra.mxu0 %v1080
    %1098 = vmatprep.subr.bf16.mxu0 0
    %1099 = vmatpush2.bf16.msra.mxu0 0
    %1100 = vmatprep.subr.bf16.mxu0 0
    %1101 = vmatpush2.bf16.msra.mxu0 0
    %1102 = vmatprep.subr.bf16.mxu0 0
    %1103 = vmatpush2.bf16.msra.mxu0 0
    %1104 = vmatprep.subr.bf16.mxu0 0
    %1105 = vmatpush2.bf16.msra.mxu0 0
    %1106 = vmatprep.subr.bf16.mxu0 0
    %1107 = vmatpush2.bf16.msra.mxu0 0
    %1108 = vmatprep.subr.bf16.mxu0 0
    %1109 = vmatpush2.bf16.msra.mxu0 0
    %1110 = vmatprep.subr.bf16.mxu0 0
    %1111 = vmatpush2.bf16.msra.mxu0 0
    %1112 = vmatprep.subr.bf16.mxu0 0
    %1113 = vmatpush2.bf16.msra.mxu0 0
    %1114 = vmatprep.mubr.bf16.mxu0 0
    %1115 = vmatmul.mubr.bf16.gmra.mxu0 %v1077
    %v1116 = vpop.f32.mrf.mxu0
    %v1117 = vadd.f32 0.0, %v1116
    %v1118 = vpop.f32.mrf.mxu0
    %v1119 = vpop.f32.mrf.mxu0
    %v1120 = vpop.f32.mrf.mxu0
    %1121 = vdwg.mxu0
    %v1122 = vpack.c.bf16 %v1021, %v973
    %v1123 = vpack.c.bf16 %v1117, %v1069
    %v1126 = vunpack.c.l.b16 %v229
    %v1127 = vunpack.c.l.b16 %v230
    %v1128 = vpack.c.b16 %v1127, %v1126
    %v1131 = vsel %vm238, %v1122, 0
    %v1134 = vsel %vm238, %v1123, 0
    %1136 = vmatprep.subr.bf16.mxu0 0
    %1137 = vmatpush1.bf16.msra.mxu0 0
    %1138 = vmatprep.subr.bf16.mxu0 0
    %1139 = vmatpush1.bf16.msra.mxu0 0
    %1140 = vmatprep.subr.bf16.mxu0 0
    %1141 = vmatpush1.bf16.msra.mxu0 0
    %1142 = vmatprep.subr.bf16.mxu0 0
    %1143 = vmatpush1.bf16.msra.mxu0 0
    %1144 = vmatprep.subr.bf16.mxu0 0
    %1145 = vmatpush1.bf16.msra.mxu0 0
    %1146 = vmatprep.subr.bf16.mxu0 0
    %1147 = vmatpush1.bf16.msra.mxu0 0
    %1148 = vmatprep.subr.bf16.mxu0 0
    %1149 = vmatpush1.bf16.msra.mxu0 0
    %1150 = vmatprep.subr.bf16.mxu0 0
    %1151 = vmatpush1.bf16.msra.mxu0 %v1128
    %1152 = vmatprep.subr.bf16.mxu0 0
    %1153 = vmatpush2.bf16.msra.mxu0 0
    %1154 = vmatprep.subr.bf16.mxu0 0
    %1155 = vmatpush2.bf16.msra.mxu0 0
    %1156 = vmatprep.subr.bf16.mxu0 0
    %1157 = vmatpush2.bf16.msra.mxu0 0
    %1158 = vmatprep.subr.bf16.mxu0 0
    %1159 = vmatpush2.bf16.msra.mxu0 0
    %1160 = vmatprep.subr.bf16.mxu0 0
    %1161 = vmatpush2.bf16.msra.mxu0 0
    %1162 = vmatprep.subr.bf16.mxu0 0
    %1163 = vmatpush2.bf16.msra.mxu0 0
    %1164 = vmatprep.subr.bf16.mxu0 0
    %1165 = vmatpush2.bf16.msra.mxu0 0
    %1166 = vmatprep.subr.bf16.mxu0 0
    %1167 = vmatpush2.bf16.msra.mxu0 0
    %1168 = vmatprep.mubr.bf16.mxu0 0
    %1169 = vmatmul.mubr.bf16.gmra.mxu0 %v1131
    %v1170 = vpop.f32.mrf.mxu0
    %v1171 = vadd.f32 0.0, %v1170
    %v1172 = vpop.f32.mrf.mxu0
    %v1173 = vpop.f32.mrf.mxu0
    %v1174 = vadd.f32 0.0, %v1173
    %v1175 = vpop.f32.mrf.mxu0
    %1176 = vmatprep.mubr.bf16.mxu0 0
    %1177 = vmatmul.mubr.bf16.gmra.mxu0 %v1134
    %v1178 = vpop.f32.mrf.mxu0
    %v1179 = vadd.f32 0.0, %v1178
    %v1180 = vpop.f32.mrf.mxu0
    %v1181 = vpop.f32.mrf.mxu0
    %v1182 = vadd.f32 0.0, %v1181
    %v1183 = vpop.f32.mrf.mxu0
    %1184 = vdwg.mxu0
    %v1187 = vunpack.c.l.b16 %v227
    %v1188 = vunpack.c.l.b16 %v228
    %v1189 = vpack.c.b16 %v1188, %v1187
    %v1192 = vsel %vm238, %v676, 0
    %v1195 = vsel %vm238, %v677, 0
    %1197 = vmatprep.subr.bf16.mxu0 0
    %1198 = vmatpush1.bf16.msra.mxu0 0
    %1199 = vmatprep.subr.bf16.mxu0 0
    %1200 = vmatpush1.bf16.msra.mxu0 0
    %1201 = vmatprep.subr.bf16.mxu0 0
    %1202 = vmatpush1.bf16.msra.mxu0 0
    %1203 = vmatprep.subr.bf16.mxu0 0
    %1204 = vmatpush1.bf16.msra.mxu0 0
    %1205 = vmatprep.subr.bf16.mxu0 0
    %1206 = vmatpush1.bf16.msra.mxu0 0
    %1207 = vmatprep.subr.bf16.mxu0 0
    %1208 = vmatpush1.bf16.msra.mxu0 0
    %1209 = vmatprep.subr.bf16.mxu0 0
    %1210 = vmatpush1.bf16.msra.mxu0 0
    %1211 = vmatprep.subr.bf16.mxu0 0
    %1212 = vmatpush1.bf16.msra.mxu0 %v1189
    %1213 = vmatprep.subr.bf16.mxu0 0
    %1214 = vmatpush2.bf16.msra.mxu0 0
    %1215 = vmatprep.subr.bf16.mxu0 0
    %1216 = vmatpush2.bf16.msra.mxu0 0
    %1217 = vmatprep.subr.bf16.mxu0 0
    %1218 = vmatpush2.bf16.msra.mxu0 0
    %1219 = vmatprep.subr.bf16.mxu0 0
    %1220 = vmatpush2.bf16.msra.mxu0 0
    %1221 = vmatprep.subr.bf16.mxu0 0
    %1222 = vmatpush2.bf16.msra.mxu0 0
    %1223 = vmatprep.subr.bf16.mxu0 0
    %1224 = vmatpush2.bf16.msra.mxu0 0
    %1225 = vmatprep.subr.bf16.mxu0 0
    %1226 = vmatpush2.bf16.msra.mxu0 0
    %1227 = vmatprep.subr.bf16.mxu0 0
    %1228 = vmatpush2.bf16.msra.mxu0 0
    %1229 = vmatprep.mubr.bf16.mxu0 0
    %1230 = vmatmul.mubr.bf16.gmra.mxu0 %v1192
    %v1231 = vpop.f32.mrf.mxu0
    %v1232 = vadd.f32 %v1171, %v1231
    %v1233 = vpop.f32.mrf.mxu0
    %v1234 = vpop.f32.mrf.mxu0
    %v1235 = vadd.f32 %v1174, %v1234
    %v1236 = vpop.f32.mrf.mxu0
    %1237 = vmatprep.mubr.bf16.mxu0 0
    %1238 = vmatmul.mubr.bf16.gmra.mxu0 %v1195
    %v1239 = vpop.f32.mrf.mxu0
    %v1240 = vadd.f32 %v1179, %v1239
    %v1241 = vpop.f32.mrf.mxu0
    %v1242 = vpop.f32.mrf.mxu0
    %v1243 = vadd.f32 %v1182, %v1242
    %v1244 = vpop.f32.mrf.mxu0
    %1245 = vdwg.mxu0
    %v1246 = vld [vmem:[%s6] sm:$0x1]
    %v1248 = vlaneseq
    %v1249 = vshrl.u32 %v1248, 7
    %v1250 = vsub.s32 0, %v1249
    %v1251 = vrot.slane %v1246, %v1250
    %v1253 = vadd.f32 %v1232, %v1251
    %v1254 = vadd.f32 %v1235, %v1251
    %v1255 = vadd.f32 %v1240, %v1251
    %v1256 = vadd.f32 %v1243, %v1251
    %v1257 = vadd.f32 %v132, %v1253
    %v1258 = vadd.f32 %v135, %v1254
    %v1259 = vadd.f32 %v140, %v1255
    %v1260 = vadd.f32 %v143, %v1256
    %v1261 = vld [vmem:[%s11] sm:$0x1]
    %v1262 = vld [vmem:[%s12] sm:$0x1]
    %v1263 = vsel %vm171, %v1257, 0.0
    %1264 = vadd.xlane.f32.xlu0 %v1263
    %v1265 = vpop.xlane.xlu0 %1264
    %v1266 = vsel %vm171, %v1258, 0.0
    %1267 = vadd.xlane.f32.xlu0 %v1266
    %v1268 = vpop.xlane.xlu0 %1267
    %v1269 = vsel %vm171, %v1259, 0.0
    %1270 = vadd.xlane.f32.xlu0 %v1269
    %v1271 = vpop.xlane.xlu0 %1270
    %v1272 = vsel %vm171, %v1260, 0.0
    %1273 = vadd.xlane.f32.xlu0 %v1272
    %v1274 = vpop.xlane.xlu0 %1273
    %v1275 = vrcp.pop 32.0
    %v1276 = vmul.f32 %v1265, %v1275
    %v1277 = vmul.f32 %v1268, %v1275
    %v1278 = vmul.f32 %v1271, %v1275
    %v1279 = vmul.f32 %v1274, %v1275
    %v1280 = vmul.f32 %v1257, %v1257
    %v1281 = vmul.f32 %v1258, %v1258
    %v1282 = vmul.f32 %v1259, %v1259
    %v1283 = vmul.f32 %v1260, %v1260
    %v1284 = vsel %vm171, %v1280, 0.0
    %1285 = vadd.xlane.f32.xlu0 %v1284
    %v1286 = vpop.xlane.xlu0 %1285
    %v1287 = vsel %vm171, %v1281, 0.0
    %1288 = vadd.xlane.f32.xlu0 %v1287
    %v1289 = vpop.xlane.xlu0 %1288
    %v1290 = vsel %vm171, %v1282, 0.0
    %1291 = vadd.xlane.f32.xlu0 %v1290
    %v1292 = vpop.xlane.xlu0 %1291
    %v1293 = vsel %vm171, %v1283, 0.0
    %1294 = vadd.xlane.f32.xlu0 %v1293
    %v1295 = vpop.xlane.xlu0 %1294
    %v1296 = vmul.f32 %v1286, %v1275
    %v1297 = vmul.f32 %v1289, %v1275
    %v1298 = vmul.f32 %v1292, %v1275
    %v1299 = vmul.f32 %v1295, %v1275
    %v1300 = vmul.f32 %v1276, %v1276
    %v1301 = vmul.f32 %v1277, %v1277
    %v1302 = vmul.f32 %v1278, %v1278
    %v1303 = vmul.f32 %v1279, %v1279
    %v1304 = vsub.f32 %v1296, %v1300
    %v1305 = vsub.f32 %v1297, %v1301
    %v1306 = vsub.f32 %v1298, %v1302
    %v1307 = vsub.f32 %v1299, %v1303
    %v1308 = vsub.f32 %v1257, %v1276
    %v1309 = vsub.f32 %v1258, %v1277
    %v1310 = vsub.f32 %v1259, %v1278
    %v1311 = vsub.f32 %v1260, %v1279
    %v1312 = vadd.f32 %v1304, 1e-05
    %v1313 = vadd.f32 %v1305, 1e-05
    %v1314 = vadd.f32 %v1306, 1e-05
    %v1315 = vadd.f32 %v1307, 1e-05
    %v1316 = vrsqrt.pop %v1312
    %v1317 = vrsqrt.pop %v1313
    %v1318 = vrsqrt.pop %v1314
    %v1319 = vrsqrt.pop %v1315
    %v1320 = vmul.f32 %v1308, %v1316
    %v1321 = vmul.f32 %v1309, %v1317
    %v1322 = vmul.f32 %v1310, %v1318
    %v1323 = vmul.f32 %v1311, %v1319
    %v1325 = vlaneseq
    %v1326 = vshrl.u32 %v1325, 7
    %v1327 = vsub.s32 0, %v1326
    %v1328 = vrot.slane %v1261, %v1327
    %v1330 = vmul.f32 %v1320, %v1328
    %v1331 = vmul.f32 %v1321, %v1328
    %v1332 = vmul.f32 %v1322, %v1328
    %v1333 = vmul.f32 %v1323, %v1328
    %v1335 = vlaneseq
    %v1336 = vshrl.u32 %v1335, 7
    %v1337 = vsub.s32 0, %v1336
    %v1338 = vrot.slane %v1262, %v1337
    %v1340 = vadd.f32 %v1330, %v1338
    %v1341 = vadd.f32 %v1331, %v1338
    %v1342 = vadd.f32 %v1332, %v1338
    %v1343 = vadd.f32 %v1333, %v1338
    %v1344 = vld [vmem:[%s7] sm:$0xf]
    %v1345 = vld [vmem:[%s7 + $0x4] sm:$0xf]
    %v1346 = vld [vmem:[%s7 + $0x8] sm:$0xf]
    %v1347 = vld [vmem:[%s7 + $0xc] sm:$0xf]
    %v1348 = vpack.c.bf16 %v1341, %v1340
    %v1349 = vpack.c.bf16 %v1343, %v1342
    %v1350 = vld [vmem:[%s8] sm:$0x1]
    %v1352 = vlaneseq
    %v1353 = vshrl.u32 %v1352, 7
    %v1354 = vsub.s32 0, %v1353
    %v1355 = vrot.slane %v1350, %v1354
    %v1361 = vunpack.c.l.b16 %v1344
    %v1362 = vunpack.c.l.b16 %v1345
    %v1363 = vunpack.c.l.b16 %v1346
    %v1364 = vunpack.c.l.b16 %v1347
    %v1365 = vpack.c.b16 %v1362, %v1361
    %v1366 = vpack.c.b16 %v1364, %v1363
    %v1370 = vsel %vm171, %v1348, 0
    %v1373 = vsel %vm171, %v1349, 0
    %1375 = vmatprep.subr.bf16.mxu0 0
    %1376 = vmatpush1.bf16.msra.mxu0 0
    %1377 = vmatprep.subr.bf16.mxu0 0
    %1378 = vmatpush1.bf16.msra.mxu0 0
    %1379 = vmatprep.subr.bf16.mxu0 0
    %1380 = vmatpush1.bf16.msra.mxu0 0
    %1381 = vmatprep.subr.bf16.mxu0 0
    %1382 = vmatpush1.bf16.msra.mxu0 0
    %1383 = vmatprep.subr.bf16.mxu0 0
    %1384 = vmatpush1.bf16.msra.mxu0 0
    %1385 = vmatprep.subr.bf16.mxu0 0
    %1386 = vmatpush1.bf16.msra.mxu0 0
    %1387 = vmatprep.subr.bf16.mxu0 0
    %1388 = vmatpush1.bf16.msra.mxu0 %v1366
    %1389 = vmatprep.subr.bf16.mxu0 0
    %1390 = vmatpush1.bf16.msra.mxu0 %v1365
    %1391 = vmatprep.subr.bf16.mxu0 0
    %1392 = vmatpush2.bf16.msra.mxu0 0
    %1393 = vmatprep.subr.bf16.mxu0 0
    %1394 = vmatpush2.bf16.msra.mxu0 0
    %1395 = vmatprep.subr.bf16.mxu0 0
    %1396 = vmatpush2.bf16.msra.mxu0 0
    %1397 = vmatprep.subr.bf16.mxu0 0
    %1398 = vmatpush2.bf16.msra.mxu0 0
    %1399 = vmatprep.subr.bf16.mxu0 0
    %1400 = vmatpush2.bf16.msra.mxu0 0
    %1401 = vmatprep.subr.bf16.mxu0 0
    %1402 = vmatpush2.bf16.msra.mxu0 0
    %1403 = vmatprep.subr.bf16.mxu0 0
    %1404 = vmatpush2.bf16.msra.mxu0 0
    %1405 = vmatprep.subr.bf16.mxu0 0
    %1406 = vmatpush2.bf16.msra.mxu0 0
    %1407 = vmatprep.mubr.bf16.mxu0 0
    %1408 = vmatmul.mubr.bf16.gmra.mxu0 %v1370
    %v1409 = vpop.f32.mrf.mxu0
    %v1410 = vadd.f32 %v1355, %v1409
    %v1411 = vpop.f32.mrf.mxu0
    %v1412 = vpop.f32.mrf.mxu0
    %v1413 = vadd.f32 %v1355, %v1412
    %v1414 = vpop.f32.mrf.mxu0
    %1415 = vmatprep.mubr.bf16.mxu0 0
    %1416 = vmatmul.mubr.bf16.gmra.mxu0 %v1373
    %v1417 = vpop.f32.mrf.mxu0
    %v1418 = vadd.f32 %v1355, %v1417
    %v1419 = vpop.f32.mrf.mxu0
    %v1420 = vpop.f32.mrf.mxu0
    %v1421 = vadd.f32 %v1355, %v1420
    %v1422 = vpop.f32.mrf.mxu0
    %1423 = vdwg.mxu0
    %v1424 = vmax.f32 %v1410, 0.0
    %v1425 = vmax.f32 %v1413, 0.0
    %v1426 = vmax.f32 %v1418, 0.0
    %v1427 = vmax.f32 %v1421, 0.0
    %v1428 = vld [vmem:[%s9] sm:$0xf]
    %v1429 = vld [vmem:[%s9 + $0x4] sm:$0xf]
    %v1430 = vld [vmem:[%s9 + $0x8] sm:$0xf]
    %v1431 = vld [vmem:[%s9 + $0xc] sm:$0xf]
    %v1432 = vld [vmem:[%s9 + $0x10] sm:$0xf]
    %v1433 = vld [vmem:[%s9 + $0x14] sm:$0xf]
    %v1434 = vld [vmem:[%s9 + $0x18] sm:$0xf]
    %v1435 = vld [vmem:[%s9 + $0x1c] sm:$0xf]
    %v1436 = vld [vmem:[%s9 + $0x20] sm:$0xf]
    %v1437 = vld [vmem:[%s9 + $0x24] sm:$0xf]
    %v1438 = vld [vmem:[%s9 + $0x28] sm:$0xf]
    %v1439 = vld [vmem:[%s9 + $0x2c] sm:$0xf]
    %v1440 = vld [vmem:[%s9 + $0x30] sm:$0xf]
    %v1441 = vld [vmem:[%s9 + $0x34] sm:$0xf]
    %v1442 = vld [vmem:[%s9 + $0x38] sm:$0xf]
    %v1443 = vld [vmem:[%s9 + $0x3c] sm:$0xf]
    %v1444 = vpack.c.bf16 %v1425, %v1424
    %v1445 = vpack.c.bf16 %v1427, %v1426
    %v1446 = vld [vmem:[%s10] sm:$0x1]
    %v1448 = vlaneseq
    %v1449 = vshrl.u32 %v1448, 7
    %v1450 = vsub.s32 0, %v1449
    %v1451 = vrot.slane %v1446, %v1450
    %v1469 = vunpack.c.l.b16 %v1428
    %v1470 = vunpack.c.l.b16 %v1429
    %v1471 = vunpack.c.l.b16 %v1430
    %v1472 = vunpack.c.l.b16 %v1431
    %v1473 = vunpack.c.l.b16 %v1432
    %v1474 = vunpack.c.l.b16 %v1433
    %v1475 = vunpack.c.l.b16 %v1434
    %v1476 = vunpack.c.l.b16 %v1435
    %v1477 = vunpack.c.l.b16 %v1436
    %v1478 = vunpack.c.l.b16 %v1437
    %v1479 = vunpack.c.l.b16 %v1438
    %v1480 = vunpack.c.l.b16 %v1439
    %v1481 = vunpack.c.l.b16 %v1440
    %v1482 = vunpack.c.l.b16 %v1441
    %v1483 = vunpack.c.l.b16 %v1442
    %v1484 = vunpack.c.l.b16 %v1443
    %v1485 = vpack.c.b16 %v1470, %v1469
    %v1486 = vpack.c.b16 %v1472, %v1471
    %v1487 = vpack.c.b16 %v1474, %v1473
    %v1488 = vpack.c.b16 %v1476, %v1475
    %v1489 = vpack.c.b16 %v1478, %v1477
    %v1490 = vpack.c.b16 %v1480, %v1479
    %v1491 = vpack.c.b16 %v1482, %v1481
    %v1492 = vpack.c.b16 %v1484, %v1483
    %1501 = vmatprep.subr.bf16.mxu0 0
    %1502 = vmatpush1.bf16.msra.mxu0 %v1492
    %1503 = vmatprep.subr.bf16.mxu0 0
    %1504 = vmatpush1.bf16.msra.mxu0 %v1491
    %1505 = vmatprep.subr.bf16.mxu0 0
    %1506 = vmatpush1.bf16.msra.mxu0 %v1490
    %1507 = vmatprep.subr.bf16.mxu0 0
    %1508 = vmatpush1.bf16.msra.mxu0 %v1489
    %1509 = vmatprep.subr.bf16.mxu0 0
    %1510 = vmatpush1.bf16.msra.mxu0 %v1488
    %1511 = vmatprep.subr.bf16.mxu0 0
    %1512 = vmatpush1.bf16.msra.mxu0 %v1487
    %1513 = vmatprep.subr.bf16.mxu0 0
    %1514 = vmatpush1.bf16.msra.mxu0 %v1486
    %1515 = vmatprep.subr.bf16.mxu0 0
    %1516 = vmatpush1.bf16.msra.mxu0 %v1485
    %1517 = vmatprep.subr.bf16.mxu0 0
    %1518 = vmatpush2.bf16.msra.mxu0 0
    %1519 = vmatprep.subr.bf16.mxu0 0
    %1520 = vmatpush2.bf16.msra.mxu0 0
    %1521 = vmatprep.subr.bf16.mxu0 0
    %1522 = vmatpush2.bf16.msra.mxu0 0
    %1523 = vmatprep.subr.bf16.mxu0 0
    %1524 = vmatpush2.bf16.msra.mxu0 0
    %1525 = vmatprep.subr.bf16.mxu0 0
    %1526 = vmatpush2.bf16.msra.mxu0 0
    %1527 = vmatprep.subr.bf16.mxu0 0
    %1528 = vmatpush2.bf16.msra.mxu0 0
    %1529 = vmatprep.subr.bf16.mxu0 0
    %1530 = vmatpush2.bf16.msra.mxu0 0
    %1531 = vmatprep.subr.bf16.mxu0 0
    %1532 = vmatpush2.bf16.msra.mxu0 0
    %1533 = vmatprep.mubr.bf16.mxu0 0
    %1534 = vmatmul.mubr.bf16.gmra.mxu0 %v1444
    %v1535 = vpop.f32.mrf.mxu0
    %v1536 = vadd.f32 %v1451, %v1535
    %v1537 = vpop.f32.mrf.mxu0
    %v1538 = vpop.f32.mrf.mxu0
    %v1539 = vadd.f32 %v1451, %v1538
    %v1540 = vpop.f32.mrf.mxu0
    %1541 = vmatprep.mubr.bf16.mxu0 0
    %1542 = vmatmul.mubr.bf16.gmra.mxu0 %v1445
    %v1543 = vpop.f32.mrf.mxu0
    %v1544 = vadd.f32 %v1451, %v1543
    %v1545 = vpop.f32.mrf.mxu0
    %v1546 = vpop.f32.mrf.mxu0
    %v1547 = vadd.f32 %v1451, %v1546
    %v1548 = vpop.f32.mrf.mxu0
    %1549 = vdwg.mxu0
    %v1550 = vadd.f32 %v1340, %v1536
    %v1551 = vadd.f32 %v1341, %v1539
    %v1552 = vadd.f32 %v1342, %v1544
    %v1553 = vadd.f32 %v1343, %v1547
    %v1554 = vld [vmem:[%s13] sm:$0x1]
    %v1555 = vld [vmem:[%s14] sm:$0x1]
    %v1556 = vsel %vm171, %v1550, 0.0
    %1557 = vadd.xlane.f32.xlu0 %v1556
    %v1558 = vpop.xlane.xlu0 %1557
    %v1559 = vsel %vm171, %v1551, 0.0
    %1560 = vadd.xlane.f32.xlu0 %v1559
    %v1561 = vpop.xlane.xlu0 %1560
    %v1562 = vsel %vm171, %v1552, 0.0
    %1563 = vadd.xlane.f32.xlu0 %v1562
    %v1564 = vpop.xlane.xlu0 %1563
    %v1565 = vsel %vm171, %v1553, 0.0
    %1566 = vadd.xlane.f32.xlu0 %v1565
    %v1567 = vpop.xlane.xlu0 %1566
    %v1568 = vmul.f32 %v1558, %v1275
    %v1569 = vmul.f32 %v1561, %v1275
    %v1570 = vmul.f32 %v1564, %v1275
    %v1571 = vmul.f32 %v1567, %v1275
    %v1572 = vmul.f32 %v1550, %v1550
    %v1573 = vmul.f32 %v1551, %v1551
    %v1574 = vmul.f32 %v1552, %v1552
    %v1575 = vmul.f32 %v1553, %v1553
    %v1576 = vsel %vm171, %v1572, 0.0
    %1577 = vadd.xlane.f32.xlu0 %v1576
    %v1578 = vpop.xlane.xlu0 %1577
    %v1579 = vsel %vm171, %v1573, 0.0
    %1580 = vadd.xlane.f32.xlu0 %v1579
    %v1581 = vpop.xlane.xlu0 %1580
    %v1582 = vsel %vm171, %v1574, 0.0
    %1583 = vadd.xlane.f32.xlu0 %v1582
    %v1584 = vpop.xlane.xlu0 %1583
    %v1585 = vsel %vm171, %v1575, 0.0
    %1586 = vadd.xlane.f32.xlu0 %v1585
    %v1587 = vpop.xlane.xlu0 %1586
    %v1588 = vmul.f32 %v1578, %v1275
    %v1589 = vmul.f32 %v1581, %v1275
    %v1590 = vmul.f32 %v1584, %v1275
    %v1591 = vmul.f32 %v1587, %v1275
    %v1592 = vmul.f32 %v1568, %v1568
    %v1593 = vmul.f32 %v1569, %v1569
    %v1594 = vmul.f32 %v1570, %v1570
    %v1595 = vmul.f32 %v1571, %v1571
    %v1596 = vsub.f32 %v1588, %v1592
    %v1597 = vsub.f32 %v1589, %v1593
    %v1598 = vsub.f32 %v1590, %v1594
    %v1599 = vsub.f32 %v1591, %v1595
    %v1600 = vsub.f32 %v1550, %v1568
    %v1601 = vsub.f32 %v1551, %v1569
    %v1602 = vsub.f32 %v1552, %v1570
    %v1603 = vsub.f32 %v1553, %v1571
    %v1604 = vadd.f32 %v1596, 1e-05
    %v1605 = vadd.f32 %v1597, 1e-05
    %v1606 = vadd.f32 %v1598, 1e-05
    %v1607 = vadd.f32 %v1599, 1e-05
    %v1608 = vrsqrt.pop %v1604
    %v1609 = vrsqrt.pop %v1605
    %v1610 = vrsqrt.pop %v1606
    %v1611 = vrsqrt.pop %v1607
    %v1612 = vmul.f32 %v1600, %v1608
    %v1613 = vmul.f32 %v1601, %v1609
    %v1614 = vmul.f32 %v1602, %v1610
    %v1615 = vmul.f32 %v1603, %v1611
    %v1617 = vlaneseq
    %v1618 = vshrl.u32 %v1617, 7
    %v1619 = vsub.s32 0, %v1618
    %v1620 = vrot.slane %v1554, %v1619
    %v1622 = vmul.f32 %v1612, %v1620
    %v1623 = vmul.f32 %v1613, %v1620
    %v1624 = vmul.f32 %v1614, %v1620
    %v1625 = vmul.f32 %v1615, %v1620
    %v1627 = vlaneseq
    %v1628 = vshrl.u32 %v1627, 7
    %v1629 = vsub.s32 0, %v1628
    %v1630 = vrot.slane %v1555, %v1629
    %v1632 = vadd.f32 %v1622, %v1630
    %v1633 = vadd.f32 %v1623, %v1630
    %v1634 = vadd.f32 %v1624, %v1630
    %v1635 = vadd.f32 %v1625, %v1630
    %s1636 = scalar_lea.vmem %s3, 16
    %v1637 = vld [vmem:[%s1636] sm:$0xf]
    %v1638 = vld [vmem:[%s1636 + $0x4] sm:$0xf]
    %v1639 = vld [vmem:[%s1636 + $0x8] sm:$0xf]
    %v1640 = vld [vmem:[%s1636 + $0xc] sm:$0xf]
    %v1641 = vpack.c.bf16 %v1633, %v1632
    %v1642 = vpack.c.bf16 %v1635, %v1634
    %s1643 = scalar_lea.vmem %s4, 1
    %v1644 = vld [vmem:[%s1643] sm:$0x1]
    %v1646 = vlaneseq
    %v1647 = vshrl.u32 %v1646, 7
    %v1648 = vsub.s32 0, %v1647
    %v1649 = vrot.slane %v1644, %v1648
    %v1655 = vunpack.c.l.b16 %v1637
    %v1656 = vunpack.c.l.b16 %v1638
    %v1657 = vunpack.c.l.b16 %v1639
    %v1658 = vunpack.c.l.b16 %v1640
    %v1659 = vpack.c.b16 %v1656, %v1655
    %v1660 = vpack.c.b16 %v1658, %v1657
    %v1664 = vsel %vm171, %v1641, 0
    %v1667 = vsel %vm171, %v1642, 0
    %1669 = vmatprep.subr.bf16.mxu0 0
    %1670 = vmatpush1.bf16.msra.mxu0 0
    %1671 = vmatprep.subr.bf16.mxu0 0
    %1672 = vmatpush1.bf16.msra.mxu0 0
    %1673 = vmatprep.subr.bf16.mxu0 0
    %1674 = vmatpush1.bf16.msra.mxu0 0
    %1675 = vmatprep.subr.bf16.mxu0 0
    %1676 = vmatpush1.bf16.msra.mxu0 0
    %1677 = vmatprep.subr.bf16.mxu0 0
    %1678 = vmatpush1.bf16.msra.mxu0 0
    %1679 = vmatprep.subr.bf16.mxu0 0
    %1680 = vmatpush1.bf16.msra.mxu0 0
    %1681 = vmatprep.subr.bf16.mxu0 0
    %1682 = vmatpush1.bf16.msra.mxu0 %v1660
    %1683 = vmatprep.subr.bf16.mxu0 0
    %1684 = vmatpush1.bf16.msra.mxu0 %v1659
    %1685 = vmatprep.subr.bf16.mxu0 0
    %1686 = vmatpush2.bf16.msra.mxu0 0
    %1687 = vmatprep.subr.bf16.mxu0 0
    %1688 = vmatpush2.bf16.msra.mxu0 0
    %1689 = vmatprep.subr.bf16.mxu0 0
    %1690 = vmatpush2.bf16.msra.mxu0 0
    %1691 = vmatprep.subr.bf16.mxu0 0
    %1692 = vmatpush2.bf16.msra.mxu0 0
    %1693 = vmatprep.subr.bf16.mxu0 0
    %1694 = vmatpush2.bf16.msra.mxu0 0
    %1695 = vmatprep.subr.bf16.mxu0 0
    %1696 = vmatpush2.bf16.msra.mxu0 0
    %1697 = vmatprep.subr.bf16.mxu0 0
    %1698 = vmatpush2.bf16.msra.mxu0 0
    %1699 = vmatprep.subr.bf16.mxu0 0
    %1700 = vmatpush2.bf16.msra.mxu0 0
    %1701 = vmatprep.mubr.bf16.mxu0 0
    %1702 = vmatmul.mubr.bf16.gmra.mxu0 %v1664
    %v1703 = vpop.f32.mrf.mxu0
    %v1704 = vadd.f32 %v1649, %v1703
    %v1705 = vpop.f32.mrf.mxu0
    %v1706 = vpop.f32.mrf.mxu0
    %v1707 = vadd.f32 %v1649, %v1706
    %v1708 = vpop.f32.mrf.mxu0
    %1709 = vmatprep.mubr.bf16.mxu0 0
    %1710 = vmatmul.mubr.bf16.gmra.mxu0 %v1667
    %v1711 = vpop.f32.mrf.mxu0
    %v1712 = vadd.f32 %v1649, %v1711
    %v1713 = vpop.f32.mrf.mxu0
    %v1714 = vpop.f32.mrf.mxu0
    %v1715 = vadd.f32 %v1649, %v1714
    %v1716 = vpop.f32.mrf.mxu0
    %1717 = vdwg.mxu0
    %s1718 = scalar_lea.vmem %s5, 16
    %v1719 = vld [vmem:[%s1718] sm:$0xf]
    %v1720 = vld [vmem:[%s1718 + $0x4] sm:$0xf]
    %v1721 = vld [vmem:[%s1718 + $0x8] sm:$0xf]
    %v1722 = vld [vmem:[%s1718 + $0xc] sm:$0xf]
    %v1723 = vpack.c.bf16 %v1704, %v1704
    %v1724 = vpack.c.bf16 %v1707, %v1707
    %v1725 = vpack.c.bf16 %v1712, %v1712
    %v1726 = vpack.c.bf16 %v1715, %v1715
    %1728 = vrot.lane.b32.xlu0 %v1723, 96
    %v1729 = vpop.permute.xlu0 %1728
    %v1731 = vsel %vm238, %v1723, 0
    %v1734 = vsel %vm238, %v1729, 0
    %1736 = vmatprep.subr.bf16.mxu0 0
    %1737 = vmatpush1.bf16.xpose.msra.mxu0 0
    %1738 = vmatprep.subr.bf16.mxu0 0
    %1739 = vmatpush1.bf16.xpose.msra.mxu0 0
    %1740 = vmatprep.subr.bf16.mxu0 0
    %1741 = vmatpush1.bf16.xpose.msra.mxu0 0
    %1742 = vmatprep.subr.bf16.mxu0 0
    %1743 = vmatpush1.bf16.xpose.msra.mxu0 0
    %1744 = vmatprep.subr.bf16.mxu0 0
    %1745 = vmatpush1.bf16.xpose.msra.mxu0 0
    %1746 = vmatprep.subr.bf16.mxu0 0
    %1747 = vmatpush1.bf16.xpose.msra.mxu0 0
    %1748 = vmatprep.subr.bf16.mxu0 0
    %1749 = vmatpush1.bf16.xpose.msra.mxu0 0
    %1750 = vmatprep.subr.bf16.mxu0 0
    %1751 = vmatpush1.bf16.xpose.msra.mxu0 %v1734
    %1752 = vmatprep.subr.bf16.mxu0 0
    %1753 = vmatpush2.bf16.xpose.msra.mxu0 0
    %1754 = vmatprep.subr.bf16.mxu0 0
    %1755 = vmatpush2.bf16.xpose.msra.mxu0 0
    %1756 = vmatprep.subr.bf16.mxu0 0
    %1757 = vmatpush2.bf16.xpose.msra.mxu0 0
    %1758 = vmatprep.subr.bf16.mxu0 0
    %1759 = vmatpush2.bf16.xpose.msra.mxu0 0
    %1760 = vmatprep.subr.bf16.mxu0 0
    %1761 = vmatpush2.bf16.xpose.msra.mxu0 0
    %1762 = vmatprep.subr.bf16.mxu0 0
    %1763 = vmatpush2.bf16.xpose.msra.mxu0 0
    %1764 = vmatprep.subr.bf16.mxu0 0
    %1765 = vmatpush2.bf16.xpose.msra.mxu0 0
    %1766 = vmatprep.subr.bf16.mxu0 0
    %1767 = vmatpush2.bf16.xpose.msra.mxu0 0
    %1768 = vmatprep.mubr.bf16.mxu0 0
    %1769 = vmatmul.mubr.bf16.gmra.mxu0 %v1731
    %v1770 = vpop.f32.mrf.mxu0
    %v1771 = vadd.f32 0.0, %v1770
    %v1772 = vpop.f32.mrf.mxu0
    %v1773 = vpop.f32.mrf.mxu0
    %v1774 = vpop.f32.mrf.mxu0
    %1775 = vdwg.mxu0
    %1777 = vrot.lane.b32.xlu0 %v1724, 96
    %v1778 = vpop.permute.xlu0 %1777
    %v1780 = vsel %vm238, %v1724, 0
    %v1783 = vsel %vm238, %v1778, 0
    %1785 = vmatprep.subr.bf16.mxu0 0
    %1786 = vmatpush1.bf16.xpose.msra.mxu0 0
    %1787 = vmatprep.subr.bf16.mxu0 0
    %1788 = vmatpush1.bf16.xpose.msra.mxu0 0
    %1789 = vmatprep.subr.bf16.mxu0 0
    %1790 = vmatpush1.bf16.xpose.msra.mxu0 0
    %1791 = vmatprep.subr.bf16.mxu0 0
    %1792 = vmatpush1.bf16.xpose.msra.mxu0 0
    %1793 = vmatprep.subr.bf16.mxu0 0
    %1794 = vmatpush1.bf16.xpose.msra.mxu0 0
    %1795 = vmatprep.subr.bf16.mxu0 0
    %1796 = vmatpush1.bf16.xpose.msra.mxu0 0
    %1797 = vmatprep.subr.bf16.mxu0 0
    %1798 = vmatpush1.bf16.xpose.msra.mxu0 0
    %1799 = vmatprep.subr.bf16.mxu0 0
    %1800 = vmatpush1.bf16.xpose.msra.mxu0 %v1783
    %1801 = vmatprep.subr.bf16.mxu0 0
    %1802 = vmatpush2.bf16.xpose.msra.mxu0 0
    %1803 = vmatprep.subr.bf16.mxu0 0
    %1804 = vmatpush2.bf16.xpose.msra.mxu0 0
    %1805 = vmatprep.subr.bf16.mxu0 0
    %1806 = vmatpush2.bf16.xpose.msra.mxu0 0
    %1807 = vmatprep.subr.bf16.mxu0 0
    %1808 = vmatpush2.bf16.xpose.msra.mxu0 0
    %1809 = vmatprep.subr.bf16.mxu0 0
    %1810 = vmatpush2.bf16.xpose.msra.mxu0 0
    %1811 = vmatprep.subr.bf16.mxu0 0
    %1812 = vmatpush2.bf16.xpose.msra.mxu0 0
    %1813 = vmatprep.subr.bf16.mxu0 0
    %1814 = vmatpush2.bf16.xpose.msra.mxu0 0
    %1815 = vmatprep.subr.bf16.mxu0 0
    %1816 = vmatpush2.bf16.xpose.msra.mxu0 0
    %1817 = vmatprep.mubr.bf16.mxu0 0
    %1818 = vmatmul.mubr.bf16.gmra.mxu0 %v1780
    %v1819 = vpop.f32.mrf.mxu0
    %v1820 = vadd.f32 0.0, %v1819
    %v1821 = vpop.f32.mrf.mxu0
    %v1822 = vpop.f32.mrf.mxu0
    %v1823 = vpop.f32.mrf.mxu0
    %1824 = vdwg.mxu0
    %1826 = vrot.lane.b32.xlu0 %v1725, 96
    %v1827 = vpop.permute.xlu0 %1826
    %v1829 = vsel %vm238, %v1725, 0
    %v1832 = vsel %vm238, %v1827, 0
    %1834 = vmatprep.subr.bf16.mxu0 0
    %1835 = vmatpush1.bf16.xpose.msra.mxu0 0
    %1836 = vmatprep.subr.bf16.mxu0 0
    %1837 = vmatpush1.bf16.xpose.msra.mxu0 0
    %1838 = vmatprep.subr.bf16.mxu0 0
    %1839 = vmatpush1.bf16.xpose.msra.mxu0 0
    %1840 = vmatprep.subr.bf16.mxu0 0
    %1841 = vmatpush1.bf16.xpose.msra.mxu0 0
    %1842 = vmatprep.subr.bf16.mxu0 0
    %1843 = vmatpush1.bf16.xpose.msra.mxu0 0
    %1844 = vmatprep.subr.bf16.mxu0 0
    %1845 = vmatpush1.bf16.xpose.msra.mxu0 0
    %1846 = vmatprep.subr.bf16.mxu0 0
    %1847 = vmatpush1.bf16.xpose.msra.mxu0 0
    %1848 = vmatprep.subr.bf16.mxu0 0
    %1849 = vmatpush1.bf16.xpose.msra.mxu0 %v1832
    %1850 = vmatprep.subr.bf16.mxu0 0
    %1851 = vmatpush2.bf16.xpose.msra.mxu0 0
    %1852 = vmatprep.subr.bf16.mxu0 0
    %1853 = vmatpush2.bf16.xpose.msra.mxu0 0
    %1854 = vmatprep.subr.bf16.mxu0 0
    %1855 = vmatpush2.bf16.xpose.msra.mxu0 0
    %1856 = vmatprep.subr.bf16.mxu0 0
    %1857 = vmatpush2.bf16.xpose.msra.mxu0 0
    %1858 = vmatprep.subr.bf16.mxu0 0
    %1859 = vmatpush2.bf16.xpose.msra.mxu0 0
    %1860 = vmatprep.subr.bf16.mxu0 0
    %1861 = vmatpush2.bf16.xpose.msra.mxu0 0
    %1862 = vmatprep.subr.bf16.mxu0 0
    %1863 = vmatpush2.bf16.xpose.msra.mxu0 0
    %1864 = vmatprep.subr.bf16.mxu0 0
    %1865 = vmatpush2.bf16.xpose.msra.mxu0 0
    %1866 = vmatprep.mubr.bf16.mxu0 0
    %1867 = vmatmul.mubr.bf16.gmra.mxu0 %v1829
    %v1868 = vpop.f32.mrf.mxu0
    %v1869 = vadd.f32 0.0, %v1868
    %v1870 = vpop.f32.mrf.mxu0
    %v1871 = vpop.f32.mrf.mxu0
    %v1872 = vpop.f32.mrf.mxu0
    %1873 = vdwg.mxu0
    %1875 = vrot.lane.b32.xlu0 %v1726, 96
    %v1876 = vpop.permute.xlu0 %1875
    %v1878 = vsel %vm238, %v1726, 0
    %v1881 = vsel %vm238, %v1876, 0
    %1883 = vmatprep.subr.bf16.mxu0 0
    %1884 = vmatpush1.bf16.xpose.msra.mxu0 0
    %1885 = vmatprep.subr.bf16.mxu0 0
    %1886 = vmatpush1.bf16.xpose.msra.mxu0 0
    %1887 = vmatprep.subr.bf16.mxu0 0
    %1888 = vmatpush1.bf16.xpose.msra.mxu0 0
    %1889 = vmatprep.subr.bf16.mxu0 0
    %1890 = vmatpush1.bf16.xpose.msra.mxu0 0
    %1891 = vmatprep.subr.bf16.mxu0 0
    %1892 = vmatpush1.bf16.xpose.msra.mxu0 0
    %1893 = vmatprep.subr.bf16.mxu0 0
    %1894 = vmatpush1.bf16.xpose.msra.mxu0 0
    %1895 = vmatprep.subr.bf16.mxu0 0
    %1896 = vmatpush1.bf16.xpose.msra.mxu0 0
    %1897 = vmatprep.subr.bf16.mxu0 0
    %1898 = vmatpush1.bf16.xpose.msra.mxu0 %v1881
    %1899 = vmatprep.subr.bf16.mxu0 0
    %1900 = vmatpush2.bf16.xpose.msra.mxu0 0
    %1901 = vmatprep.subr.bf16.mxu0 0
    %1902 = vmatpush2.bf16.xpose.msra.mxu0 0
    %1903 = vmatprep.subr.bf16.mxu0 0
    %1904 = vmatpush2.bf16.xpose.msra.mxu0 0
    %1905 = vmatprep.subr.bf16.mxu0 0
    %1906 = vmatpush2.bf16.xpose.msra.mxu0 0
    %1907 = vmatprep.subr.bf16.mxu0 0
    %1908 = vmatpush2.bf16.xpose.msra.mxu0 0
    %1909 = vmatprep.subr.bf16.mxu0 0
    %1910 = vmatpush2.bf16.xpose.msra.mxu0 0
    %1911 = vmatprep.subr.bf16.mxu0 0
    %1912 = vmatpush2.bf16.xpose.msra.mxu0 0
    %1913 = vmatprep.subr.bf16.mxu0 0
    %1914 = vmatpush2.bf16.xpose.msra.mxu0 0
    %1915 = vmatprep.mubr.bf16.mxu0 0
    %1916 = vmatmul.mubr.bf16.gmra.mxu0 %v1878
    %v1917 = vpop.f32.mrf.mxu0
    %v1918 = vadd.f32 0.0, %v1917
    %v1919 = vpop.f32.mrf.mxu0
    %v1920 = vpop.f32.mrf.mxu0
    %v1921 = vpop.f32.mrf.mxu0
    %1922 = vdwg.mxu0
    %v1923 = vmul.f32 %v1771, 0.25
    %v1924 = vmul.f32 %v1820, 0.25
    %v1925 = vmul.f32 %v1869, 0.25
    %v1926 = vmul.f32 %v1918, 0.25
    %v1927 = vsel %vm86, %v1923, -inf
    %1928 = vmax.xlane.f32.xlu0 %v1927
    %v1929 = vpop.xlane.xlu0 %1928
    %v1930 = vsel %vm86, %v1924, -inf
    %1931 = vmax.xlane.f32.xlu0 %v1930
    %v1932 = vpop.xlane.xlu0 %1931
    %v1933 = vsel %vm86, %v1925, -inf
    %1934 = vmax.xlane.f32.xlu0 %v1933
    %v1935 = vpop.xlane.xlu0 %1934
    %v1936 = vsel %vm86, %v1926, -inf
    %1937 = vmax.xlane.f32.xlu0 %v1936
    %v1938 = vpop.xlane.xlu0 %1937
    %v1939 = vsub.f32 %v1923, %v1929
    %v1940 = vsub.f32 %v1924, %v1932
    %v1941 = vsub.f32 %v1925, %v1935
    %v1942 = vsub.f32 %v1926, %v1938
    %v1943 = vmul.f32 %v1939, 1.442695
    %v1944 = vpow.pop %v1943
    %v1945 = vmul.f32 %v1940, 1.442695
    %v1946 = vpow.pop %v1945
    %v1947 = vmul.f32 %v1941, 1.442695
    %v1948 = vpow.pop %v1947
    %v1949 = vmul.f32 %v1942, 1.442695
    %v1950 = vpow.pop %v1949
    %v1951 = vsel %vm86, %v1944, 0.0
    %1952 = vadd.xlane.f32.xlu0 %v1951
    %v1953 = vpop.xlane.xlu0 %1952
    %v1954 = vsel %vm86, %v1946, 0.0
    %1955 = vadd.xlane.f32.xlu0 %v1954
    %v1956 = vpop.xlane.xlu0 %1955
    %v1957 = vsel %vm86, %v1948, 0.0
    %1958 = vadd.xlane.f32.xlu0 %v1957
    %v1959 = vpop.xlane.xlu0 %1958
    %v1960 = vsel %vm86, %v1950, 0.0
    %1961 = vadd.xlane.f32.xlu0 %v1960
    %v1962 = vpop.xlane.xlu0 %1961
    %v1963 = vrcp.pop %v1953
    %v1964 = vrcp.pop %v1956
    %v1965 = vrcp.pop %v1959
    %v1966 = vrcp.pop %v1962
    %v1967 = vmul.f32 %v1944, %v1963
    %v1968 = vmul.f32 %v1946, %v1964
    %v1969 = vmul.f32 %v1948, %v1965
    %v1970 = vmul.f32 %v1950, %v1966
    %v1971 = vpack.c.bf16 %v1967, %v1967
    %v1972 = vpack.c.bf16 %v1968, %v1968
    %v1973 = vpack.c.bf16 %v1969, %v1969
    %v1974 = vpack.c.bf16 %v1970, %v1970
    %1975 = vrot.lane.b32.xlu0 %v1723, 64
    %v1976 = vpop.permute.xlu0 %1975
    %v1978 = vsel %vm86, %v1971, 0
    %v1981 = vsel %vm93, %v1976, 0
    %1983 = vmatprep.subr.bf16.mxu0 0
    %1984 = vmatpush1.bf16.msra.mxu0 0
    %1985 = vmatprep.subr.bf16.mxu0 0
    %1986 = vmatpush1.bf16.msra.mxu0 0
    %1987 = vmatprep.subr.bf16.mxu0 0
    %1988 = vmatpush1.bf16.msra.mxu0 0
    %1989 = vmatprep.subr.bf16.mxu0 0
    %1990 = vmatpush1.bf16.msra.mxu0 0
    %1991 = vmatprep.subr.bf16.mxu0 0
    %1992 = vmatpush1.bf16.msra.mxu0 0
    %1993 = vmatprep.subr.bf16.mxu0 0
    %1994 = vmatpush1.bf16.msra.mxu0 0
    %1995 = vmatprep.subr.bf16.mxu0 0
    %1996 = vmatpush1.bf16.msra.mxu0 0
    %1997 = vmatprep.subr.bf16.mxu0 0
    %1998 = vmatpush1.bf16.msra.mxu0 %v1981
    %1999 = vmatprep.subr.bf16.mxu0 0
    %2000 = vmatpush2.bf16.msra.mxu0 0
    %2001 = vmatprep.subr.bf16.mxu0 0
    %2002 = vmatpush2.bf16.msra.mxu0 0
    %2003 = vmatprep.subr.bf16.mxu0 0
    %2004 = vmatpush2.bf16.msra.mxu0 0
    %2005 = vmatprep.subr.bf16.mxu0 0
    %2006 = vmatpush2.bf16.msra.mxu0 0
    %2007 = vmatprep.subr.bf16.mxu0 0
    %2008 = vmatpush2.bf16.msra.mxu0 0
    %2009 = vmatprep.subr.bf16.mxu0 0
    %2010 = vmatpush2.bf16.msra.mxu0 0
    %2011 = vmatprep.subr.bf16.mxu0 0
    %2012 = vmatpush2.bf16.msra.mxu0 0
    %2013 = vmatprep.subr.bf16.mxu0 0
    %2014 = vmatpush2.bf16.msra.mxu0 0
    %2015 = vmatprep.mubr.bf16.mxu0 0
    %2016 = vmatmul.mubr.bf16.gmra.mxu0 %v1978
    %v2017 = vpop.f32.mrf.mxu0
    %v2018 = vadd.f32 0.0, %v2017
    %v2019 = vpop.f32.mrf.mxu0
    %v2020 = vpop.f32.mrf.mxu0
    %v2021 = vpop.f32.mrf.mxu0
    %2022 = vdwg.mxu0
    %2023 = vrot.lane.b32.xlu0 %v1724, 64
    %v2024 = vpop.permute.xlu0 %2023
    %v2026 = vsel %vm86, %v1972, 0
    %v2029 = vsel %vm93, %v2024, 0
    %2031 = vmatprep.subr.bf16.mxu0 0
    %2032 = vmatpush1.bf16.msra.mxu0 0
    %2033 = vmatprep.subr.bf16.mxu0 0
    %2034 = vmatpush1.bf16.msra.mxu0 0
    %2035 = vmatprep.subr.bf16.mxu0 0
    %2036 = vmatpush1.bf16.msra.mxu0 0
    %2037 = vmatprep.subr.bf16.mxu0 0
    %2038 = vmatpush1.bf16.msra.mxu0 0
    %2039 = vmatprep.subr.bf16.mxu0 0
    %2040 = vmatpush1.bf16.msra.mxu0 0
    %2041 = vmatprep.subr.bf16.mxu0 0
    %2042 = vmatpush1.bf16.msra.mxu0 0
    %2043 = vmatprep.subr.bf16.mxu0 0
    %2044 = vmatpush1.bf16.msra.mxu0 0
    %2045 = vmatprep.subr.bf16.mxu0 0
    %2046 = vmatpush1.bf16.msra.mxu0 %v2029
    %2047 = vmatprep.subr.bf16.mxu0 0
    %2048 = vmatpush2.bf16.msra.mxu0 0
    %2049 = vmatprep.subr.bf16.mxu0 0
    %2050 = vmatpush2.bf16.msra.mxu0 0
    %2051 = vmatprep.subr.bf16.mxu0 0
    %2052 = vmatpush2.bf16.msra.mxu0 0
    %2053 = vmatprep.subr.bf16.mxu0 0
    %2054 = vmatpush2.bf16.msra.mxu0 0
    %2055 = vmatprep.subr.bf16.mxu0 0
    %2056 = vmatpush2.bf16.msra.mxu0 0
    %2057 = vmatprep.subr.bf16.mxu0 0
    %2058 = vmatpush2.bf16.msra.mxu0 0
    %2059 = vmatprep.subr.bf16.mxu0 0
    %2060 = vmatpush2.bf16.msra.mxu0 0
    %2061 = vmatprep.subr.bf16.mxu0 0
    %2062 = vmatpush2.bf16.msra.mxu0 0
    %2063 = vmatprep.mubr.bf16.mxu0 0
    %2064 = vmatmul.mubr.bf16.gmra.mxu0 %v2026
    %v2065 = vpop.f32.mrf.mxu0
    %v2066 = vadd.f32 0.0, %v2065
    %v2067 = vpop.f32.mrf.mxu0
    %v2068 = vpop.f32.mrf.mxu0
    %v2069 = vpop.f32.mrf.mxu0
    %2070 = vdwg.mxu0
    %2071 = vrot.lane.b32.xlu0 %v1725, 64
    %v2072 = vpop.permute.xlu0 %2071
    %v2074 = vsel %vm86, %v1973, 0
    %v2077 = vsel %vm93, %v2072, 0
    %2079 = vmatprep.subr.bf16.mxu0 0
    %2080 = vmatpush1.bf16.msra.mxu0 0
    %2081 = vmatprep.subr.bf16.mxu0 0
    %2082 = vmatpush1.bf16.msra.mxu0 0
    %2083 = vmatprep.subr.bf16.mxu0 0
    %2084 = vmatpush1.bf16.msra.mxu0 0
    %2085 = vmatprep.subr.bf16.mxu0 0
    %2086 = vmatpush1.bf16.msra.mxu0 0
    %2087 = vmatprep.subr.bf16.mxu0 0
    %2088 = vmatpush1.bf16.msra.mxu0 0
    %2089 = vmatprep.subr.bf16.mxu0 0
    %2090 = vmatpush1.bf16.msra.mxu0 0
    %2091 = vmatprep.subr.bf16.mxu0 0
    %2092 = vmatpush1.bf16.msra.mxu0 0
    %2093 = vmatprep.subr.bf16.mxu0 0
    %2094 = vmatpush1.bf16.msra.mxu0 %v2077
    %2095 = vmatprep.subr.bf16.mxu0 0
    %2096 = vmatpush2.bf16.msra.mxu0 0
    %2097 = vmatprep.subr.bf16.mxu0 0
    %2098 = vmatpush2.bf16.msra.mxu0 0
    %2099 = vmatprep.subr.bf16.mxu0 0
    %2100 = vmatpush2.bf16.msra.mxu0 0
    %2101 = vmatprep.subr.bf16.mxu0 0
    %2102 = vmatpush2.bf16.msra.mxu0 0
    %2103 = vmatprep.subr.bf16.mxu0 0
    %2104 = vmatpush2.bf16.msra.mxu0 0
    %2105 = vmatprep.subr.bf16.mxu0 0
    %2106 = vmatpush2.bf16.msra.mxu0 0
    %2107 = vmatprep.subr.bf16.mxu0 0
    %2108 = vmatpush2.bf16.msra.mxu0 0
    %2109 = vmatprep.subr.bf16.mxu0 0
    %2110 = vmatpush2.bf16.msra.mxu0 0
    %2111 = vmatprep.mubr.bf16.mxu0 0
    %2112 = vmatmul.mubr.bf16.gmra.mxu0 %v2074
    %v2113 = vpop.f32.mrf.mxu0
    %v2114 = vadd.f32 0.0, %v2113
    %v2115 = vpop.f32.mrf.mxu0
    %v2116 = vpop.f32.mrf.mxu0
    %v2117 = vpop.f32.mrf.mxu0
    %2118 = vdwg.mxu0
    %2119 = vrot.lane.b32.xlu0 %v1726, 64
    %v2120 = vpop.permute.xlu0 %2119
    %v2122 = vsel %vm86, %v1974, 0
    %v2125 = vsel %vm93, %v2120, 0
    %2127 = vmatprep.subr.bf16.mxu0 0
    %2128 = vmatpush1.bf16.msra.mxu0 0
    %2129 = vmatprep.subr.bf16.mxu0 0
    %2130 = vmatpush1.bf16.msra.mxu0 0
    %2131 = vmatprep.subr.bf16.mxu0 0
    %2132 = vmatpush1.bf16.msra.mxu0 0
    %2133 = vmatprep.subr.bf16.mxu0 0
    %2134 = vmatpush1.bf16.msra.mxu0 0
    %2135 = vmatprep.subr.bf16.mxu0 0
    %2136 = vmatpush1.bf16.msra.mxu0 0
    %2137 = vmatprep.subr.bf16.mxu0 0
    %2138 = vmatpush1.bf16.msra.mxu0 0
    %2139 = vmatprep.subr.bf16.mxu0 0
    %2140 = vmatpush1.bf16.msra.mxu0 0
    %2141 = vmatprep.subr.bf16.mxu0 0
    %2142 = vmatpush1.bf16.msra.mxu0 %v2125
    %2143 = vmatprep.subr.bf16.mxu0 0
    %2144 = vmatpush2.bf16.msra.mxu0 0
    %2145 = vmatprep.subr.bf16.mxu0 0
    %2146 = vmatpush2.bf16.msra.mxu0 0
    %2147 = vmatprep.subr.bf16.mxu0 0
    %2148 = vmatpush2.bf16.msra.mxu0 0
    %2149 = vmatprep.subr.bf16.mxu0 0
    %2150 = vmatpush2.bf16.msra.mxu0 0
    %2151 = vmatprep.subr.bf16.mxu0 0
    %2152 = vmatpush2.bf16.msra.mxu0 0
    %2153 = vmatprep.subr.bf16.mxu0 0
    %2154 = vmatpush2.bf16.msra.mxu0 0
    %2155 = vmatprep.subr.bf16.mxu0 0
    %2156 = vmatpush2.bf16.msra.mxu0 0
    %2157 = vmatprep.subr.bf16.mxu0 0
    %2158 = vmatpush2.bf16.msra.mxu0 0
    %2159 = vmatprep.mubr.bf16.mxu0 0
    %2160 = vmatmul.mubr.bf16.gmra.mxu0 %v2122
    %v2161 = vpop.f32.mrf.mxu0
    %v2162 = vadd.f32 0.0, %v2161
    %v2163 = vpop.f32.mrf.mxu0
    %v2164 = vpop.f32.mrf.mxu0
    %v2165 = vpop.f32.mrf.mxu0
    %2166 = vdwg.mxu0
    %v2167 = vpack.c.bf16 %v2066, %v2018
    %v2168 = vpack.c.bf16 %v2162, %v2114
    %2169 = vrot.lane.b32.xlu0 %v1723, 112
    %v2170 = vpop.permute.xlu0 %2169
    %2171 = vrot.lane.b32.xlu0 %v1723, 80
    %v2172 = vpop.permute.xlu0 %2171
    %v2174 = vsel %vm238, %v2170, 0
    %v2177 = vsel %vm238, %v2172, 0
    %2179 = vmatprep.subr.bf16.mxu0 0
    %2180 = vmatpush1.bf16.xpose.msra.mxu0 0
    %2181 = vmatprep.subr.bf16.mxu0 0
    %2182 = vmatpush1.bf16.xpose.msra.mxu0 0
    %2183 = vmatprep.subr.bf16.mxu0 0
    %2184 = vmatpush1.bf16.xpose.msra.mxu0 0
    %2185 = vmatprep.subr.bf16.mxu0 0
    %2186 = vmatpush1.bf16.xpose.msra.mxu0 0
    %2187 = vmatprep.subr.bf16.mxu0 0
    %2188 = vmatpush1.bf16.xpose.msra.mxu0 0
    %2189 = vmatprep.subr.bf16.mxu0 0
    %2190 = vmatpush1.bf16.xpose.msra.mxu0 0
    %2191 = vmatprep.subr.bf16.mxu0 0
    %2192 = vmatpush1.bf16.xpose.msra.mxu0 0
    %2193 = vmatprep.subr.bf16.mxu0 0
    %2194 = vmatpush1.bf16.xpose.msra.mxu0 %v2177
    %2195 = vmatprep.subr.bf16.mxu0 0
    %2196 = vmatpush2.bf16.xpose.msra.mxu0 0
    %2197 = vmatprep.subr.bf16.mxu0 0
    %2198 = vmatpush2.bf16.xpose.msra.mxu0 0
    %2199 = vmatprep.subr.bf16.mxu0 0
    %2200 = vmatpush2.bf16.xpose.msra.mxu0 0
    %2201 = vmatprep.subr.bf16.mxu0 0
    %2202 = vmatpush2.bf16.xpose.msra.mxu0 0
    %2203 = vmatprep.subr.bf16.mxu0 0
    %2204 = vmatpush2.bf16.xpose.msra.mxu0 0
    %2205 = vmatprep.subr.bf16.mxu0 0
    %2206 = vmatpush2.bf16.xpose.msra.mxu0 0
    %2207 = vmatprep.subr.bf16.mxu0 0
    %2208 = vmatpush2.bf16.xpose.msra.mxu0 0
    %2209 = vmatprep.subr.bf16.mxu0 0
    %2210 = vmatpush2.bf16.xpose.msra.mxu0 0
    %2211 = vmatprep.mubr.bf16.mxu0 0
    %2212 = vmatmul.mubr.bf16.gmra.mxu0 %v2174
    %v2213 = vpop.f32.mrf.mxu0
    %v2214 = vadd.f32 0.0, %v2213
    %v2215 = vpop.f32.mrf.mxu0
    %v2216 = vpop.f32.mrf.mxu0
    %v2217 = vpop.f32.mrf.mxu0
    %2218 = vdwg.mxu0
    %2219 = vrot.lane.b32.xlu0 %v1724, 112
    %v2220 = vpop.permute.xlu0 %2219
    %2221 = vrot.lane.b32.xlu0 %v1724, 80
    %v2222 = vpop.permute.xlu0 %2221
    %v2224 = vsel %vm238, %v2220, 0
    %v2227 = vsel %vm238, %v2222, 0
    %2229 = vmatprep.subr.bf16.mxu0 0
    %2230 = vmatpush1.bf16.xpose.msra.mxu0 0
    %2231 = vmatprep.subr.bf16.mxu0 0
    %2232 = vmatpush1.bf16.xpose.msra.mxu0 0
    %2233 = vmatprep.subr.bf16.mxu0 0
    %2234 = vmatpush1.bf16.xpose.msra.mxu0 0
    %2235 = vmatprep.subr.bf16.mxu0 0
    %2236 = vmatpush1.bf16.xpose.msra.mxu0 0
    %2237 = vmatprep.subr.bf16.mxu0 0
    %2238 = vmatpush1.bf16.xpose.msra.mxu0 0
    %2239 = vmatprep.subr.bf16.mxu0 0
    %2240 = vmatpush1.bf16.xpose.msra.mxu0 0
    %2241 = vmatprep.subr.bf16.mxu0 0
    %2242 = vmatpush1.bf16.xpose.msra.mxu0 0
    %2243 = vmatprep.subr.bf16.mxu0 0
    %2244 = vmatpush1.bf16.xpose.msra.mxu0 %v2227
    %2245 = vmatprep.subr.bf16.mxu0 0
    %2246 = vmatpush2.bf16.xpose.msra.mxu0 0
    %2247 = vmatprep.subr.bf16.mxu0 0
    %2248 = vmatpush2.bf16.xpose.msra.mxu0 0
    %2249 = vmatprep.subr.bf16.mxu0 0
    %2250 = vmatpush2.bf16.xpose.msra.mxu0 0
    %2251 = vmatprep.subr.bf16.mxu0 0
    %2252 = vmatpush2.bf16.xpose.msra.mxu0 0
    %2253 = vmatprep.subr.bf16.mxu0 0
    %2254 = vmatpush2.bf16.xpose.msra.mxu0 0
    %2255 = vmatprep.subr.bf16.mxu0 0
    %2256 = vmatpush2.bf16.xpose.msra.mxu0 0
    %2257 = vmatprep.subr.bf16.mxu0 0
    %2258 = vmatpush2.bf16.xpose.msra.mxu0 0
    %2259 = vmatprep.subr.bf16.mxu0 0
    %2260 = vmatpush2.bf16.xpose.msra.mxu0 0
    %2261 = vmatprep.mubr.bf16.mxu0 0
    %2262 = vmatmul.mubr.bf16.gmra.mxu0 %v2224
    %v2263 = vpop.f32.mrf.mxu0
    %v2264 = vadd.f32 0.0, %v2263
    %v2265 = vpop.f32.mrf.mxu0
    %v2266 = vpop.f32.mrf.mxu0
    %v2267 = vpop.f32.mrf.mxu0
    %2268 = vdwg.mxu0
    %2269 = vrot.lane.b32.xlu0 %v1725, 112
    %v2270 = vpop.permute.xlu0 %2269
    %2271 = vrot.lane.b32.xlu0 %v1725, 80
    %v2272 = vpop.permute.xlu0 %2271
    %v2274 = vsel %vm238, %v2270, 0
    %v2277 = vsel %vm238, %v2272, 0
    %2279 = vmatprep.subr.bf16.mxu0 0
    %2280 = vmatpush1.bf16.xpose.msra.mxu0 0
    %2281 = vmatprep.subr.bf16.mxu0 0
    %2282 = vmatpush1.bf16.xpose.msra.mxu0 0
    %2283 = vmatprep.subr.bf16.mxu0 0
    %2284 = vmatpush1.bf16.xpose.msra.mxu0 0
    %2285 = vmatprep.subr.bf16.mxu0 0
    %2286 = vmatpush1.bf16.xpose.msra.mxu0 0
    %2287 = vmatprep.subr.bf16.mxu0 0
    %2288 = vmatpush1.bf16.xpose.msra.mxu0 0
    %2289 = vmatprep.subr.bf16.mxu0 0
    %2290 = vmatpush1.bf16.xpose.msra.mxu0 0
    %2291 = vmatprep.subr.bf16.mxu0 0
    %2292 = vmatpush1.bf16.xpose.msra.mxu0 0
    %2293 = vmatprep.subr.bf16.mxu0 0
    %2294 = vmatpush1.bf16.xpose.msra.mxu0 %v2277
    %2295 = vmatprep.subr.bf16.mxu0 0
    %2296 = vmatpush2.bf16.xpose.msra.mxu0 0
    %2297 = vmatprep.subr.bf16.mxu0 0
    %2298 = vmatpush2.bf16.xpose.msra.mxu0 0
    %2299 = vmatprep.subr.bf16.mxu0 0
    %2300 = vmatpush2.bf16.xpose.msra.mxu0 0
    %2301 = vmatprep.subr.bf16.mxu0 0
    %2302 = vmatpush2.bf16.xpose.msra.mxu0 0
    %2303 = vmatprep.subr.bf16.mxu0 0
    %2304 = vmatpush2.bf16.xpose.msra.mxu0 0
    %2305 = vmatprep.subr.bf16.mxu0 0
    %2306 = vmatpush2.bf16.xpose.msra.mxu0 0
    %2307 = vmatprep.subr.bf16.mxu0 0
    %2308 = vmatpush2.bf16.xpose.msra.mxu0 0
    %2309 = vmatprep.subr.bf16.mxu0 0
    %2310 = vmatpush2.bf16.xpose.msra.mxu0 0
    %2311 = vmatprep.mubr.bf16.mxu0 0
    %2312 = vmatmul.mubr.bf16.gmra.mxu0 %v2274
    %v2313 = vpop.f32.mrf.mxu0
    %v2314 = vadd.f32 0.0, %v2313
    %v2315 = vpop.f32.mrf.mxu0
    %v2316 = vpop.f32.mrf.mxu0
    %v2317 = vpop.f32.mrf.mxu0
    %2318 = vdwg.mxu0
    %2319 = vrot.lane.b32.xlu0 %v1726, 112
    %v2320 = vpop.permute.xlu0 %2319
    %2321 = vrot.lane.b32.xlu0 %v1726, 80
    %v2322 = vpop.permute.xlu0 %2321
    %v2324 = vsel %vm238, %v2320, 0
    %v2327 = vsel %vm238, %v2322, 0
    %2329 = vmatprep.subr.bf16.mxu0 0
    %2330 = vmatpush1.bf16.xpose.msra.mxu0 0
    %2331 = vmatprep.subr.bf16.mxu0 0
    %2332 = vmatpush1.bf16.xpose.msra.mxu0 0
    %2333 = vmatprep.subr.bf16.mxu0 0
    %2334 = vmatpush1.bf16.xpose.msra.mxu0 0
    %2335 = vmatprep.subr.bf16.mxu0 0
    %2336 = vmatpush1.bf16.xpose.msra.mxu0 0
    %2337 = vmatprep.subr.bf16.mxu0 0
    %2338 = vmatpush1.bf16.xpose.msra.mxu0 0
    %2339 = vmatprep.subr.bf16.mxu0 0
    %2340 = vmatpush1.bf16.xpose.msra.mxu0 0
    %2341 = vmatprep.subr.bf16.mxu0 0
    %2342 = vmatpush1.bf16.xpose.msra.mxu0 0
    %2343 = vmatprep.subr.bf16.mxu0 0
    %2344 = vmatpush1.bf16.xpose.msra.mxu0 %v2327
    %2345 = vmatprep.subr.bf16.mxu0 0
    %2346 = vmatpush2.bf16.xpose.msra.mxu0 0
    %2347 = vmatprep.subr.bf16.mxu0 0
    %2348 = vmatpush2.bf16.xpose.msra.mxu0 0
    %2349 = vmatprep.subr.bf16.mxu0 0
    %2350 = vmatpush2.bf16.xpose.msra.mxu0 0
    %2351 = vmatprep.subr.bf16.mxu0 0
    %2352 = vmatpush2.bf16.xpose.msra.mxu0 0
    %2353 = vmatprep.subr.bf16.mxu0 0
    %2354 = vmatpush2.bf16.xpose.msra.mxu0 0
    %2355 = vmatprep.subr.bf16.mxu0 0
    %2356 = vmatpush2.bf16.xpose.msra.mxu0 0
    %2357 = vmatprep.subr.bf16.mxu0 0
    %2358 = vmatpush2.bf16.xpose.msra.mxu0 0
    %2359 = vmatprep.subr.bf16.mxu0 0
    %2360 = vmatpush2.bf16.xpose.msra.mxu0 0
    %2361 = vmatprep.mubr.bf16.mxu0 0
    %2362 = vmatmul.mubr.bf16.gmra.mxu0 %v2324
    %v2363 = vpop.f32.mrf.mxu0
    %v2364 = vadd.f32 0.0, %v2363
    %v2365 = vpop.f32.mrf.mxu0
    %v2366 = vpop.f32.mrf.mxu0
    %v2367 = vpop.f32.mrf.mxu0
    %2368 = vdwg.mxu0
    %v2369 = vmul.f32 %v2214, 0.25
    %v2370 = vmul.f32 %v2264, 0.25
    %v2371 = vmul.f32 %v2314, 0.25
    %v2372 = vmul.f32 %v2364, 0.25
    %v2373 = vsel %vm86, %v2369, -inf
    %2374 = vmax.xlane.f32.xlu0 %v2373
    %v2375 = vpop.xlane.xlu0 %2374
    %v2376 = vsel %vm86, %v2370, -inf
    %2377 = vmax.xlane.f32.xlu0 %v2376
    %v2378 = vpop.xlane.xlu0 %2377
    %v2379 = vsel %vm86, %v2371, -inf
    %2380 = vmax.xlane.f32.xlu0 %v2379
    %v2381 = vpop.xlane.xlu0 %2380
    %v2382 = vsel %vm86, %v2372, -inf
    %2383 = vmax.xlane.f32.xlu0 %v2382
    %v2384 = vpop.xlane.xlu0 %2383
    %v2385 = vsub.f32 %v2369, %v2375
    %v2386 = vsub.f32 %v2370, %v2378
    %v2387 = vsub.f32 %v2371, %v2381
    %v2388 = vsub.f32 %v2372, %v2384
    %v2389 = vmul.f32 %v2385, 1.442695
    %v2390 = vpow.pop %v2389
    %v2391 = vmul.f32 %v2386, 1.442695
    %v2392 = vpow.pop %v2391
    %v2393 = vmul.f32 %v2387, 1.442695
    %v2394 = vpow.pop %v2393
    %v2395 = vmul.f32 %v2388, 1.442695
    %v2396 = vpow.pop %v2395
    %v2397 = vsel %vm86, %v2390, 0.0
    %2398 = vadd.xlane.f32.xlu0 %v2397
    %v2399 = vpop.xlane.xlu0 %2398
    %v2400 = vsel %vm86, %v2392, 0.0
    %2401 = vadd.xlane.f32.xlu0 %v2400
    %v2402 = vpop.xlane.xlu0 %2401
    %v2403 = vsel %vm86, %v2394, 0.0
    %2404 = vadd.xlane.f32.xlu0 %v2403
    %v2405 = vpop.xlane.xlu0 %2404
    %v2406 = vsel %vm86, %v2396, 0.0
    %2407 = vadd.xlane.f32.xlu0 %v2406
    %v2408 = vpop.xlane.xlu0 %2407
    %v2409 = vrcp.pop %v2399
    %v2410 = vrcp.pop %v2402
    %v2411 = vrcp.pop %v2405
    %v2412 = vrcp.pop %v2408
    %v2413 = vmul.f32 %v2390, %v2409
    %v2414 = vmul.f32 %v2392, %v2410
    %v2415 = vmul.f32 %v2394, %v2411
    %v2416 = vmul.f32 %v2396, %v2412
    %v2417 = vpack.c.bf16 %v2413, %v2413
    %v2418 = vpack.c.bf16 %v2414, %v2414
    %v2419 = vpack.c.bf16 %v2415, %v2415
    %v2420 = vpack.c.bf16 %v2416, %v2416
    %2421 = vrot.lane.b32.xlu0 %v1723, 48
    %v2422 = vpop.permute.xlu0 %2421
    %v2424 = vsel %vm86, %v2417, 0
    %v2427 = vsel %vm93, %v2422, 0
    %2429 = vmatprep.subr.bf16.mxu0 0
    %2430 = vmatpush1.bf16.msra.mxu0 0
    %2431 = vmatprep.subr.bf16.mxu0 0
    %2432 = vmatpush1.bf16.msra.mxu0 0
    %2433 = vmatprep.subr.bf16.mxu0 0
    %2434 = vmatpush1.bf16.msra.mxu0 0
    %2435 = vmatprep.subr.bf16.mxu0 0
    %2436 = vmatpush1.bf16.msra.mxu0 0
    %2437 = vmatprep.subr.bf16.mxu0 0
    %2438 = vmatpush1.bf16.msra.mxu0 0
    %2439 = vmatprep.subr.bf16.mxu0 0
    %2440 = vmatpush1.bf16.msra.mxu0 0
    %2441 = vmatprep.subr.bf16.mxu0 0
    %2442 = vmatpush1.bf16.msra.mxu0 0
    %2443 = vmatprep.subr.bf16.mxu0 0
    %2444 = vmatpush1.bf16.msra.mxu0 %v2427
    %2445 = vmatprep.subr.bf16.mxu0 0
    %2446 = vmatpush2.bf16.msra.mxu0 0
    %2447 = vmatprep.subr.bf16.mxu0 0
    %2448 = vmatpush2.bf16.msra.mxu0 0
    %2449 = vmatprep.subr.bf16.mxu0 0
    %2450 = vmatpush2.bf16.msra.mxu0 0
    %2451 = vmatprep.subr.bf16.mxu0 0
    %2452 = vmatpush2.bf16.msra.mxu0 0
    %2453 = vmatprep.subr.bf16.mxu0 0
    %2454 = vmatpush2.bf16.msra.mxu0 0
    %2455 = vmatprep.subr.bf16.mxu0 0
    %2456 = vmatpush2.bf16.msra.mxu0 0
    %2457 = vmatprep.subr.bf16.mxu0 0
    %2458 = vmatpush2.bf16.msra.mxu0 0
    %2459 = vmatprep.subr.bf16.mxu0 0
    %2460 = vmatpush2.bf16.msra.mxu0 0
    %2461 = vmatprep.mubr.bf16.mxu0 0
    %2462 = vmatmul.mubr.bf16.gmra.mxu0 %v2424
    %v2463 = vpop.f32.mrf.mxu0
    %v2464 = vadd.f32 0.0, %v2463
    %v2465 = vpop.f32.mrf.mxu0
    %v2466 = vpop.f32.mrf.mxu0
    %v2467 = vpop.f32.mrf.mxu0
    %2468 = vdwg.mxu0
    %2469 = vrot.lane.b32.xlu0 %v1724, 48
    %v2470 = vpop.permute.xlu0 %2469
    %v2472 = vsel %vm86, %v2418, 0
    %v2475 = vsel %vm93, %v2470, 0
    %2477 = vmatprep.subr.bf16.mxu0 0
    %2478 = vmatpush1.bf16.msra.mxu0 0
    %2479 = vmatprep.subr.bf16.mxu0 0
    %2480 = vmatpush1.bf16.msra.mxu0 0
    %2481 = vmatprep.subr.bf16.mxu0 0
    %2482 = vmatpush1.bf16.msra.mxu0 0
    %2483 = vmatprep.subr.bf16.mxu0 0
    %2484 = vmatpush1.bf16.msra.mxu0 0
    %2485 = vmatprep.subr.bf16.mxu0 0
    %2486 = vmatpush1.bf16.msra.mxu0 0
    %2487 = vmatprep.subr.bf16.mxu0 0
    %2488 = vmatpush1.bf16.msra.mxu0 0
    %2489 = vmatprep.subr.bf16.mxu0 0
    %2490 = vmatpush1.bf16.msra.mxu0 0
    %2491 = vmatprep.subr.bf16.mxu0 0
    %2492 = vmatpush1.bf16.msra.mxu0 %v2475
    %2493 = vmatprep.subr.bf16.mxu0 0
    %2494 = vmatpush2.bf16.msra.mxu0 0
    %2495 = vmatprep.subr.bf16.mxu0 0
    %2496 = vmatpush2.bf16.msra.mxu0 0
    %2497 = vmatprep.subr.bf16.mxu0 0
    %2498 = vmatpush2.bf16.msra.mxu0 0
    %2499 = vmatprep.subr.bf16.mxu0 0
    %2500 = vmatpush2.bf16.msra.mxu0 0
    %2501 = vmatprep.subr.bf16.mxu0 0
    %2502 = vmatpush2.bf16.msra.mxu0 0
    %2503 = vmatprep.subr.bf16.mxu0 0
    %2504 = vmatpush2.bf16.msra.mxu0 0
    %2505 = vmatprep.subr.bf16.mxu0 0
    %2506 = vmatpush2.bf16.msra.mxu0 0
    %2507 = vmatprep.subr.bf16.mxu0 0
    %2508 = vmatpush2.bf16.msra.mxu0 0
    %2509 = vmatprep.mubr.bf16.mxu0 0
    %2510 = vmatmul.mubr.bf16.gmra.mxu0 %v2472
    %v2511 = vpop.f32.mrf.mxu0
    %v2512 = vadd.f32 0.0, %v2511
    %v2513 = vpop.f32.mrf.mxu0
    %v2514 = vpop.f32.mrf.mxu0
    %v2515 = vpop.f32.mrf.mxu0
    %2516 = vdwg.mxu0
    %2517 = vrot.lane.b32.xlu0 %v1725, 48
    %v2518 = vpop.permute.xlu0 %2517
    %v2520 = vsel %vm86, %v2419, 0
    %v2523 = vsel %vm93, %v2518, 0
    %2525 = vmatprep.subr.bf16.mxu0 0
    %2526 = vmatpush1.bf16.msra.mxu0 0
    %2527 = vmatprep.subr.bf16.mxu0 0
    %2528 = vmatpush1.bf16.msra.mxu0 0
    %2529 = vmatprep.subr.bf16.mxu0 0
    %2530 = vmatpush1.bf16.msra.mxu0 0
    %2531 = vmatprep.subr.bf16.mxu0 0
    %2532 = vmatpush1.bf16.msra.mxu0 0
    %2533 = vmatprep.subr.bf16.mxu0 0
    %2534 = vmatpush1.bf16.msra.mxu0 0
    %2535 = vmatprep.subr.bf16.mxu0 0
    %2536 = vmatpush1.bf16.msra.mxu0 0
    %2537 = vmatprep.subr.bf16.mxu0 0
    %2538 = vmatpush1.bf16.msra.mxu0 0
    %2539 = vmatprep.subr.bf16.mxu0 0
    %2540 = vmatpush1.bf16.msra.mxu0 %v2523
    %2541 = vmatprep.subr.bf16.mxu0 0
    %2542 = vmatpush2.bf16.msra.mxu0 0
    %2543 = vmatprep.subr.bf16.mxu0 0
    %2544 = vmatpush2.bf16.msra.mxu0 0
    %2545 = vmatprep.subr.bf16.mxu0 0
    %2546 = vmatpush2.bf16.msra.mxu0 0
    %2547 = vmatprep.subr.bf16.mxu0 0
    %2548 = vmatpush2.bf16.msra.mxu0 0
    %2549 = vmatprep.subr.bf16.mxu0 0
    %2550 = vmatpush2.bf16.msra.mxu0 0
    %2551 = vmatprep.subr.bf16.mxu0 0
    %2552 = vmatpush2.bf16.msra.mxu0 0
    %2553 = vmatprep.subr.bf16.mxu0 0
    %2554 = vmatpush2.bf16.msra.mxu0 0
    %2555 = vmatprep.subr.bf16.mxu0 0
    %2556 = vmatpush2.bf16.msra.mxu0 0
    %2557 = vmatprep.mubr.bf16.mxu0 0
    %2558 = vmatmul.mubr.bf16.gmra.mxu0 %v2520
    %v2559 = vpop.f32.mrf.mxu0
    %v2560 = vadd.f32 0.0, %v2559
    %v2561 = vpop.f32.mrf.mxu0
    %v2562 = vpop.f32.mrf.mxu0
    %v2563 = vpop.f32.mrf.mxu0
    %2564 = vdwg.mxu0
    %2565 = vrot.lane.b32.xlu0 %v1726, 48
    %v2566 = vpop.permute.xlu0 %2565
    %v2568 = vsel %vm86, %v2420, 0
    %v2571 = vsel %vm93, %v2566, 0
    %2573 = vmatprep.subr.bf16.mxu0 0
    %2574 = vmatpush1.bf16.msra.mxu0 0
    %2575 = vmatprep.subr.bf16.mxu0 0
    %2576 = vmatpush1.bf16.msra.mxu0 0
    %2577 = vmatprep.subr.bf16.mxu0 0
    %2578 = vmatpush1.bf16.msra.mxu0 0
    %2579 = vmatprep.subr.bf16.mxu0 0
    %2580 = vmatpush1.bf16.msra.mxu0 0
    %2581 = vmatprep.subr.bf16.mxu0 0
    %2582 = vmatpush1.bf16.msra.mxu0 0
    %2583 = vmatprep.subr.bf16.mxu0 0
    %2584 = vmatpush1.bf16.msra.mxu0 0
    %2585 = vmatprep.subr.bf16.mxu0 0
    %2586 = vmatpush1.bf16.msra.mxu0 0
    %2587 = vmatprep.subr.bf16.mxu0 0
    %2588 = vmatpush1.bf16.msra.mxu0 %v2571
    %2589 = vmatprep.subr.bf16.mxu0 0
    %2590 = vmatpush2.bf16.msra.mxu0 0
    %2591 = vmatprep.subr.bf16.mxu0 0
    %2592 = vmatpush2.bf16.msra.mxu0 0
    %2593 = vmatprep.subr.bf16.mxu0 0
    %2594 = vmatpush2.bf16.msra.mxu0 0
    %2595 = vmatprep.subr.bf16.mxu0 0
    %2596 = vmatpush2.bf16.msra.mxu0 0
    %2597 = vmatprep.subr.bf16.mxu0 0
    %2598 = vmatpush2.bf16.msra.mxu0 0
    %2599 = vmatprep.subr.bf16.mxu0 0
    %2600 = vmatpush2.bf16.msra.mxu0 0
    %2601 = vmatprep.subr.bf16.mxu0 0
    %2602 = vmatpush2.bf16.msra.mxu0 0
    %2603 = vmatprep.subr.bf16.mxu0 0
    %2604 = vmatpush2.bf16.msra.mxu0 0
    %2605 = vmatprep.mubr.bf16.mxu0 0
    %2606 = vmatmul.mubr.bf16.gmra.mxu0 %v2568
    %v2607 = vpop.f32.mrf.mxu0
    %v2608 = vadd.f32 0.0, %v2607
    %v2609 = vpop.f32.mrf.mxu0
    %v2610 = vpop.f32.mrf.mxu0
    %v2611 = vpop.f32.mrf.mxu0
    %2612 = vdwg.mxu0
    %v2613 = vpack.c.bf16 %v2512, %v2464
    %v2614 = vpack.c.bf16 %v2608, %v2560
    %v2617 = vunpack.c.l.b16 %v1721
    %v2618 = vunpack.c.l.b16 %v1722
    %v2619 = vpack.c.b16 %v2618, %v2617
    %v2622 = vsel %vm238, %v2613, 0
    %v2625 = vsel %vm238, %v2614, 0
    %2627 = vmatprep.subr.bf16.mxu0 0
    %2628 = vmatpush1.bf16.msra.mxu0 0
    %2629 = vmatprep.subr.bf16.mxu0 0
    %2630 = vmatpush1.bf16.msra.mxu0 0
    %2631 = vmatprep.subr.bf16.mxu0 0
    %2632 = vmatpush1.bf16.msra.mxu0 0
    %2633 = vmatprep.subr.bf16.mxu0 0
    %2634 = vmatpush1.bf16.msra.mxu0 0
    %2635 = vmatprep.subr.bf16.mxu0 0
    %2636 = vmatpush1.bf16.msra.mxu0 0
    %2637 = vmatprep.subr.bf16.mxu0 0
    %2638 = vmatpush1.bf16.msra.mxu0 0
    %2639 = vmatprep.subr.bf16.mxu0 0
    %2640 = vmatpush1.bf16.msra.mxu0 0
    %2641 = vmatprep.subr.bf16.mxu0 0
    %2642 = vmatpush1.bf16.msra.mxu0 %v2619
    %2643 = vmatprep.subr.bf16.mxu0 0
    %2644 = vmatpush2.bf16.msra.mxu0 0
    %2645 = vmatprep.subr.bf16.mxu0 0
    %2646 = vmatpush2.bf16.msra.mxu0 0
    %2647 = vmatprep.subr.bf16.mxu0 0
    %2648 = vmatpush2.bf16.msra.mxu0 0
    %2649 = vmatprep.subr.bf16.mxu0 0
    %2650 = vmatpush2.bf16.msra.mxu0 0
    %2651 = vmatprep.subr.bf16.mxu0 0
    %2652 = vmatpush2.bf16.msra.mxu0 0
    %2653 = vmatprep.subr.bf16.mxu0 0
    %2654 = vmatpush2.bf16.msra.mxu0 0
    %2655 = vmatprep.subr.bf16.mxu0 0
    %2656 = vmatpush2.bf16.msra.mxu0 0
    %2657 = vmatprep.subr.bf16.mxu0 0
    %2658 = vmatpush2.bf16.msra.mxu0 0
    %2659 = vmatprep.mubr.bf16.mxu0 0
    %2660 = vmatmul.mubr.bf16.gmra.mxu0 %v2622
    %v2661 = vpop.f32.mrf.mxu0
    %v2662 = vadd.f32 0.0, %v2661
    %v2663 = vpop.f32.mrf.mxu0
    %v2664 = vpop.f32.mrf.mxu0
    %v2665 = vadd.f32 0.0, %v2664
    %v2666 = vpop.f32.mrf.mxu0
    %2667 = vmatprep.mubr.bf16.mxu0 0
    %2668 = vmatmul.mubr.bf16.gmra.mxu0 %v2625
    %v2669 = vpop.f32.mrf.mxu0
    %v2670 = vadd.f32 0.0, %v2669
    %v2671 = vpop.f32.mrf.mxu0
    %v2672 = vpop.f32.mrf.mxu0
    %v2673 = vadd.f32 0.0, %v2672
    %v2674 = vpop.f32.mrf.mxu0
    %2675 = vdwg.mxu0
    %v2678 = vunpack.c.l.b16 %v1719
    %v2679 = vunpack.c.l.b16 %v1720
    %v2680 = vpack.c.b16 %v2679, %v2678
    %v2683 = vsel %vm238, %v2167, 0
    %v2686 = vsel %vm238, %v2168, 0
    %2688 = vmatprep.subr.bf16.mxu0 0
    %2689 = vmatpush1.bf16.msra.mxu0 0
    %2690 = vmatprep.subr.bf16.mxu0 0
    %2691 = vmatpush1.bf16.msra.mxu0 0
    %2692 = vmatprep.subr.bf16.mxu0 0
    %2693 = vmatpush1.bf16.msra.mxu0 0
    %2694 = vmatprep.subr.bf16.mxu0 0
    %2695 = vmatpush1.bf16.msra.mxu0 0
    %2696 = vmatprep.subr.bf16.mxu0 0
    %2697 = vmatpush1.bf16.msra.mxu0 0
    %2698 = vmatprep.subr.bf16.mxu0 0
    %2699 = vmatpush1.bf16.msra.mxu0 0
    %2700 = vmatprep.subr.bf16.mxu0 0
    %2701 = vmatpush1.bf16.msra.mxu0 0
    %2702 = vmatprep.subr.bf16.mxu0 0
    %2703 = vmatpush1.bf16.msra.mxu0 %v2680
    %2704 = vmatprep.subr.bf16.mxu0 0
    %2705 = vmatpush2.bf16.msra.mxu0 0
    %2706 = vmatprep.subr.bf16.mxu0 0
    %2707 = vmatpush2.bf16.msra.mxu0 0
    %2708 = vmatprep.subr.bf16.mxu0 0
    %2709 = vmatpush2.bf16.msra.mxu0 0
    %2710 = vmatprep.subr.bf16.mxu0 0
    %2711 = vmatpush2.bf16.msra.mxu0 0
    %2712 = vmatprep.subr.bf16.mxu0 0
    %2713 = vmatpush2.bf16.msra.mxu0 0
    %2714 = vmatprep.subr.bf16.mxu0 0
    %2715 = vmatpush2.bf16.msra.mxu0 0
    %2716 = vmatprep.subr.bf16.mxu0 0
    %2717 = vmatpush2.bf16.msra.mxu0 0
    %2718 = vmatprep.subr.bf16.mxu0 0
    %2719 = vmatpush2.bf16.msra.mxu0 0
    %2720 = vmatprep.mubr.bf16.mxu0 0
    %2721 = vmatmul.mubr.bf16.gmra.mxu0 %v2683
    %v2722 = vpop.f32.mrf.mxu0
    %v2723 = vadd.f32 %v2662, %v2722
    %v2724 = vpop.f32.mrf.mxu0
    %v2725 = vpop.f32.mrf.mxu0
    %v2726 = vadd.f32 %v2665, %v2725
    %v2727 = vpop.f32.mrf.mxu0
    %2728 = vmatprep.mubr.bf16.mxu0 0
    %2729 = vmatmul.mubr.bf16.gmra.mxu0 %v2686
    %v2730 = vpop.f32.mrf.mxu0
    %v2731 = vadd.f32 %v2670, %v2730
    %v2732 = vpop.f32.mrf.mxu0
    %v2733 = vpop.f32.mrf.mxu0
    %v2734 = vadd.f32 %v2673, %v2733
    %v2735 = vpop.f32.mrf.mxu0
    %2736 = vdwg.mxu0
    %s2737 = scalar_lea.vmem %s6, 1
    %v2738 = vld [vmem:[%s2737] sm:$0x1]
    %v2740 = vlaneseq
    %v2741 = vshrl.u32 %v2740, 7
    %v2742 = vsub.s32 0, %v2741
    %v2743 = vrot.slane %v2738, %v2742
    %v2745 = vadd.f32 %v2723, %v2743
    %v2746 = vadd.f32 %v2726, %v2743
    %v2747 = vadd.f32 %v2731, %v2743
    %v2748 = vadd.f32 %v2734, %v2743
    %v2749 = vadd.f32 %v1632, %v2745
    %v2750 = vadd.f32 %v1633, %v2746
    %v2751 = vadd.f32 %v1634, %v2747
    %v2752 = vadd.f32 %v1635, %v2748
    %s2753 = scalar_lea.vmem %s11, 1
    %v2754 = vld [vmem:[%s2753] sm:$0x1]
    %s2755 = scalar_lea.vmem %s12, 1
    %v2756 = vld [vmem:[%s2755] sm:$0x1]
    %v2757 = vsel %vm171, %v2749, 0.0
    %2758 = vadd.xlane.f32.xlu0 %v2757
    %v2759 = vpop.xlane.xlu0 %2758
    %v2760 = vsel %vm171, %v2750, 0.0
    %2761 = vadd.xlane.f32.xlu0 %v2760
    %v2762 = vpop.xlane.xlu0 %2761
    %v2763 = vsel %vm171, %v2751, 0.0
    %2764 = vadd.xlane.f32.xlu0 %v2763
    %v2765 = vpop.xlane.xlu0 %2764
    %v2766 = vsel %vm171, %v2752, 0.0
    %2767 = vadd.xlane.f32.xlu0 %v2766
    %v2768 = vpop.xlane.xlu0 %2767
    %v2769 = vmul.f32 %v2759, %v1275
    %v2770 = vmul.f32 %v2762, %v1275
    %v2771 = vmul.f32 %v2765, %v1275
    %v2772 = vmul.f32 %v2768, %v1275
    %v2773 = vmul.f32 %v2749, %v2749
    %v2774 = vmul.f32 %v2750, %v2750
    %v2775 = vmul.f32 %v2751, %v2751
    %v2776 = vmul.f32 %v2752, %v2752
    %v2777 = vsel %vm171, %v2773, 0.0
    %2778 = vadd.xlane.f32.xlu0 %v2777
    %v2779 = vpop.xlane.xlu0 %2778
    %v2780 = vsel %vm171, %v2774, 0.0
    %2781 = vadd.xlane.f32.xlu0 %v2780
    %v2782 = vpop.xlane.xlu0 %2781
    %v2783 = vsel %vm171, %v2775, 0.0
    %2784 = vadd.xlane.f32.xlu0 %v2783
    %v2785 = vpop.xlane.xlu0 %2784
    %v2786 = vsel %vm171, %v2776, 0.0
    %2787 = vadd.xlane.f32.xlu0 %v2786
    %v2788 = vpop.xlane.xlu0 %2787
    %v2789 = vmul.f32 %v2779, %v1275
    %v2790 = vmul.f32 %v2782, %v1275
    %v2791 = vmul.f32 %v2785, %v1275
    %v2792 = vmul.f32 %v2788, %v1275
    %v2793 = vmul.f32 %v2769, %v2769
    %v2794 = vmul.f32 %v2770, %v2770
    %v2795 = vmul.f32 %v2771, %v2771
    %v2796 = vmul.f32 %v2772, %v2772
    %v2797 = vsub.f32 %v2789, %v2793
    %v2798 = vsub.f32 %v2790, %v2794
    %v2799 = vsub.f32 %v2791, %v2795
    %v2800 = vsub.f32 %v2792, %v2796
    %v2801 = vsub.f32 %v2749, %v2769
    %v2802 = vsub.f32 %v2750, %v2770
    %v2803 = vsub.f32 %v2751, %v2771
    %v2804 = vsub.f32 %v2752, %v2772
    %v2805 = vadd.f32 %v2797, 1e-05
    %v2806 = vadd.f32 %v2798, 1e-05
    %v2807 = vadd.f32 %v2799, 1e-05
    %v2808 = vadd.f32 %v2800, 1e-05
    %v2809 = vrsqrt.pop %v2805
    %v2810 = vrsqrt.pop %v2806
    %v2811 = vrsqrt.pop %v2807
    %v2812 = vrsqrt.pop %v2808
    %v2813 = vmul.f32 %v2801, %v2809
    %v2814 = vmul.f32 %v2802, %v2810
    %v2815 = vmul.f32 %v2803, %v2811
    %v2816 = vmul.f32 %v2804, %v2812
    %v2818 = vlaneseq
    %v2819 = vshrl.u32 %v2818, 7
    %v2820 = vsub.s32 0, %v2819
    %v2821 = vrot.slane %v2754, %v2820
    %v2823 = vmul.f32 %v2813, %v2821
    %v2824 = vmul.f32 %v2814, %v2821
    %v2825 = vmul.f32 %v2815, %v2821
    %v2826 = vmul.f32 %v2816, %v2821
    %v2828 = vlaneseq
    %v2829 = vshrl.u32 %v2828, 7
    %v2830 = vsub.s32 0, %v2829
    %v2831 = vrot.slane %v2756, %v2830
    %v2833 = vadd.f32 %v2823, %v2831
    %v2834 = vadd.f32 %v2824, %v2831
    %v2835 = vadd.f32 %v2825, %v2831
    %v2836 = vadd.f32 %v2826, %v2831
    %s2837 = scalar_lea.vmem %s7, 16
    %v2838 = vld [vmem:[%s2837] sm:$0xf]
    %v2839 = vld [vmem:[%s2837 + $0x4] sm:$0xf]
    %v2840 = vld [vmem:[%s2837 + $0x8] sm:$0xf]
    %v2841 = vld [vmem:[%s2837 + $0xc] sm:$0xf]
    %v2842 = vpack.c.bf16 %v2834, %v2833
    %v2843 = vpack.c.bf16 %v2836, %v2835
    %s2844 = scalar_lea.vmem %s8, 1
    %v2845 = vld [vmem:[%s2844] sm:$0x1]
    %v2847 = vlaneseq
    %v2848 = vshrl.u32 %v2847, 7
    %v2849 = vsub.s32 0, %v2848
    %v2850 = vrot.slane %v2845, %v2849
    %v2856 = vunpack.c.l.b16 %v2838
    %v2857 = vunpack.c.l.b16 %v2839
    %v2858 = vunpack.c.l.b16 %v2840
    %v2859 = vunpack.c.l.b16 %v2841
    %v2860 = vpack.c.b16 %v2857, %v2856
    %v2861 = vpack.c.b16 %v2859, %v2858
    %v2865 = vsel %vm171, %v2842, 0
    %v2868 = vsel %vm171, %v2843, 0
    %2870 = vmatprep.subr.bf16.mxu0 0
    %2871 = vmatpush1.bf16.msra.mxu0 0
    %2872 = vmatprep.subr.bf16.mxu0 0
    %2873 = vmatpush1.bf16.msra.mxu0 0
    %2874 = vmatprep.subr.bf16.mxu0 0
    %2875 = vmatpush1.bf16.msra.mxu0 0
    %2876 = vmatprep.subr.bf16.mxu0 0
    %2877 = vmatpush1.bf16.msra.mxu0 0
    %2878 = vmatprep.subr.bf16.mxu0 0
    %2879 = vmatpush1.bf16.msra.mxu0 0
    %2880 = vmatprep.subr.bf16.mxu0 0
    %2881 = vmatpush1.bf16.msra.mxu0 0
    %2882 = vmatprep.subr.bf16.mxu0 0
    %2883 = vmatpush1.bf16.msra.mxu0 %v2861
    %2884 = vmatprep.subr.bf16.mxu0 0
    %2885 = vmatpush1.bf16.msra.mxu0 %v2860
    %2886 = vmatprep.subr.bf16.mxu0 0
    %2887 = vmatpush2.bf16.msra.mxu0 0
    %2888 = vmatprep.subr.bf16.mxu0 0
    %2889 = vmatpush2.bf16.msra.mxu0 0
    %2890 = vmatprep.subr.bf16.mxu0 0
    %2891 = vmatpush2.bf16.msra.mxu0 0
    %2892 = vmatprep.subr.bf16.mxu0 0
    %2893 = vmatpush2.bf16.msra.mxu0 0
    %2894 = vmatprep.subr.bf16.mxu0 0
    %2895 = vmatpush2.bf16.msra.mxu0 0
    %2896 = vmatprep.subr.bf16.mxu0 0
    %2897 = vmatpush2.bf16.msra.mxu0 0
    %2898 = vmatprep.subr.bf16.mxu0 0
    %2899 = vmatpush2.bf16.msra.mxu0 0
    %2900 = vmatprep.subr.bf16.mxu0 0
    %2901 = vmatpush2.bf16.msra.mxu0 0
    %2902 = vmatprep.mubr.bf16.mxu0 0
    %2903 = vmatmul.mubr.bf16.gmra.mxu0 %v2865
    %v2904 = vpop.f32.mrf.mxu0
    %v2905 = vadd.f32 %v2850, %v2904
    %v2906 = vpop.f32.mrf.mxu0
    %v2907 = vpop.f32.mrf.mxu0
    %v2908 = vadd.f32 %v2850, %v2907
    %v2909 = vpop.f32.mrf.mxu0
    %2910 = vmatprep.mubr.bf16.mxu0 0
    %2911 = vmatmul.mubr.bf16.gmra.mxu0 %v2868
    %v2912 = vpop.f32.mrf.mxu0
    %v2913 = vadd.f32 %v2850, %v2912
    %v2914 = vpop.f32.mrf.mxu0
    %v2915 = vpop.f32.mrf.mxu0
    %v2916 = vadd.f32 %v2850, %v2915
    %v2917 = vpop.f32.mrf.mxu0
    %2918 = vdwg.mxu0
    %v2919 = vmax.f32 %v2905, 0.0
    %v2920 = vmax.f32 %v2908, 0.0
    %v2921 = vmax.f32 %v2913, 0.0
    %v2922 = vmax.f32 %v2916, 0.0
    %s2923 = scalar_lea.vmem %s9, 64
    %v2924 = vld [vmem:[%s2923] sm:$0xf]
    %v2925 = vld [vmem:[%s2923 + $0x4] sm:$0xf]
    %v2926 = vld [vmem:[%s2923 + $0x8] sm:$0xf]
    %v2927 = vld [vmem:[%s2923 + $0xc] sm:$0xf]
    %v2928 = vld [vmem:[%s2923 + $0x10] sm:$0xf]
    %v2929 = vld [vmem:[%s2923 + $0x14] sm:$0xf]
    %v2930 = vld [vmem:[%s2923 + $0x18] sm:$0xf]
    %v2931 = vld [vmem:[%s2923 + $0x1c] sm:$0xf]
    %v2932 = vld [vmem:[%s2923 + $0x20] sm:$0xf]
    %v2933 = vld [vmem:[%s2923 + $0x24] sm:$0xf]
    %v2934 = vld [vmem:[%s2923 + $0x28] sm:$0xf]
    %v2935 = vld [vmem:[%s2923 + $0x2c] sm:$0xf]
    %v2936 = vld [vmem:[%s2923 + $0x30] sm:$0xf]
    %v2937 = vld [vmem:[%s2923 + $0x34] sm:$0xf]
    %v2938 = vld [vmem:[%s2923 + $0x38] sm:$0xf]
    %v2939 = vld [vmem:[%s2923 + $0x3c] sm:$0xf]
    %v2940 = vpack.c.bf16 %v2920, %v2919
    %v2941 = vpack.c.bf16 %v2922, %v2921
    %s2942 = scalar_lea.vmem %s10, 1
    %v2943 = vld [vmem:[%s2942] sm:$0x1]
    %v2945 = vlaneseq
    %v2946 = vshrl.u32 %v2945, 7
    %v2947 = vsub.s32 0, %v2946
    %v2948 = vrot.slane %v2943, %v2947
    %v2966 = vunpack.c.l.b16 %v2924
    %v2967 = vunpack.c.l.b16 %v2925
    %v2968 = vunpack.c.l.b16 %v2926
    %v2969 = vunpack.c.l.b16 %v2927
    %v2970 = vunpack.c.l.b16 %v2928
    %v2971 = vunpack.c.l.b16 %v2929
    %v2972 = vunpack.c.l.b16 %v2930
    %v2973 = vunpack.c.l.b16 %v2931
    %v2974 = vunpack.c.l.b16 %v2932
    %v2975 = vunpack.c.l.b16 %v2933
    %v2976 = vunpack.c.l.b16 %v2934
    %v2977 = vunpack.c.l.b16 %v2935
    %v2978 = vunpack.c.l.b16 %v2936
    %v2979 = vunpack.c.l.b16 %v2937
    %v2980 = vunpack.c.l.b16 %v2938
    %v2981 = vunpack.c.l.b16 %v2939
    %v2982 = vpack.c.b16 %v2967, %v2966
    %v2983 = vpack.c.b16 %v2969, %v2968
    %v2984 = vpack.c.b16 %v2971, %v2970
    %v2985 = vpack.c.b16 %v2973, %v2972
    %v2986 = vpack.c.b16 %v2975, %v2974
    %v2987 = vpack.c.b16 %v2977, %v2976
    %v2988 = vpack.c.b16 %v2979, %v2978
    %v2989 = vpack.c.b16 %v2981, %v2980
    %2998 = vmatprep.subr.bf16.mxu0 0
    %2999 = vmatpush1.bf16.msra.mxu0 %v2989
    %3000 = vmatprep.subr.bf16.mxu0 0
    %3001 = vmatpush1.bf16.msra.mxu0 %v2988
    %3002 = vmatprep.subr.bf16.mxu0 0
    %3003 = vmatpush1.bf16.msra.mxu0 %v2987
    %3004 = vmatprep.subr.bf16.mxu0 0
    %3005 = vmatpush1.bf16.msra.mxu0 %v2986
    %3006 = vmatprep.subr.bf16.mxu0 0
    %3007 = vmatpush1.bf16.msra.mxu0 %v2985
    %3008 = vmatprep.subr.bf16.mxu0 0
    %3009 = vmatpush1.bf16.msra.mxu0 %v2984
    %3010 = vmatprep.subr.bf16.mxu0 0
    %3011 = vmatpush1.bf16.msra.mxu0 %v2983
    %3012 = vmatprep.subr.bf16.mxu0 0
    %3013 = vmatpush1.bf16.msra.mxu0 %v2982
    %3014 = vmatprep.subr.bf16.mxu0 0
    %3015 = vmatpush2.bf16.msra.mxu0 0
    %3016 = vmatprep.subr.bf16.mxu0 0
    %3017 = vmatpush2.bf16.msra.mxu0 0
    %3018 = vmatprep.subr.bf16.mxu0 0
    %3019 = vmatpush2.bf16.msra.mxu0 0
    %3020 = vmatprep.subr.bf16.mxu0 0
    %3021 = vmatpush2.bf16.msra.mxu0 0
    %3022 = vmatprep.subr.bf16.mxu0 0
    %3023 = vmatpush2.bf16.msra.mxu0 0
    %3024 = vmatprep.subr.bf16.mxu0 0
    %3025 = vmatpush2.bf16.msra.mxu0 0
    %3026 = vmatprep.subr.bf16.mxu0 0
    %3027 = vmatpush2.bf16.msra.mxu0 0
    %3028 = vmatprep.subr.bf16.mxu0 0
    %3029 = vmatpush2.bf16.msra.mxu0 0
    %3030 = vmatprep.mubr.bf16.mxu0 0
    %3031 = vmatmul.mubr.bf16.gmra.mxu0 %v2940
    %v3032 = vpop.f32.mrf.mxu0
    %v3033 = vadd.f32 %v2948, %v3032
    %v3034 = vpop.f32.mrf.mxu0
    %v3035 = vpop.f32.mrf.mxu0
    %v3036 = vadd.f32 %v2948, %v3035
    %v3037 = vpop.f32.mrf.mxu0
    %3038 = vmatprep.mubr.bf16.mxu0 0
    %3039 = vmatmul.mubr.bf16.gmra.mxu0 %v2941
    %v3040 = vpop.f32.mrf.mxu0
    %v3041 = vadd.f32 %v2948, %v3040
    %v3042 = vpop.f32.mrf.mxu0
    %v3043 = vpop.f32.mrf.mxu0
    %v3044 = vadd.f32 %v2948, %v3043
    %v3045 = vpop.f32.mrf.mxu0
    %3046 = vdwg.mxu0
    %v3047 = vadd.f32 %v2833, %v3033
    %v3048 = vadd.f32 %v2834, %v3036
    %v3049 = vadd.f32 %v2835, %v3041
    %v3050 = vadd.f32 %v2836, %v3044
    %s3051 = scalar_lea.vmem %s13, 1
    %v3052 = vld [vmem:[%s3051] sm:$0x1]
    %s3053 = scalar_lea.vmem %s14, 1
    %v3054 = vld [vmem:[%s3053] sm:$0x1]
    %v3055 = vsel %vm171, %v3047, 0.0
    %3056 = vadd.xlane.f32.xlu0 %v3055
    %v3057 = vpop.xlane.xlu0 %3056
    %v3058 = vsel %vm171, %v3048, 0.0
    %3059 = vadd.xlane.f32.xlu0 %v3058
    %v3060 = vpop.xlane.xlu0 %3059
    %v3061 = vsel %vm171, %v3049, 0.0
    %3062 = vadd.xlane.f32.xlu0 %v3061
    %v3063 = vpop.xlane.xlu0 %3062
    %v3064 = vsel %vm171, %v3050, 0.0
    %3065 = vadd.xlane.f32.xlu0 %v3064
    %v3066 = vpop.xlane.xlu0 %3065
    %v3067 = vmul.f32 %v3057, %v1275
    %v3068 = vmul.f32 %v3060, %v1275
    %v3069 = vmul.f32 %v3063, %v1275
    %v3070 = vmul.f32 %v3066, %v1275
    %v3071 = vmul.f32 %v3047, %v3047
    %v3072 = vmul.f32 %v3048, %v3048
    %v3073 = vmul.f32 %v3049, %v3049
    %v3074 = vmul.f32 %v3050, %v3050
    %v3075 = vsel %vm171, %v3071, 0.0
    %3076 = vadd.xlane.f32.xlu0 %v3075
    %v3077 = vpop.xlane.xlu0 %3076
    %v3078 = vsel %vm171, %v3072, 0.0
    %3079 = vadd.xlane.f32.xlu0 %v3078
    %v3080 = vpop.xlane.xlu0 %3079
    %v3081 = vsel %vm171, %v3073, 0.0
    %3082 = vadd.xlane.f32.xlu0 %v3081
    %v3083 = vpop.xlane.xlu0 %3082
    %v3084 = vsel %vm171, %v3074, 0.0
    %3085 = vadd.xlane.f32.xlu0 %v3084
    %v3086 = vpop.xlane.xlu0 %3085
    %v3087 = vmul.f32 %v3077, %v1275
    %v3088 = vmul.f32 %v3080, %v1275
    %v3089 = vmul.f32 %v3083, %v1275
    %v3090 = vmul.f32 %v3086, %v1275
    %v3091 = vmul.f32 %v3067, %v3067
    %v3092 = vmul.f32 %v3068, %v3068
    %v3093 = vmul.f32 %v3069, %v3069
    %v3094 = vmul.f32 %v3070, %v3070
    %v3095 = vsub.f32 %v3087, %v3091
    %v3096 = vsub.f32 %v3088, %v3092
    %v3097 = vsub.f32 %v3089, %v3093
    %v3098 = vsub.f32 %v3090, %v3094
    %v3099 = vsub.f32 %v3047, %v3067
    %v3100 = vsub.f32 %v3048, %v3068
    %v3101 = vsub.f32 %v3049, %v3069
    %v3102 = vsub.f32 %v3050, %v3070
    %v3103 = vadd.f32 %v3095, 1e-05
    %v3104 = vadd.f32 %v3096, 1e-05
    %v3105 = vadd.f32 %v3097, 1e-05
    %v3106 = vadd.f32 %v3098, 1e-05
    %v3107 = vrsqrt.pop %v3103
    %v3108 = vrsqrt.pop %v3104
    %v3109 = vrsqrt.pop %v3105
    %v3110 = vrsqrt.pop %v3106
    %v3111 = vmul.f32 %v3099, %v3107
    %v3112 = vmul.f32 %v3100, %v3108
    %v3113 = vmul.f32 %v3101, %v3109
    %v3114 = vmul.f32 %v3102, %v3110
    %v3116 = vlaneseq
    %v3117 = vshrl.u32 %v3116, 7
    %v3118 = vsub.s32 0, %v3117
    %v3119 = vrot.slane %v3052, %v3118
    %v3121 = vmul.f32 %v3111, %v3119
    %v3122 = vmul.f32 %v3112, %v3119
    %v3123 = vmul.f32 %v3113, %v3119
    %v3124 = vmul.f32 %v3114, %v3119
    %v3126 = vlaneseq
    %v3127 = vshrl.u32 %v3126, 7
    %v3128 = vsub.s32 0, %v3127
    %v3129 = vrot.slane %v3054, %v3128
    %v3131 = vadd.f32 %v3121, %v3129
    %v3132 = vadd.f32 %v3122, %v3129
    %v3133 = vadd.f32 %v3123, %v3129
    %v3134 = vadd.f32 %v3124, %v3129
    %v3135 = vsel %vm171, %v3131, 0.0
    %v3136 = vrot.slane %v3135, 4
    %v3137 = vadd.f32 %v3135, %v3136
    %v3138 = vrot.slane %v3137, 2
    %v3139 = vadd.f32 %v3137, %v3138
    %v3140 = vrot.slane %v3139, 1
    %v3141 = vadd.f32 %v3139, %v3140
    %v3142 = vsel %vm171, %v3132, 0.0
    %v3143 = vrot.slane %v3142, 4
    %v3144 = vadd.f32 %v3142, %v3143
    %v3145 = vrot.slane %v3144, 2
    %v3146 = vadd.f32 %v3144, %v3145
    %v3147 = vrot.slane %v3146, 1
    %v3148 = vadd.f32 %v3146, %v3147
    %v3149 = vsel %vm171, %v3133, 0.0
    %v3150 = vrot.slane %v3149, 4
    %v3151 = vadd.f32 %v3149, %v3150
    %v3152 = vrot.slane %v3151, 2
    %v3153 = vadd.f32 %v3151, %v3152
    %v3154 = vrot.slane %v3153, 1
    %v3155 = vadd.f32 %v3153, %v3154
    %v3156 = vsel %vm171, %v3134, 0.0
    %v3157 = vrot.slane %v3156, 4
    %v3158 = vadd.f32 %v3156, %v3157
    %v3159 = vrot.slane %v3158, 2
    %v3160 = vadd.f32 %v3158, %v3159
    %v3161 = vrot.slane %v3160, 1
    %v3162 = vadd.f32 %v3160, %v3161
    %v3163 = vrcp.pop 8.0
    %v3164 = vmul.f32 %v3141, %v3163
    %v3165 = vmul.f32 %v3148, %v3163
    %v3166 = vmul.f32 %v3155, %v3163
    %v3167 = vmul.f32 %v3162, %v3163
    %v3168 = vld [vmem:[%s15] sm:$0xf]
    %v3169 = vld [vmem:[%s15 + $0x4] sm:$0xf]
    %v3170 = vld [vmem:[%s15 + $0x8] sm:$0xf]
    %v3171 = vld [vmem:[%s15 + $0xc] sm:$0xf]
    %v3172 = vpack.c.bf16 %v3164, %v3164
    %v3173 = vpack.c.bf16 %v3165, %v3165
    %v3174 = vpack.c.bf16 %v3166, %v3166
    %v3175 = vpack.c.bf16 %v3167, %v3167
    %v3176 = vld [vmem:[%s16] sm:$0x1]
    %v3178 = vlaneseq
    %v3179 = vshrl.u32 %v3178, 7
    %v3180 = vsub.s32 0, %v3179
    %v3181 = vrot.slane %v3176, %v3180
    %v3187 = vunpack.c.l.b16 %v3172
    %v3188 = vunpack.c.l.b16 %v3173
    %v3189 = vunpack.c.l.b16 %v3174
    %v3190 = vunpack.c.l.b16 %v3175
    %vm3191 = vcmask 1041409
    %v3192 = vsel %vm3191, %v3188, %v3187
    %vm3193 = vcmask 1042434
    %v3194 = vsel %vm3193, %v3189, %v3192
    %vm3195 = vcmask 1043459
    %v3196 = vsel %vm3195, %v3190, %v3194
    %v3197 = vpack.c.b16 %v3196, %v3196
    %v3202 = vunpack.c.l.b16 %v3168
    %v3203 = vunpack.c.l.b16 %v3169
    %v3204 = vunpack.c.l.b16 %v3170
    %v3205 = vunpack.c.l.b16 %v3171
    %v3206 = vpack.c.b16 %v3203, %v3202
    %v3207 = vpack.c.b16 %v3205, %v3204
    %v3211 = vsel %vm171, %v3197, 0
    %3213 = vmatprep.subr.bf16.mxu0 0
    %3214 = vmatpush1.bf16.msra.mxu0 0
    %3215 = vmatprep.subr.bf16.mxu0 0
    %3216 = vmatpush1.bf16.msra.mxu0 0
    %3217 = vmatprep.subr.bf16.mxu0 0
    %3218 = vmatpush1.bf16.msra.mxu0 0
    %3219 = vmatprep.subr.bf16.mxu0 0
    %3220 = vmatpush1.bf16.msra.mxu0 0
    %3221 = vmatprep.subr.bf16.mxu0 0
    %3222 = vmatpush1.bf16.msra.mxu0 0
    %3223 = vmatprep.subr.bf16.mxu0 0
    %3224 = vmatpush1.bf16.msra.mxu0 0
    %3225 = vmatprep.subr.bf16.mxu0 0
    %3226 = vmatpush1.bf16.msra.mxu0 %v3207
    %3227 = vmatprep.subr.bf16.mxu0 0
    %3228 = vmatpush1.bf16.msra.mxu0 %v3206
    %3229 = vmatprep.subr.bf16.mxu0 0
    %3230 = vmatpush2.bf16.msra.mxu0 0
    %3231 = vmatprep.subr.bf16.mxu0 0
    %3232 = vmatpush2.bf16.msra.mxu0 0
    %3233 = vmatprep.subr.bf16.mxu0 0
    %3234 = vmatpush2.bf16.msra.mxu0 0
    %3235 = vmatprep.subr.bf16.mxu0 0
    %3236 = vmatpush2.bf16.msra.mxu0 0
    %3237 = vmatprep.subr.bf16.mxu0 0
    %3238 = vmatpush2.bf16.msra.mxu0 0
    %3239 = vmatprep.subr.bf16.mxu0 0
    %3240 = vmatpush2.bf16.msra.mxu0 0
    %3241 = vmatprep.subr.bf16.mxu0 0
    %3242 = vmatpush2.bf16.msra.mxu0 0
    %3243 = vmatprep.subr.bf16.mxu0 0
    %3244 = vmatpush2.bf16.msra.mxu0 0
    %3245 = vmatprep.mubr.bf16.mxu0 0
    %3246 = vmatmul.mubr.bf16.gmra.mxu0 %v3211
    %v3247 = vpop.f32.mrf.mxu0
    %v3248 = vadd.f32 %v3181, %v3247
    %v3249 = vpop.f32.mrf.mxu0
    %v3250 = vpop.f32.mrf.mxu0
    %v3251 = vpop.f32.mrf.mxu0
    %3252 = vdwg.mxu0
    %v3253 = vld [vmem:[%s17] sm:$0x1]
    %v3254 = vld [vmem:[%s18] sm:$0x1]
    %vm3255 = vcmask 257024
    %v3256 = vsel %vm3255, %v3248, 0.0
    %3257 = vadd.xlane.f32.xlu0 %v3256
    %v3258 = vpop.xlane.xlu0 %3257
    %v3259 = vmul.f32 %v3258, %v1275
    %v3260 = vmul.f32 %v3248, %v3248
    %v3261 = vsel %vm3255, %v3260, 0.0
    %3262 = vadd.xlane.f32.xlu0 %v3261
    %v3263 = vpop.xlane.xlu0 %3262
    %v3264 = vmul.f32 %v3263, %v1275
    %v3265 = vmul.f32 %v3259, %v3259
    %v3266 = vsub.f32 %v3264, %v3265
    %v3267 = vsub.f32 %v3248, %v3259
    %v3268 = vadd.f32 %v3266, 1e-05
    %v3269 = vrsqrt.pop %v3268
    %v3270 = vmul.f32 %v3267, %v3269
    %v3272 = vlaneseq
    %v3273 = vshrl.u32 %v3272, 7
    %v3274 = vsub.s32 0, %v3273
    %v3275 = vrot.slane %v3253, %v3274
    %v3277 = vmul.f32 %v3270, %v3275
    %v3279 = vlaneseq
    %v3280 = vshrl.u32 %v3279, 7
    %v3281 = vsub.s32 0, %v3280
    %v3282 = vrot.slane %v3254, %v3281
    %v3284 = vadd.f32 %v3277, %v3282
    %v3285 = vld [vmem:[%s19] sm:$0x1]
    %v3287 = vlaneseq
    %v3288 = vshrl.u32 %v3287, 7
    %v3289 = vsub.s32 0, %v3288
    %v3290 = vrot.slane %v3285, %v3289
    %v3292 = vmul.f32 %v3284, %v3290
    %v3293 = vsel %vm3255, %v3292, 0.0
    %3294 = vadd.xlane.f32.xlu0 %v3293
    %v3295 = vpop.xlane.xlu0 %3294
    %v3296 = vld [vmem:[#allocation2] sm:$0x1]
    %3298 = vset.pattern.permute.xlu0 0
    %3299 = vperm.xlu0 %3298, %v3296
    %v3300 = vpop.permute.xlu0 %3299
    %v3302 = vlaneseq
    %v3303 = vshrl.u32 %v3302, 7
    %v3304 = vsub.s32 0, %v3303
    %v3305 = vrot.slane %v3300, %v3304
    %v3306 = vadd.f32 %v3295, %v3305
    %v3308 = vlaneseq
    %v3309 = vand.u32 %v3308, 127
    %v3310 = vlaneseq
    %v3311 = vshrl.u32 %v3310, 7
    %v3312 = vsub.s32 %v3309, %v3311
    %v3313 = vrot.slane %v3306, %v3312
    %vm3315 = vcmask 24576
    %3316 = vst.msk [vmem:[#allocation3] sm:$0x1] %vm3315, %v3313
    // Predicated region
    $region86: #{residual_model_linear.1} parent=1 // pred_check
      _
    $region87: #{residual_model_linear.1} parent=1 // pred_check_branch
      %3318 = sbr.rel (0) target = $region89
    $region88: #{residual_model_linear.1} parent=1 // pred_region
      %s3320 = ssub.s32 16, 16
      %3321 = vsyncadd [#allocation4], %s3320
      %s3323 = sshll.u32 [#allocation3], 4
      %s3324 = int_to_ptr.vmem [resolvable:$true] %s3323
      %3326 = dma.vmem_to_hbm [thread:$0]  %s3324, 16, %s21, [#allocation4]
    $region89: #{residual_model_linear.1} parent=1 // pred_fallthru
      _
    // Predicated region
    $region90: #{residual_model_linear.1} parent=1 // pred_check
      _
    $region91: #{residual_model_linear.1} parent=1 // pred_check_branch
      %3328 = sbr.rel (0) target = $region93
    $region92: #{residual_model_linear.1} parent=1 // pred_region
      %3329 = dma.done [#allocation4], 16
    $region93: #{residual_model_linear.1} parent=1 // pred_fallthru
      _
    %3330 = vsyncpa [#allocation4], 1

</llo_original>
